<compile_context>
chip_gen: v7x
topology: tpu7x:2x2x1
jax: 0.10.0
libtpu: 0.0.40
codegen_flags: <defaults>
</compile_context>

<pallas_src>
import jax
import jax.numpy as jnp
import numpy as np
from jax import lax
from jax.experimental import pallas as pl
from jax.experimental.pallas import tpu as pltpu

HIDDEN = 64
FC1 = 32


def _round_up(n, m):
    return ((n + m - 1) // m) * m


def _choose_batch_blocks(B):
    if B <= 8:
        b_pad = _round_up(B, 8)
        return b_pad, b_pad
    # Split into at least two parallel blocks (v7x: 2 TensorCores / chip),
    # capped at 128 rows per block; keep blocks sublane-aligned (x8).
    block_b = min(128, _round_up(pl.cdiv(B, 2), 8))
    b_pad = _round_up(B, block_b)
    return b_pad, block_b


def lstm_kernel(x_ref, whh_ref, wih_ref, bsum_ref, wf_ref, bf_ref, out_ref):
    """One batch-block of the whole forward pass (everything VMEM-resident).

    x_ref   : (T, Bb, 1) f32   raw inputs (input_size == 1)
    whh_ref : (H, 4H)    f32   W_hh^T with i/f/o columns pre-scaled by 0.5
    wih_ref : (1, 4H)    f32   W_ih^T row, i/f/o entries pre-scaled by 0.5
    bsum_ref: (1, 4H)    f32   b_ih + b_hh, i/f/o entries pre-scaled by 0.5
    wf_ref  : (1, H)     f32   fused head weights (W2 @ W1)
    bf_ref  : (1,)       f32   fused head bias, in SMEM
    out_ref : (Bb, 128)  f32   y replicated across lanes (lane-dense store)
    """
    T = x_ref.shape[0]
    Bb = x_ref.shape[1]
    H = whh_ref.shape[0]

    # Hoisted broadcasts (JAX does not CSE broadcast_in_dim across iterations).
    wih_b = jnp.broadcast_to(wih_ref[...], (Bb, 4 * H))    # (Bb, 4H)
    bsum_b = jnp.broadcast_to(bsum_ref[...], (Bb, 4 * H))  # (Bb, 4H)

    h0 = jnp.zeros((Bb, H), jnp.float32)
    c0 = jnp.zeros((Bb, H), jnp.float32)

    def step(t, carry):
        h, c = carry
        # In-kernel input projection (VPU): hidden under the recurrent matmul.
        gx_t = x_ref[t] * wih_b + bsum_b                       # (Bb, 4H)
        # Recurrent matmul: the only op on the serial t->t+1 chain.  W_hh^T is
        # read from VMEM here (not pinned in vregs across the unrolled loop).
        pre = gx_t + jnp.dot(h, whh_ref[...],
                             preferred_element_type=jnp.float32)
        # Gate activations with the 0.5 pre-scale folded into the weights:
        #   pre = [z_i/2 | z_f/2 | z_g | z_o/2]  (PyTorch order [i|f|g|o])
        #   sigmoid(z) = 0.5*tanh(z/2) + 0.5 ;  tanh(z_g) direct.
        # => one tanh over the whole 2-vreg slab, no wasted EUP lanes.
        t_all = jnp.tanh(pre)
        i_g = 0.5 * t_all[:, 0 * H:1 * H] + 0.5
        f_g = 0.5 * t_all[:, 1 * H:2 * H] + 0.5
        g_g = t_all[:, 2 * H:3 * H]
        o_g = 0.5 * t_all[:, 3 * H:4 * H] + 0.5
        c_new = f_g * c + i_g * g_g
        h_new = o_g * jnp.tanh(c_new)
        return (h_new, c_new)

    # T is a compile-time constant -> fully unroll the recurrence so the LLO
    # scheduler can interleave MXU / EUP / VPU work across timesteps.
    h, _ = lax.fori_loop(0, T, step, (h0, c0), unroll=True)

    # Dropout(0.2) is identity in eval; fc1/fc2 fused into one matvec:
    #   y = sum(h * (W2@W1), lanes) + (b1@W2^T + b2)
    y = jnp.sum(h * wf_ref[...], axis=-1, keepdims=True) + bf_ref[0]  # (Bb, 1)
    # Lane-dense, unmasked store: replicate across the 128 lanes of the block.
    out_ref[...] = jnp.broadcast_to(y, (Bb, 128))


def lstm_model_forward(x_btd, params):
    """x_btd: (B, T, 1) float32, PyTorch batch_first layout."""
    B, T, D = x_btd.shape
    assert D == 1
    H = HIDDEN

    # --- wrapper-side param prep (tiny, fused by XLA) ---
    # Fold the 0.5 sigmoid pre-scale into the i/f/o gate columns ([i|f|g|o]).
    gate_scale = jnp.concatenate([
        jnp.full((H,), 0.5, jnp.float32),
        jnp.full((H,), 0.5, jnp.float32),
        jnp.ones((H,), jnp.float32),
        jnp.full((H,), 0.5, jnp.float32),
    ])
    wih_row = (params["W_ih"][:, 0] * gate_scale).reshape(1, 4 * H)
    b_sum = ((params["b_ih"] + params["b_hh"]) * gate_scale).reshape(1, 4 * H)
    whh_t = params["W_hh"].T * gate_scale[None, :]            # (H, 4H)
    wf_row = params["W2"] @ params["W1"]                      # (1, H)
    bf = (params["b1"] @ params["W2"].T + params["b2"]).reshape(1,)

    # --- batch blocking (sublane-aligned; >=2 parallel blocks once B > 8) ---
    b_pad, block_b = _choose_batch_blocks(B)

    # Kernel consumes x time-major: (T, B, 1).  HBM traffic is just the raw
    # samples (4 B per (t, b)) -- no precomputed (T, B, 4H) slab.
    x_tb1 = jnp.transpose(x_btd, (1, 0, 2)).astype(jnp.float32)   # (T, B, 1)
    if b_pad != B:
        x_tb1 = jnp.pad(x_tb1, ((0, 0), (0, b_pad - B), (0, 0)))

    grid = (b_pad // block_b,)

    out = pl.pallas_call(
        lstm_kernel,
        out_shape=jax.ShapeDtypeStruct((b_pad, 128), jnp.float32),
        grid_spec=pltpu.PrefetchScalarGridSpec(
            num_scalar_prefetch=0,
            grid=grid,
            in_specs=[
                pl.BlockSpec((T, block_b, 1), lambda i: (0, i, 0)),
                pl.BlockSpec((H, 4 * H), lambda i: (0, 0)),
                pl.BlockSpec((1, 4 * H), lambda i: (0, 0)),
                pl.BlockSpec((1, 4 * H), lambda i: (0, 0)),
                pl.BlockSpec((1, H), lambda i: (0, 0)),
                pl.BlockSpec(memory_space=pltpu.MemorySpace.SMEM),
            ],
            out_specs=pl.BlockSpec((block_b, 128), lambda i: (i, 0)),
        ),
        compiler_params=pltpu.CompilerParams(
            dimension_semantics=("parallel",)),
    )(x_tb1, whh_t, wih_row, b_sum, wf_row, bf)
    return out[:B, :1]


def make_params(key):
    """Deterministic parameter init (uniform, PyTorch-like bounds)."""
    ks = jax.random.split(key, 8)
    k = 1.0 / np.sqrt(HIDDEN)
    u = lambda kk, shape, bound: jax.random.uniform(
        kk, shape, jnp.float32, minval=-bound, maxval=bound)
    return {
        "W_ih": u(ks[0], (4 * HIDDEN, 1), k),
        "W_hh": u(ks[1], (4 * HIDDEN, HIDDEN), k),
        "b_ih": u(ks[2], (4 * HIDDEN,), k),
        "b_hh": u(ks[3], (4 * HIDDEN,), k),
        "W1": u(ks[4], (FC1, HIDDEN), 1.0 / np.sqrt(HIDDEN)),
        "b1": u(ks[5], (FC1,), 1.0 / np.sqrt(HIDDEN)),
        "W2": u(ks[6], (1, FC1), 1.0 / np.sqrt(FC1)),
        "b2": u(ks[7], (1,), 1.0 / np.sqrt(FC1)),
    }


def reference_forward(x_btd, params):
    """Pure-JAX reference of the PyTorch forward (eval mode), unfused."""
    B, T, _ = x_btd.shape
    h = jnp.zeros((B, HIDDEN), jnp.float32)
    c = jnp.zeros((B, HIDDEN), jnp.float32)
    wih_t, whh_t = params["W_ih"].T, params["W_hh"].T
    b = params["b_ih"] + params["b_hh"]
    for t in range(T):
        gates = x_btd[:, t, :] @ wih_t + h @ whh_t + b
        i = jax.nn.sigmoid(gates[:, 0:HIDDEN])
        f = jax.nn.sigmoid(gates[:, HIDDEN:2 * HIDDEN])
        g = jnp.tanh(gates[:, 2 * HIDDEN:3 * HIDDEN])
        o = jax.nn.sigmoid(gates[:, 3 * HIDDEN:4 * HIDDEN])
        c = f * c + i * g
        h = o * jnp.tanh(c)
    y = h @ params["W1"].T + params["b1"]     # dropout = identity in eval
    y = y @ params["W2"].T + params["b2"]
    return y


if __name__ == "__main__":
    key = jax.random.PRNGKey(0)
    k_x, k_p = jax.random.split(key)

    # Matches the spec: 7 sliding windows of 20 timesteps, input_size = 1.
    B, T = 7, 20
    x = jax.random.normal(k_x, (B, T, 1), jnp.float32)
    params = make_params(k_p)

    out = lstm_model_forward(x, params)
    out = jax.block_until_ready(out)

    ref = reference_forward(x, params)
    assert out.shape == (B, 1)
    np.testing.assert_allclose(np.asarray(out), np.asarray(ref), rtol=1e-4, atol=1e-4)

    print("KERNEL_OK")
</pallas_src>

<mosaic_0001>
module attributes {stable_mosaic.version = 11 : i64} {
  func.func @lstm_kernel(%arg0: i32, %arg1: memref<20x8x1xf32, #tpu.memory_space<vmem>>, %arg2: memref<64x256xf32, #tpu.memory_space<vmem>>, %arg3: memref<1x256xf32, #tpu.memory_space<vmem>>, %arg4: memref<1x256xf32, #tpu.memory_space<vmem>>, %arg5: memref<1x64xf32, #tpu.memory_space<vmem>>, %arg6: memref<1xf32, #tpu.memory_space<smem>>, %arg7: memref<8x128xf32, #tpu.memory_space<vmem>>) attributes {dimension_semantics = [#tpu.dimension_semantics<parallel>], iteration_bounds = array<i64: 1>, scalar_prefetch = 0 : i64, scratch_operands = 0 : i64, tpu.core_type = #tpu.core_type<tc>, window_params = [{transform_indices = @transform_0, window_bounds = array<i64: 20, 8, 1>}, {pipeline_mode = #tpu.pipeline_mode<synchronous>, transform_indices = @transform_1, window_bounds = array<i64: 64, 256>}, {pipeline_mode = #tpu.pipeline_mode<synchronous>, transform_indices = @transform_2, window_bounds = array<i64: 1, 256>}, {pipeline_mode = #tpu.pipeline_mode<synchronous>, transform_indices = @transform_3, window_bounds = array<i64: 1, 256>}, {pipeline_mode = #tpu.pipeline_mode<synchronous>, transform_indices = @transform_4, window_bounds = array<i64: 1, 64>}, {transform_indices = @transform_5, window_bounds = array<i64: 1>}, {transform_indices = @transform_6, window_bounds = array<i64: 8, 128>}]} {
    %c0 = arith.constant 0 : index
    %c0_0 = arith.constant 0 : index
    %0 = vector.load %arg3[%c0, %c0_0] : memref<1x256xf32, #tpu.memory_space<vmem>>, vector<1x256xf32>
    %1 = vector.shape_cast %0 : vector<1x256xf32> to vector<1x256xf32>
    %2 = vector.broadcast %1 : vector<1x256xf32> to vector<8x256xf32>
    %c0_1 = arith.constant 0 : index
    %c0_2 = arith.constant 0 : index
    %3 = vector.load %arg4[%c0_1, %c0_2] : memref<1x256xf32, #tpu.memory_space<vmem>>, vector<1x256xf32>
    %4 = vector.shape_cast %3 : vector<1x256xf32> to vector<1x256xf32>
    %5 = vector.broadcast %4 : vector<1x256xf32> to vector<8x256xf32>
    %cst = arith.constant 0.000000e+00 : f32
    %6 = vector.broadcast %cst : f32 to vector<8x64xf32>
    %cst_3 = arith.constant 0.000000e+00 : f32
    %7 = vector.broadcast %cst_3 : f32 to vector<8x64xf32>
    %c0_i32 = arith.constant 0 : i32
    %8 = arith.index_cast %c0_i32 : i32 to index
    %c0_4 = arith.constant 0 : index
    %c0_5 = arith.constant 0 : index
    %9 = vector.load %arg1[%8, %c0_4, %c0_5] : memref<20x8x1xf32, #tpu.memory_space<vmem>>, vector<1x8x1xf32>
    %10 = vector.shape_cast %9 : vector<1x8x1xf32> to vector<8x1xf32>
    %11 = vector.broadcast %10 : vector<8x1xf32> to vector<8x256xf32>
    %12 = arith.mulf %11, %2 : vector<8x256xf32>
    %13 = arith.addf %12, %5 : vector<8x256xf32>
    %c0_6 = arith.constant 0 : index
    %c0_7 = arith.constant 0 : index
    %14 = vector.load %arg2[%c0_6, %c0_7] : memref<64x256xf32, #tpu.memory_space<vmem>>, vector<64x256xf32>
    %cst_8 = arith.constant dense<0.000000e+00> : vector<8x256xf32>
    %15 = tpu.matmul %6, %14, %cst_8 {dimension_numbers = #tpu.dot_dimension_numbers<[1], [0], [0], [1], [0, 0, 1, 1], [], []>} : vector<8x64xf32>, vector<64x256xf32>, vector<8x256xf32> -> vector<8x256xf32>
    %16 = arith.addf %13, %15 : vector<8x256xf32>
    %17 = math.tanh %16 : vector<8x256xf32>
    %18 = vector.extract_strided_slice %17 {offsets = [0, 0], sizes = [8, 64], strides = [1, 1]} : vector<8x256xf32> to vector<8x64xf32>
    %cst_9 = arith.constant 5.000000e-01 : f32
    %19 = vector.broadcast %cst_9 : f32 to vector<8x64xf32>
    %20 = arith.mulf %19, %18 : vector<8x64xf32>
    %cst_10 = arith.constant 5.000000e-01 : f32
    %21 = vector.broadcast %cst_10 : f32 to vector<8x64xf32>
    %22 = arith.addf %20, %21 : vector<8x64xf32>
    %23 = vector.extract_strided_slice %17 {offsets = [0, 64], sizes = [8, 64], strides = [1, 1]} : vector<8x256xf32> to vector<8x64xf32>
    %cst_11 = arith.constant 5.000000e-01 : f32
    %24 = vector.broadcast %cst_11 : f32 to vector<8x64xf32>
    %25 = arith.mulf %24, %23 : vector<8x64xf32>
    %cst_12 = arith.constant 5.000000e-01 : f32
    %26 = vector.broadcast %cst_12 : f32 to vector<8x64xf32>
    %27 = arith.addf %25, %26 : vector<8x64xf32>
    %28 = vector.extract_strided_slice %17 {offsets = [0, 128], sizes = [8, 64], strides = [1, 1]} : vector<8x256xf32> to vector<8x64xf32>
    %29 = vector.extract_strided_slice %17 {offsets = [0, 192], sizes = [8, 64], strides = [1, 1]} : vector<8x256xf32> to vector<8x64xf32>
    %cst_13 = arith.constant 5.000000e-01 : f32
    %30 = vector.broadcast %cst_13 : f32 to vector<8x64xf32>
    %31 = arith.mulf %30, %29 : vector<8x64xf32>
    %cst_14 = arith.constant 5.000000e-01 : f32
    %32 = vector.broadcast %cst_14 : f32 to vector<8x64xf32>
    %33 = arith.addf %31, %32 : vector<8x64xf32>
    %34 = arith.mulf %27, %7 : vector<8x64xf32>
    %35 = arith.mulf %22, %28 : vector<8x64xf32>
    %36 = arith.addf %34, %35 : vector<8x64xf32>
    %37 = math.tanh %36 : vector<8x64xf32>
    %38 = arith.mulf %33, %37 : vector<8x64xf32>
    %c1_i32 = arith.constant 1 : i32
    %39 = arith.index_cast %c1_i32 : i32 to index
    %c0_15 = arith.constant 0 : index
    %c0_16 = arith.constant 0 : index
    %40 = vector.load %arg1[%39, %c0_15, %c0_16] : memref<20x8x1xf32, #tpu.memory_space<vmem>>, vector<1x8x1xf32>
    %41 = vector.shape_cast %40 : vector<1x8x1xf32> to vector<8x1xf32>
    %42 = vector.broadcast %41 : vector<8x1xf32> to vector<8x256xf32>
    %43 = arith.mulf %42, %2 : vector<8x256xf32>
    %44 = arith.addf %43, %5 : vector<8x256xf32>
    %c0_17 = arith.constant 0 : index
    %c0_18 = arith.constant 0 : index
    %45 = vector.load %arg2[%c0_17, %c0_18] : memref<64x256xf32, #tpu.memory_space<vmem>>, vector<64x256xf32>
    %cst_19 = arith.constant dense<0.000000e+00> : vector<8x256xf32>
    %46 = tpu.matmul %38, %45, %cst_19 {dimension_numbers = #tpu.dot_dimension_numbers<[1], [0], [0], [1], [0, 0, 1, 1], [], []>} : vector<8x64xf32>, vector<64x256xf32>, vector<8x256xf32> -> vector<8x256xf32>
    %47 = arith.addf %44, %46 : vector<8x256xf32>
    %48 = math.tanh %47 : vector<8x256xf32>
    %49 = vector.extract_strided_slice %48 {offsets = [0, 0], sizes = [8, 64], strides = [1, 1]} : vector<8x256xf32> to vector<8x64xf32>
    %cst_20 = arith.constant 5.000000e-01 : f32
    %50 = vector.broadcast %cst_20 : f32 to vector<8x64xf32>
    %51 = arith.mulf %50, %49 : vector<8x64xf32>
    %cst_21 = arith.constant 5.000000e-01 : f32
    %52 = vector.broadcast %cst_21 : f32 to vector<8x64xf32>
    %53 = arith.addf %51, %52 : vector<8x64xf32>
    %54 = vector.extract_strided_slice %48 {offsets = [0, 64], sizes = [8, 64], strides = [1, 1]} : vector<8x256xf32> to vector<8x64xf32>
    %cst_22 = arith.constant 5.000000e-01 : f32
    %55 = vector.broadcast %cst_22 : f32 to vector<8x64xf32>
    %56 = arith.mulf %55, %54 : vector<8x64xf32>
    %cst_23 = arith.constant 5.000000e-01 : f32
    %57 = vector.broadcast %cst_23 : f32 to vector<8x64xf32>
    %58 = arith.addf %56, %57 : vector<8x64xf32>
    %59 = vector.extract_strided_slice %48 {offsets = [0, 128], sizes = [8, 64], strides = [1, 1]} : vector<8x256xf32> to vector<8x64xf32>
    %60 = vector.extract_strided_slice %48 {offsets = [0, 192], sizes = [8, 64], strides = [1, 1]} : vector<8x256xf32> to vector<8x64xf32>
    %cst_24 = arith.constant 5.000000e-01 : f32
    %61 = vector.broadcast %cst_24 : f32 to vector<8x64xf32>
    %62 = arith.mulf %61, %60 : vector<8x64xf32>
    %cst_25 = arith.constant 5.000000e-01 : f32
    %63 = vector.broadcast %cst_25 : f32 to vector<8x64xf32>
    %64 = arith.addf %62, %63 : vector<8x64xf32>
    %65 = arith.mulf %58, %36 : vector<8x64xf32>
    %66 = arith.mulf %53, %59 : vector<8x64xf32>
    %67 = arith.addf %65, %66 : vector<8x64xf32>
    %68 = math.tanh %67 : vector<8x64xf32>
    %69 = arith.mulf %64, %68 : vector<8x64xf32>
    %c2_i32 = arith.constant 2 : i32
    %70 = arith.index_cast %c2_i32 : i32 to index
    %c0_26 = arith.constant 0 : index
    %c0_27 = arith.constant 0 : index
    %71 = vector.load %arg1[%70, %c0_26, %c0_27] : memref<20x8x1xf32, #tpu.memory_space<vmem>>, vector<1x8x1xf32>
    %72 = vector.shape_cast %71 : vector<1x8x1xf32> to vector<8x1xf32>
    %73 = vector.broadcast %72 : vector<8x1xf32> to vector<8x256xf32>
    %74 = arith.mulf %73, %2 : vector<8x256xf32>
    %75 = arith.addf %74, %5 : vector<8x256xf32>
    %c0_28 = arith.constant 0 : index
    %c0_29 = arith.constant 0 : index
    %76 = vector.load %arg2[%c0_28, %c0_29] : memref<64x256xf32, #tpu.memory_space<vmem>>, vector<64x256xf32>
    %cst_30 = arith.constant dense<0.000000e+00> : vector<8x256xf32>
    %77 = tpu.matmul %69, %76, %cst_30 {dimension_numbers = #tpu.dot_dimension_numbers<[1], [0], [0], [1], [0, 0, 1, 1], [], []>} : vector<8x64xf32>, vector<64x256xf32>, vector<8x256xf32> -> vector<8x256xf32>
    %78 = arith.addf %75, %77 : vector<8x256xf32>
    %79 = math.tanh %78 : vector<8x256xf32>
    %80 = vector.extract_strided_slice %79 {offsets = [0, 0], sizes = [8, 64], strides = [1, 1]} : vector<8x256xf32> to vector<8x64xf32>
    %cst_31 = arith.constant 5.000000e-01 : f32
    %81 = vector.broadcast %cst_31 : f32 to vector<8x64xf32>
    %82 = arith.mulf %81, %80 : vector<8x64xf32>
    %cst_32 = arith.constant 5.000000e-01 : f32
    %83 = vector.broadcast %cst_32 : f32 to vector<8x64xf32>
    %84 = arith.addf %82, %83 : vector<8x64xf32>
    %85 = vector.extract_strided_slice %79 {offsets = [0, 64], sizes = [8, 64], strides = [1, 1]} : vector<8x256xf32> to vector<8x64xf32>
    %cst_33 = arith.constant 5.000000e-01 : f32
    %86 = vector.broadcast %cst_33 : f32 to vector<8x64xf32>
    %87 = arith.mulf %86, %85 : vector<8x64xf32>
    %cst_34 = arith.constant 5.000000e-01 : f32
    %88 = vector.broadcast %cst_34 : f32 to vector<8x64xf32>
    %89 = arith.addf %87, %88 : vector<8x64xf32>
    %90 = vector.extract_strided_slice %79 {offsets = [0, 128], sizes = [8, 64], strides = [1, 1]} : vector<8x256xf32> to vector<8x64xf32>
    %91 = vector.extract_strided_slice %79 {offsets = [0, 192], sizes = [8, 64], strides = [1, 1]} : vector<8x256xf32> to vector<8x64xf32>
    %cst_35 = arith.constant 5.000000e-01 : f32
    %92 = vector.broadcast %cst_35 : f32 to vector<8x64xf32>
    %93 = arith.mulf %92, %91 : vector<8x64xf32>
    %cst_36 = arith.constant 5.000000e-01 : f32
    %94 = vector.broadcast %cst_36 : f32 to vector<8x64xf32>
    %95 = arith.addf %93, %94 : vector<8x64xf32>
    %96 = arith.mulf %89, %67 : vector<8x64xf32>
    %97 = arith.mulf %84, %90 : vector<8x64xf32>
    %98 = arith.addf %96, %97 : vector<8x64xf32>
    %99 = math.tanh %98 : vector<8x64xf32>
    %100 = arith.mulf %95, %99 : vector<8x64xf32>
    %c3_i32 = arith.constant 3 : i32
    %101 = arith.index_cast %c3_i32 : i32 to index
    %c0_37 = arith.constant 0 : index
    %c0_38 = arith.constant 0 : index
    %102 = vector.load %arg1[%101, %c0_37, %c0_38] : memref<20x8x1xf32, #tpu.memory_space<vmem>>, vector<1x8x1xf32>
    %103 = vector.shape_cast %102 : vector<1x8x1xf32> to vector<8x1xf32>
    %104 = vector.broadcast %103 : vector<8x1xf32> to vector<8x256xf32>
    %105 = arith.mulf %104, %2 : vector<8x256xf32>
    %106 = arith.addf %105, %5 : vector<8x256xf32>
    %c0_39 = arith.constant 0 : index
    %c0_40 = arith.constant 0 : index
    %107 = vector.load %arg2[%c0_39, %c0_40] : memref<64x256xf32, #tpu.memory_space<vmem>>, vector<64x256xf32>
    %cst_41 = arith.constant dense<0.000000e+00> : vector<8x256xf32>
    %108 = tpu.matmul %100, %107, %cst_41 {dimension_numbers = #tpu.dot_dimension_numbers<[1], [0], [0], [1], [0, 0, 1, 1], [], []>} : vector<8x64xf32>, vector<64x256xf32>, vector<8x256xf32> -> vector<8x256xf32>
    %109 = arith.addf %106, %108 : vector<8x256xf32>
    %110 = math.tanh %109 : vector<8x256xf32>
    %111 = vector.extract_strided_slice %110 {offsets = [0, 0], sizes = [8, 64], strides = [1, 1]} : vector<8x256xf32> to vector<8x64xf32>
    %cst_42 = arith.constant 5.000000e-01 : f32
    %112 = vector.broadcast %cst_42 : f32 to vector<8x64xf32>
    %113 = arith.mulf %112, %111 : vector<8x64xf32>
    %cst_43 = arith.constant 5.000000e-01 : f32
    %114 = vector.broadcast %cst_43 : f32 to vector<8x64xf32>
    %115 = arith.addf %113, %114 : vector<8x64xf32>
    %116 = vector.extract_strided_slice %110 {offsets = [0, 64], sizes = [8, 64], strides = [1, 1]} : vector<8x256xf32> to vector<8x64xf32>
    %cst_44 = arith.constant 5.000000e-01 : f32
    %117 = vector.broadcast %cst_44 : f32 to vector<8x64xf32>
    %118 = arith.mulf %117, %116 : vector<8x64xf32>
    %cst_45 = arith.constant 5.000000e-01 : f32
    %119 = vector.broadcast %cst_45 : f32 to vector<8x64xf32>
    %120 = arith.addf %118, %119 : vector<8x64xf32>
    %121 = vector.extract_strided_slice %110 {offsets = [0, 128], sizes = [8, 64], strides = [1, 1]} : vector<8x256xf32> to vector<8x64xf32>
    %122 = vector.extract_strided_slice %110 {offsets = [0, 192], sizes = [8, 64], strides = [1, 1]} : vector<8x256xf32> to vector<8x64xf32>
    %cst_46 = arith.constant 5.000000e-01 : f32
    %123 = vector.broadcast %cst_46 : f32 to vector<8x64xf32>
    %124 = arith.mulf %123, %122 : vector<8x64xf32>
    %cst_47 = arith.constant 5.000000e-01 : f32
    %125 = vector.broadcast %cst_47 : f32 to vector<8x64xf32>
    %126 = arith.addf %124, %125 : vector<8x64xf32>
    %127 = arith.mulf %120, %98 : vector<8x64xf32>
    %128 = arith.mulf %115, %121 : vector<8x64xf32>
    %129 = arith.addf %127, %128 : vector<8x64xf32>
    %130 = math.tanh %129 : vector<8x64xf32>
    %131 = arith.mulf %126, %130 : vector<8x64xf32>
    %c4_i32 = arith.constant 4 : i32
    %132 = arith.index_cast %c4_i32 : i32 to index
    %c0_48 = arith.constant 0 : index
    %c0_49 = arith.constant 0 : index
    %133 = vector.load %arg1[%132, %c0_48, %c0_49] : memref<20x8x1xf32, #tpu.memory_space<vmem>>, vector<1x8x1xf32>
    %134 = vector.shape_cast %133 : vector<1x8x1xf32> to vector<8x1xf32>
    %135 = vector.broadcast %134 : vector<8x1xf32> to vector<8x256xf32>
    %136 = arith.mulf %135, %2 : vector<8x256xf32>
    %137 = arith.addf %136, %5 : vector<8x256xf32>
    %c0_50 = arith.constant 0 : index
    %c0_51 = arith.constant 0 : index
    %138 = vector.load %arg2[%c0_50, %c0_51] : memref<64x256xf32, #tpu.memory_space<vmem>>, vector<64x256xf32>
    %cst_52 = arith.constant dense<0.000000e+00> : vector<8x256xf32>
    %139 = tpu.matmul %131, %138, %cst_52 {dimension_numbers = #tpu.dot_dimension_numbers<[1], [0], [0], [1], [0, 0, 1, 1], [], []>} : vector<8x64xf32>, vector<64x256xf32>, vector<8x256xf32> -> vector<8x256xf32>
    %140 = arith.addf %137, %139 : vector<8x256xf32>
    %141 = math.tanh %140 : vector<8x256xf32>
    %142 = vector.extract_strided_slice %141 {offsets = [0, 0], sizes = [8, 64], strides = [1, 1]} : vector<8x256xf32> to vector<8x64xf32>
    %cst_53 = arith.constant 5.000000e-01 : f32
    %143 = vector.broadcast %cst_53 : f32 to vector<8x64xf32>
    %144 = arith.mulf %143, %142 : vector<8x64xf32>
    %cst_54 = arith.constant 5.000000e-01 : f32
    %145 = vector.broadcast %cst_54 : f32 to vector<8x64xf32>
    %146 = arith.addf %144, %145 : vector<8x64xf32>
    %147 = vector.extract_strided_slice %141 {offsets = [0, 64], sizes = [8, 64], strides = [1, 1]} : vector<8x256xf32> to vector<8x64xf32>
    %cst_55 = arith.constant 5.000000e-01 : f32
    %148 = vector.broadcast %cst_55 : f32 to vector<8x64xf32>
    %149 = arith.mulf %148, %147 : vector<8x64xf32>
    %cst_56 = arith.constant 5.000000e-01 : f32
    %150 = vector.broadcast %cst_56 : f32 to vector<8x64xf32>
    %151 = arith.addf %149, %150 : vector<8x64xf32>
    %152 = vector.extract_strided_slice %141 {offsets = [0, 128], sizes = [8, 64], strides = [1, 1]} : vector<8x256xf32> to vector<8x64xf32>
    %153 = vector.extract_strided_slice %141 {offsets = [0, 192], sizes = [8, 64], strides = [1, 1]} : vector<8x256xf32> to vector<8x64xf32>
    %cst_57 = arith.constant 5.000000e-01 : f32
    %154 = vector.broadcast %cst_57 : f32 to vector<8x64xf32>
    %155 = arith.mulf %154, %153 : vector<8x64xf32>
    %cst_58 = arith.constant 5.000000e-01 : f32
    %156 = vector.broadcast %cst_58 : f32 to vector<8x64xf32>
    %157 = arith.addf %155, %156 : vector<8x64xf32>
    %158 = arith.mulf %151, %129 : vector<8x64xf32>
    %159 = arith.mulf %146, %152 : vector<8x64xf32>
    %160 = arith.addf %158, %159 : vector<8x64xf32>
    %161 = math.tanh %160 : vector<8x64xf32>
    %162 = arith.mulf %157, %161 : vector<8x64xf32>
    %c5_i32 = arith.constant 5 : i32
    %163 = arith.index_cast %c5_i32 : i32 to index
    %c0_59 = arith.constant 0 : index
    %c0_60 = arith.constant 0 : index
    %164 = vector.load %arg1[%163, %c0_59, %c0_60] : memref<20x8x1xf32, #tpu.memory_space<vmem>>, vector<1x8x1xf32>
    %165 = vector.shape_cast %164 : vector<1x8x1xf32> to vector<8x1xf32>
    %166 = vector.broadcast %165 : vector<8x1xf32> to vector<8x256xf32>
    %167 = arith.mulf %166, %2 : vector<8x256xf32>
    %168 = arith.addf %167, %5 : vector<8x256xf32>
    %c0_61 = arith.constant 0 : index
    %c0_62 = arith.constant 0 : index
    %169 = vector.load %arg2[%c0_61, %c0_62] : memref<64x256xf32, #tpu.memory_space<vmem>>, vector<64x256xf32>
    %cst_63 = arith.constant dense<0.000000e+00> : vector<8x256xf32>
    %170 = tpu.matmul %162, %169, %cst_63 {dimension_numbers = #tpu.dot_dimension_numbers<[1], [0], [0], [1], [0, 0, 1, 1], [], []>} : vector<8x64xf32>, vector<64x256xf32>, vector<8x256xf32> -> vector<8x256xf32>
    %171 = arith.addf %168, %170 : vector<8x256xf32>
    %172 = math.tanh %171 : vector<8x256xf32>
    %173 = vector.extract_strided_slice %172 {offsets = [0, 0], sizes = [8, 64], strides = [1, 1]} : vector<8x256xf32> to vector<8x64xf32>
    %cst_64 = arith.constant 5.000000e-01 : f32
    %174 = vector.broadcast %cst_64 : f32 to vector<8x64xf32>
    %175 = arith.mulf %174, %173 : vector<8x64xf32>
    %cst_65 = arith.constant 5.000000e-01 : f32
    %176 = vector.broadcast %cst_65 : f32 to vector<8x64xf32>
    %177 = arith.addf %175, %176 : vector<8x64xf32>
    %178 = vector.extract_strided_slice %172 {offsets = [0, 64], sizes = [8, 64], strides = [1, 1]} : vector<8x256xf32> to vector<8x64xf32>
    %cst_66 = arith.constant 5.000000e-01 : f32
    %179 = vector.broadcast %cst_66 : f32 to vector<8x64xf32>
    %180 = arith.mulf %179, %178 : vector<8x64xf32>
    %cst_67 = arith.constant 5.000000e-01 : f32
    %181 = vector.broadcast %cst_67 : f32 to vector<8x64xf32>
    %182 = arith.addf %180, %181 : vector<8x64xf32>
    %183 = vector.extract_strided_slice %172 {offsets = [0, 128], sizes = [8, 64], strides = [1, 1]} : vector<8x256xf32> to vector<8x64xf32>
    %184 = vector.extract_strided_slice %172 {offsets = [0, 192], sizes = [8, 64], strides = [1, 1]} : vector<8x256xf32> to vector<8x64xf32>
    %cst_68 = arith.constant 5.000000e-01 : f32
    %185 = vector.broadcast %cst_68 : f32 to vector<8x64xf32>
    %186 = arith.mulf %185, %184 : vector<8x64xf32>
    %cst_69 = arith.constant 5.000000e-01 : f32
    %187 = vector.broadcast %cst_69 : f32 to vector<8x64xf32>
    %188 = arith.addf %186, %187 : vector<8x64xf32>
    %189 = arith.mulf %182, %160 : vector<8x64xf32>
    %190 = arith.mulf %177, %183 : vector<8x64xf32>
    %191 = arith.addf %189, %190 : vector<8x64xf32>
    %192 = math.tanh %191 : vector<8x64xf32>
    %193 = arith.mulf %188, %192 : vector<8x64xf32>
    %c6_i32 = arith.constant 6 : i32
    %194 = arith.index_cast %c6_i32 : i32 to index
    %c0_70 = arith.constant 0 : index
    %c0_71 = arith.constant 0 : index
    %195 = vector.load %arg1[%194, %c0_70, %c0_71] : memref<20x8x1xf32, #tpu.memory_space<vmem>>, vector<1x8x1xf32>
    %196 = vector.shape_cast %195 : vector<1x8x1xf32> to vector<8x1xf32>
    %197 = vector.broadcast %196 : vector<8x1xf32> to vector<8x256xf32>
    %198 = arith.mulf %197, %2 : vector<8x256xf32>
    %199 = arith.addf %198, %5 : vector<8x256xf32>
    %c0_72 = arith.constant 0 : index
    %c0_73 = arith.constant 0 : index
    %200 = vector.load %arg2[%c0_72, %c0_73] : memref<64x256xf32, #tpu.memory_space<vmem>>, vector<64x256xf32>
    %cst_74 = arith.constant dense<0.000000e+00> : vector<8x256xf32>
    %201 = tpu.matmul %193, %200, %cst_74 {dimension_numbers = #tpu.dot_dimension_numbers<[1], [0], [0], [1], [0, 0, 1, 1], [], []>} : vector<8x64xf32>, vector<64x256xf32>, vector<8x256xf32> -> vector<8x256xf32>
    %202 = arith.addf %199, %201 : vector<8x256xf32>
    %203 = math.tanh %202 : vector<8x256xf32>
    %204 = vector.extract_strided_slice %203 {offsets = [0, 0], sizes = [8, 64], strides = [1, 1]} : vector<8x256xf32> to vector<8x64xf32>
    %cst_75 = arith.constant 5.000000e-01 : f32
    %205 = vector.broadcast %cst_75 : f32 to vector<8x64xf32>
    %206 = arith.mulf %205, %204 : vector<8x64xf32>
    %cst_76 = arith.constant 5.000000e-01 : f32
    %207 = vector.broadcast %cst_76 : f32 to vector<8x64xf32>
    %208 = arith.addf %206, %207 : vector<8x64xf32>
    %209 = vector.extract_strided_slice %203 {offsets = [0, 64], sizes = [8, 64], strides = [1, 1]} : vector<8x256xf32> to vector<8x64xf32>
    %cst_77 = arith.constant 5.000000e-01 : f32
    %210 = vector.broadcast %cst_77 : f32 to vector<8x64xf32>
    %211 = arith.mulf %210, %209 : vector<8x64xf32>
    %cst_78 = arith.constant 5.000000e-01 : f32
    %212 = vector.broadcast %cst_78 : f32 to vector<8x64xf32>
    %213 = arith.addf %211, %212 : vector<8x64xf32>
    %214 = vector.extract_strided_slice %203 {offsets = [0, 128], sizes = [8, 64], strides = [1, 1]} : vector<8x256xf32> to vector<8x64xf32>
    %215 = vector.extract_strided_slice %203 {offsets = [0, 192], sizes = [8, 64], strides = [1, 1]} : vector<8x256xf32> to vector<8x64xf32>
    %cst_79 = arith.constant 5.000000e-01 : f32
    %216 = vector.broadcast %cst_79 : f32 to vector<8x64xf32>
    %217 = arith.mulf %216, %215 : vector<8x64xf32>
    %cst_80 = arith.constant 5.000000e-01 : f32
    %218 = vector.broadcast %cst_80 : f32 to vector<8x64xf32>
    %219 = arith.addf %217, %218 : vector<8x64xf32>
    %220 = arith.mulf %213, %191 : vector<8x64xf32>
    %221 = arith.mulf %208, %214 : vector<8x64xf32>
    %222 = arith.addf %220, %221 : vector<8x64xf32>
    %223 = math.tanh %222 : vector<8x64xf32>
    %224 = arith.mulf %219, %223 : vector<8x64xf32>
    %c7_i32 = arith.constant 7 : i32
    %225 = arith.index_cast %c7_i32 : i32 to index
    %c0_81 = arith.constant 0 : index
    %c0_82 = arith.constant 0 : index
    %226 = vector.load %arg1[%225, %c0_81, %c0_82] : memref<20x8x1xf32, #tpu.memory_space<vmem>>, vector<1x8x1xf32>
    %227 = vector.shape_cast %226 : vector<1x8x1xf32> to vector<8x1xf32>
    %228 = vector.broadcast %227 : vector<8x1xf32> to vector<8x256xf32>
    %229 = arith.mulf %228, %2 : vector<8x256xf32>
    %230 = arith.addf %229, %5 : vector<8x256xf32>
    %c0_83 = arith.constant 0 : index
    %c0_84 = arith.constant 0 : index
    %231 = vector.load %arg2[%c0_83, %c0_84] : memref<64x256xf32, #tpu.memory_space<vmem>>, vector<64x256xf32>
    %cst_85 = arith.constant dense<0.000000e+00> : vector<8x256xf32>
    %232 = tpu.matmul %224, %231, %cst_85 {dimension_numbers = #tpu.dot_dimension_numbers<[1], [0], [0], [1], [0, 0, 1, 1], [], []>} : vector<8x64xf32>, vector<64x256xf32>, vector<8x256xf32> -> vector<8x256xf32>
    %233 = arith.addf %230, %232 : vector<8x256xf32>
    %234 = math.tanh %233 : vector<8x256xf32>
    %235 = vector.extract_strided_slice %234 {offsets = [0, 0], sizes = [8, 64], strides = [1, 1]} : vector<8x256xf32> to vector<8x64xf32>
    %cst_86 = arith.constant 5.000000e-01 : f32
    %236 = vector.broadcast %cst_86 : f32 to vector<8x64xf32>
    %237 = arith.mulf %236, %235 : vector<8x64xf32>
    %cst_87 = arith.constant 5.000000e-01 : f32
    %238 = vector.broadcast %cst_87 : f32 to vector<8x64xf32>
    %239 = arith.addf %237, %238 : vector<8x64xf32>
    %240 = vector.extract_strided_slice %234 {offsets = [0, 64], sizes = [8, 64], strides = [1, 1]} : vector<8x256xf32> to vector<8x64xf32>
    %cst_88 = arith.constant 5.000000e-01 : f32
    %241 = vector.broadcast %cst_88 : f32 to vector<8x64xf32>
    %242 = arith.mulf %241, %240 : vector<8x64xf32>
    %cst_89 = arith.constant 5.000000e-01 : f32
    %243 = vector.broadcast %cst_89 : f32 to vector<8x64xf32>
    %244 = arith.addf %242, %243 : vector<8x64xf32>
    %245 = vector.extract_strided_slice %234 {offsets = [0, 128], sizes = [8, 64], strides = [1, 1]} : vector<8x256xf32> to vector<8x64xf32>
    %246 = vector.extract_strided_slice %234 {offsets = [0, 192], sizes = [8, 64], strides = [1, 1]} : vector<8x256xf32> to vector<8x64xf32>
    %cst_90 = arith.constant 5.000000e-01 : f32
    %247 = vector.broadcast %cst_90 : f32 to vector<8x64xf32>
    %248 = arith.mulf %247, %246 : vector<8x64xf32>
    %cst_91 = arith.constant 5.000000e-01 : f32
    %249 = vector.broadcast %cst_91 : f32 to vector<8x64xf32>
    %250 = arith.addf %248, %249 : vector<8x64xf32>
    %251 = arith.mulf %244, %222 : vector<8x64xf32>
    %252 = arith.mulf %239, %245 : vector<8x64xf32>
    %253 = arith.addf %251, %252 : vector<8x64xf32>
    %254 = math.tanh %253 : vector<8x64xf32>
    %255 = arith.mulf %250, %254 : vector<8x64xf32>
    %c8_i32 = arith.constant 8 : i32
    %256 = arith.index_cast %c8_i32 : i32 to index
    %c0_92 = arith.constant 0 : index
    %c0_93 = arith.constant 0 : index
    %257 = vector.load %arg1[%256, %c0_92, %c0_93] : memref<20x8x1xf32, #tpu.memory_space<vmem>>, vector<1x8x1xf32>
    %258 = vector.shape_cast %257 : vector<1x8x1xf32> to vector<8x1xf32>
    %259 = vector.broadcast %258 : vector<8x1xf32> to vector<8x256xf32>
    %260 = arith.mulf %259, %2 : vector<8x256xf32>
    %261 = arith.addf %260, %5 : vector<8x256xf32>
    %c0_94 = arith.constant 0 : index
    %c0_95 = arith.constant 0 : index
    %262 = vector.load %arg2[%c0_94, %c0_95] : memref<64x256xf32, #tpu.memory_space<vmem>>, vector<64x256xf32>
    %cst_96 = arith.constant dense<0.000000e+00> : vector<8x256xf32>
    %263 = tpu.matmul %255, %262, %cst_96 {dimension_numbers = #tpu.dot_dimension_numbers<[1], [0], [0], [1], [0, 0, 1, 1], [], []>} : vector<8x64xf32>, vector<64x256xf32>, vector<8x256xf32> -> vector<8x256xf32>
    %264 = arith.addf %261, %263 : vector<8x256xf32>
    %265 = math.tanh %264 : vector<8x256xf32>
    %266 = vector.extract_strided_slice %265 {offsets = [0, 0], sizes = [8, 64], strides = [1, 1]} : vector<8x256xf32> to vector<8x64xf32>
    %cst_97 = arith.constant 5.000000e-01 : f32
    %267 = vector.broadcast %cst_97 : f32 to vector<8x64xf32>
    %268 = arith.mulf %267, %266 : vector<8x64xf32>
    %cst_98 = arith.constant 5.000000e-01 : f32
    %269 = vector.broadcast %cst_98 : f32 to vector<8x64xf32>
    %270 = arith.addf %268, %269 : vector<8x64xf32>
    %271 = vector.extract_strided_slice %265 {offsets = [0, 64], sizes = [8, 64], strides = [1, 1]} : vector<8x256xf32> to vector<8x64xf32>
    %cst_99 = arith.constant 5.000000e-01 : f32
    %272 = vector.broadcast %cst_99 : f32 to vector<8x64xf32>
    %273 = arith.mulf %272, %271 : vector<8x64xf32>
    %cst_100 = arith.constant 5.000000e-01 : f32
    %274 = vector.broadcast %cst_100 : f32 to vector<8x64xf32>
    %275 = arith.addf %273, %274 : vector<8x64xf32>
    %276 = vector.extract_strided_slice %265 {offsets = [0, 128], sizes = [8, 64], strides = [1, 1]} : vector<8x256xf32> to vector<8x64xf32>
    %277 = vector.extract_strided_slice %265 {offsets = [0, 192], sizes = [8, 64], strides = [1, 1]} : vector<8x256xf32> to vector<8x64xf32>
    %cst_101 = arith.constant 5.000000e-01 : f32
    %278 = vector.broadcast %cst_101 : f32 to vector<8x64xf32>
    %279 = arith.mulf %278, %277 : vector<8x64xf32>
    %cst_102 = arith.constant 5.000000e-01 : f32
    %280 = vector.broadcast %cst_102 : f32 to vector<8x64xf32>
    %281 = arith.addf %279, %280 : vector<8x64xf32>
    %282 = arith.mulf %275, %253 : vector<8x64xf32>
    %283 = arith.mulf %270, %276 : vector<8x64xf32>
    %284 = arith.addf %282, %283 : vector<8x64xf32>
    %285 = math.tanh %284 : vector<8x64xf32>
    %286 = arith.mulf %281, %285 : vector<8x64xf32>
    %c9_i32 = arith.constant 9 : i32
    %287 = arith.index_cast %c9_i32 : i32 to index
    %c0_103 = arith.constant 0 : index
    %c0_104 = arith.constant 0 : index
    %288 = vector.load %arg1[%287, %c0_103, %c0_104] : memref<20x8x1xf32, #tpu.memory_space<vmem>>, vector<1x8x1xf32>
    %289 = vector.shape_cast %288 : vector<1x8x1xf32> to vector<8x1xf32>
    %290 = vector.broadcast %289 : vector<8x1xf32> to vector<8x256xf32>
    %291 = arith.mulf %290, %2 : vector<8x256xf32>
    %292 = arith.addf %291, %5 : vector<8x256xf32>
    %c0_105 = arith.constant 0 : index
    %c0_106 = arith.constant 0 : index
    %293 = vector.load %arg2[%c0_105, %c0_106] : memref<64x256xf32, #tpu.memory_space<vmem>>, vector<64x256xf32>
    %cst_107 = arith.constant dense<0.000000e+00> : vector<8x256xf32>
    %294 = tpu.matmul %286, %293, %cst_107 {dimension_numbers = #tpu.dot_dimension_numbers<[1], [0], [0], [1], [0, 0, 1, 1], [], []>} : vector<8x64xf32>, vector<64x256xf32>, vector<8x256xf32> -> vector<8x256xf32>
    %295 = arith.addf %292, %294 : vector<8x256xf32>
    %296 = math.tanh %295 : vector<8x256xf32>
    %297 = vector.extract_strided_slice %296 {offsets = [0, 0], sizes = [8, 64], strides = [1, 1]} : vector<8x256xf32> to vector<8x64xf32>
    %cst_108 = arith.constant 5.000000e-01 : f32
    %298 = vector.broadcast %cst_108 : f32 to vector<8x64xf32>
    %299 = arith.mulf %298, %297 : vector<8x64xf32>
    %cst_109 = arith.constant 5.000000e-01 : f32
    %300 = vector.broadcast %cst_109 : f32 to vector<8x64xf32>
    %301 = arith.addf %299, %300 : vector<8x64xf32>
    %302 = vector.extract_strided_slice %296 {offsets = [0, 64], sizes = [8, 64], strides = [1, 1]} : vector<8x256xf32> to vector<8x64xf32>
    %cst_110 = arith.constant 5.000000e-01 : f32
    %303 = vector.broadcast %cst_110 : f32 to vector<8x64xf32>
    %304 = arith.mulf %303, %302 : vector<8x64xf32>
    %cst_111 = arith.constant 5.000000e-01 : f32
    %305 = vector.broadcast %cst_111 : f32 to vector<8x64xf32>
    %306 = arith.addf %304, %305 : vector<8x64xf32>
    %307 = vector.extract_strided_slice %296 {offsets = [0, 128], sizes = [8, 64], strides = [1, 1]} : vector<8x256xf32> to vector<8x64xf32>
    %308 = vector.extract_strided_slice %296 {offsets = [0, 192], sizes = [8, 64], strides = [1, 1]} : vector<8x256xf32> to vector<8x64xf32>
    %cst_112 = arith.constant 5.000000e-01 : f32
    %309 = vector.broadcast %cst_112 : f32 to vector<8x64xf32>
    %310 = arith.mulf %309, %308 : vector<8x64xf32>
    %cst_113 = arith.constant 5.000000e-01 : f32
    %311 = vector.broadcast %cst_113 : f32 to vector<8x64xf32>
    %312 = arith.addf %310, %311 : vector<8x64xf32>
    %313 = arith.mulf %306, %284 : vector<8x64xf32>
    %314 = arith.mulf %301, %307 : vector<8x64xf32>
    %315 = arith.addf %313, %314 : vector<8x64xf32>
    %316 = math.tanh %315 : vector<8x64xf32>
    %317 = arith.mulf %312, %316 : vector<8x64xf32>
    %c10_i32 = arith.constant 10 : i32
    %318 = arith.index_cast %c10_i32 : i32 to index
    %c0_114 = arith.constant 0 : index
    %c0_115 = arith.constant 0 : index
    %319 = vector.load %arg1[%318, %c0_114, %c0_115] : memref<20x8x1xf32, #tpu.memory_space<vmem>>, vector<1x8x1xf32>
    %320 = vector.shape_cast %319 : vector<1x8x1xf32> to vector<8x1xf32>
    %321 = vector.broadcast %320 : vector<8x1xf32> to vector<8x256xf32>
    %322 = arith.mulf %321, %2 : vector<8x256xf32>
    %323 = arith.addf %322, %5 : vector<8x256xf32>
    %c0_116 = arith.constant 0 : index
    %c0_117 = arith.constant 0 : index
    %324 = vector.load %arg2[%c0_116, %c0_117] : memref<64x256xf32, #tpu.memory_space<vmem>>, vector<64x256xf32>
    %cst_118 = arith.constant dense<0.000000e+00> : vector<8x256xf32>
    %325 = tpu.matmul %317, %324, %cst_118 {dimension_numbers = #tpu.dot_dimension_numbers<[1], [0], [0], [1], [0, 0, 1, 1], [], []>} : vector<8x64xf32>, vector<64x256xf32>, vector<8x256xf32> -> vector<8x256xf32>
    %326 = arith.addf %323, %325 : vector<8x256xf32>
    %327 = math.tanh %326 : vector<8x256xf32>
    %328 = vector.extract_strided_slice %327 {offsets = [0, 0], sizes = [8, 64], strides = [1, 1]} : vector<8x256xf32> to vector<8x64xf32>
    %cst_119 = arith.constant 5.000000e-01 : f32
    %329 = vector.broadcast %cst_119 : f32 to vector<8x64xf32>
    %330 = arith.mulf %329, %328 : vector<8x64xf32>
    %cst_120 = arith.constant 5.000000e-01 : f32
    %331 = vector.broadcast %cst_120 : f32 to vector<8x64xf32>
    %332 = arith.addf %330, %331 : vector<8x64xf32>
    %333 = vector.extract_strided_slice %327 {offsets = [0, 64], sizes = [8, 64], strides = [1, 1]} : vector<8x256xf32> to vector<8x64xf32>
    %cst_121 = arith.constant 5.000000e-01 : f32
    %334 = vector.broadcast %cst_121 : f32 to vector<8x64xf32>
    %335 = arith.mulf %334, %333 : vector<8x64xf32>
    %cst_122 = arith.constant 5.000000e-01 : f32
    %336 = vector.broadcast %cst_122 : f32 to vector<8x64xf32>
    %337 = arith.addf %335, %336 : vector<8x64xf32>
    %338 = vector.extract_strided_slice %327 {offsets = [0, 128], sizes = [8, 64], strides = [1, 1]} : vector<8x256xf32> to vector<8x64xf32>
    %339 = vector.extract_strided_slice %327 {offsets = [0, 192], sizes = [8, 64], strides = [1, 1]} : vector<8x256xf32> to vector<8x64xf32>
    %cst_123 = arith.constant 5.000000e-01 : f32
    %340 = vector.broadcast %cst_123 : f32 to vector<8x64xf32>
    %341 = arith.mulf %340, %339 : vector<8x64xf32>
    %cst_124 = arith.constant 5.000000e-01 : f32
    %342 = vector.broadcast %cst_124 : f32 to vector<8x64xf32>
    %343 = arith.addf %341, %342 : vector<8x64xf32>
    %344 = arith.mulf %337, %315 : vector<8x64xf32>
    %345 = arith.mulf %332, %338 : vector<8x64xf32>
    %346 = arith.addf %344, %345 : vector<8x64xf32>
    %347 = math.tanh %346 : vector<8x64xf32>
    %348 = arith.mulf %343, %347 : vector<8x64xf32>
    %c11_i32 = arith.constant 11 : i32
    %349 = arith.index_cast %c11_i32 : i32 to index
    %c0_125 = arith.constant 0 : index
    %c0_126 = arith.constant 0 : index
    %350 = vector.load %arg1[%349, %c0_125, %c0_126] : memref<20x8x1xf32, #tpu.memory_space<vmem>>, vector<1x8x1xf32>
    %351 = vector.shape_cast %350 : vector<1x8x1xf32> to vector<8x1xf32>
    %352 = vector.broadcast %351 : vector<8x1xf32> to vector<8x256xf32>
    %353 = arith.mulf %352, %2 : vector<8x256xf32>
    %354 = arith.addf %353, %5 : vector<8x256xf32>
    %c0_127 = arith.constant 0 : index
    %c0_128 = arith.constant 0 : index
    %355 = vector.load %arg2[%c0_127, %c0_128] : memref<64x256xf32, #tpu.memory_space<vmem>>, vector<64x256xf32>
    %cst_129 = arith.constant dense<0.000000e+00> : vector<8x256xf32>
    %356 = tpu.matmul %348, %355, %cst_129 {dimension_numbers = #tpu.dot_dimension_numbers<[1], [0], [0], [1], [0, 0, 1, 1], [], []>} : vector<8x64xf32>, vector<64x256xf32>, vector<8x256xf32> -> vector<8x256xf32>
    %357 = arith.addf %354, %356 : vector<8x256xf32>
    %358 = math.tanh %357 : vector<8x256xf32>
    %359 = vector.extract_strided_slice %358 {offsets = [0, 0], sizes = [8, 64], strides = [1, 1]} : vector<8x256xf32> to vector<8x64xf32>
    %cst_130 = arith.constant 5.000000e-01 : f32
    %360 = vector.broadcast %cst_130 : f32 to vector<8x64xf32>
    %361 = arith.mulf %360, %359 : vector<8x64xf32>
    %cst_131 = arith.constant 5.000000e-01 : f32
    %362 = vector.broadcast %cst_131 : f32 to vector<8x64xf32>
    %363 = arith.addf %361, %362 : vector<8x64xf32>
    %364 = vector.extract_strided_slice %358 {offsets = [0, 64], sizes = [8, 64], strides = [1, 1]} : vector<8x256xf32> to vector<8x64xf32>
    %cst_132 = arith.constant 5.000000e-01 : f32
    %365 = vector.broadcast %cst_132 : f32 to vector<8x64xf32>
    %366 = arith.mulf %365, %364 : vector<8x64xf32>
    %cst_133 = arith.constant 5.000000e-01 : f32
    %367 = vector.broadcast %cst_133 : f32 to vector<8x64xf32>
    %368 = arith.addf %366, %367 : vector<8x64xf32>
    %369 = vector.extract_strided_slice %358 {offsets = [0, 128], sizes = [8, 64], strides = [1, 1]} : vector<8x256xf32> to vector<8x64xf32>
    %370 = vector.extract_strided_slice %358 {offsets = [0, 192], sizes = [8, 64], strides = [1, 1]} : vector<8x256xf32> to vector<8x64xf32>
    %cst_134 = arith.constant 5.000000e-01 : f32
    %371 = vector.broadcast %cst_134 : f32 to vector<8x64xf32>
    %372 = arith.mulf %371, %370 : vector<8x64xf32>
    %cst_135 = arith.constant 5.000000e-01 : f32
    %373 = vector.broadcast %cst_135 : f32 to vector<8x64xf32>
    %374 = arith.addf %372, %373 : vector<8x64xf32>
    %375 = arith.mulf %368, %346 : vector<8x64xf32>
    %376 = arith.mulf %363, %369 : vector<8x64xf32>
    %377 = arith.addf %375, %376 : vector<8x64xf32>
    %378 = math.tanh %377 : vector<8x64xf32>
    %379 = arith.mulf %374, %378 : vector<8x64xf32>
    %c12_i32 = arith.constant 12 : i32
    %380 = arith.index_cast %c12_i32 : i32 to index
    %c0_136 = arith.constant 0 : index
    %c0_137 = arith.constant 0 : index
    %381 = vector.load %arg1[%380, %c0_136, %c0_137] : memref<20x8x1xf32, #tpu.memory_space<vmem>>, vector<1x8x1xf32>
    %382 = vector.shape_cast %381 : vector<1x8x1xf32> to vector<8x1xf32>
    %383 = vector.broadcast %382 : vector<8x1xf32> to vector<8x256xf32>
    %384 = arith.mulf %383, %2 : vector<8x256xf32>
    %385 = arith.addf %384, %5 : vector<8x256xf32>
    %c0_138 = arith.constant 0 : index
    %c0_139 = arith.constant 0 : index
    %386 = vector.load %arg2[%c0_138, %c0_139] : memref<64x256xf32, #tpu.memory_space<vmem>>, vector<64x256xf32>
    %cst_140 = arith.constant dense<0.000000e+00> : vector<8x256xf32>
    %387 = tpu.matmul %379, %386, %cst_140 {dimension_numbers = #tpu.dot_dimension_numbers<[1], [0], [0], [1], [0, 0, 1, 1], [], []>} : vector<8x64xf32>, vector<64x256xf32>, vector<8x256xf32> -> vector<8x256xf32>
    %388 = arith.addf %385, %387 : vector<8x256xf32>
    %389 = math.tanh %388 : vector<8x256xf32>
    %390 = vector.extract_strided_slice %389 {offsets = [0, 0], sizes = [8, 64], strides = [1, 1]} : vector<8x256xf32> to vector<8x64xf32>
    %cst_141 = arith.constant 5.000000e-01 : f32
    %391 = vector.broadcast %cst_141 : f32 to vector<8x64xf32>
    %392 = arith.mulf %391, %390 : vector<8x64xf32>
    %cst_142 = arith.constant 5.000000e-01 : f32
    %393 = vector.broadcast %cst_142 : f32 to vector<8x64xf32>
    %394 = arith.addf %392, %393 : vector<8x64xf32>
    %395 = vector.extract_strided_slice %389 {offsets = [0, 64], sizes = [8, 64], strides = [1, 1]} : vector<8x256xf32> to vector<8x64xf32>
    %cst_143 = arith.constant 5.000000e-01 : f32
    %396 = vector.broadcast %cst_143 : f32 to vector<8x64xf32>
    %397 = arith.mulf %396, %395 : vector<8x64xf32>
    %cst_144 = arith.constant 5.000000e-01 : f32
    %398 = vector.broadcast %cst_144 : f32 to vector<8x64xf32>
    %399 = arith.addf %397, %398 : vector<8x64xf32>
    %400 = vector.extract_strided_slice %389 {offsets = [0, 128], sizes = [8, 64], strides = [1, 1]} : vector<8x256xf32> to vector<8x64xf32>
    %401 = vector.extract_strided_slice %389 {offsets = [0, 192], sizes = [8, 64], strides = [1, 1]} : vector<8x256xf32> to vector<8x64xf32>
    %cst_145 = arith.constant 5.000000e-01 : f32
    %402 = vector.broadcast %cst_145 : f32 to vector<8x64xf32>
    %403 = arith.mulf %402, %401 : vector<8x64xf32>
    %cst_146 = arith.constant 5.000000e-01 : f32
    %404 = vector.broadcast %cst_146 : f32 to vector<8x64xf32>
    %405 = arith.addf %403, %404 : vector<8x64xf32>
    %406 = arith.mulf %399, %377 : vector<8x64xf32>
    %407 = arith.mulf %394, %400 : vector<8x64xf32>
    %408 = arith.addf %406, %407 : vector<8x64xf32>
    %409 = math.tanh %408 : vector<8x64xf32>
    %410 = arith.mulf %405, %409 : vector<8x64xf32>
    %c13_i32 = arith.constant 13 : i32
    %411 = arith.index_cast %c13_i32 : i32 to index
    %c0_147 = arith.constant 0 : index
    %c0_148 = arith.constant 0 : index
    %412 = vector.load %arg1[%411, %c0_147, %c0_148] : memref<20x8x1xf32, #tpu.memory_space<vmem>>, vector<1x8x1xf32>
    %413 = vector.shape_cast %412 : vector<1x8x1xf32> to vector<8x1xf32>
    %414 = vector.broadcast %413 : vector<8x1xf32> to vector<8x256xf32>
    %415 = arith.mulf %414, %2 : vector<8x256xf32>
    %416 = arith.addf %415, %5 : vector<8x256xf32>
    %c0_149 = arith.constant 0 : index
    %c0_150 = arith.constant 0 : index
    %417 = vector.load %arg2[%c0_149, %c0_150] : memref<64x256xf32, #tpu.memory_space<vmem>>, vector<64x256xf32>
    %cst_151 = arith.constant dense<0.000000e+00> : vector<8x256xf32>
    %418 = tpu.matmul %410, %417, %cst_151 {dimension_numbers = #tpu.dot_dimension_numbers<[1], [0], [0], [1], [0, 0, 1, 1], [], []>} : vector<8x64xf32>, vector<64x256xf32>, vector<8x256xf32> -> vector<8x256xf32>
    %419 = arith.addf %416, %418 : vector<8x256xf32>
    %420 = math.tanh %419 : vector<8x256xf32>
    %421 = vector.extract_strided_slice %420 {offsets = [0, 0], sizes = [8, 64], strides = [1, 1]} : vector<8x256xf32> to vector<8x64xf32>
    %cst_152 = arith.constant 5.000000e-01 : f32
    %422 = vector.broadcast %cst_152 : f32 to vector<8x64xf32>
    %423 = arith.mulf %422, %421 : vector<8x64xf32>
    %cst_153 = arith.constant 5.000000e-01 : f32
    %424 = vector.broadcast %cst_153 : f32 to vector<8x64xf32>
    %425 = arith.addf %423, %424 : vector<8x64xf32>
    %426 = vector.extract_strided_slice %420 {offsets = [0, 64], sizes = [8, 64], strides = [1, 1]} : vector<8x256xf32> to vector<8x64xf32>
    %cst_154 = arith.constant 5.000000e-01 : f32
    %427 = vector.broadcast %cst_154 : f32 to vector<8x64xf32>
    %428 = arith.mulf %427, %426 : vector<8x64xf32>
    %cst_155 = arith.constant 5.000000e-01 : f32
    %429 = vector.broadcast %cst_155 : f32 to vector<8x64xf32>
    %430 = arith.addf %428, %429 : vector<8x64xf32>
    %431 = vector.extract_strided_slice %420 {offsets = [0, 128], sizes = [8, 64], strides = [1, 1]} : vector<8x256xf32> to vector<8x64xf32>
    %432 = vector.extract_strided_slice %420 {offsets = [0, 192], sizes = [8, 64], strides = [1, 1]} : vector<8x256xf32> to vector<8x64xf32>
    %cst_156 = arith.constant 5.000000e-01 : f32
    %433 = vector.broadcast %cst_156 : f32 to vector<8x64xf32>
    %434 = arith.mulf %433, %432 : vector<8x64xf32>
    %cst_157 = arith.constant 5.000000e-01 : f32
    %435 = vector.broadcast %cst_157 : f32 to vector<8x64xf32>
    %436 = arith.addf %434, %435 : vector<8x64xf32>
    %437 = arith.mulf %430, %408 : vector<8x64xf32>
    %438 = arith.mulf %425, %431 : vector<8x64xf32>
    %439 = arith.addf %437, %438 : vector<8x64xf32>
    %440 = math.tanh %439 : vector<8x64xf32>
    %441 = arith.mulf %436, %440 : vector<8x64xf32>
    %c14_i32 = arith.constant 14 : i32
    %442 = arith.index_cast %c14_i32 : i32 to index
    %c0_158 = arith.constant 0 : index
    %c0_159 = arith.constant 0 : index
    %443 = vector.load %arg1[%442, %c0_158, %c0_159] : memref<20x8x1xf32, #tpu.memory_space<vmem>>, vector<1x8x1xf32>
    %444 = vector.shape_cast %443 : vector<1x8x1xf32> to vector<8x1xf32>
    %445 = vector.broadcast %444 : vector<8x1xf32> to vector<8x256xf32>
    %446 = arith.mulf %445, %2 : vector<8x256xf32>
    %447 = arith.addf %446, %5 : vector<8x256xf32>
    %c0_160 = arith.constant 0 : index
    %c0_161 = arith.constant 0 : index
    %448 = vector.load %arg2[%c0_160, %c0_161] : memref<64x256xf32, #tpu.memory_space<vmem>>, vector<64x256xf32>
    %cst_162 = arith.constant dense<0.000000e+00> : vector<8x256xf32>
    %449 = tpu.matmul %441, %448, %cst_162 {dimension_numbers = #tpu.dot_dimension_numbers<[1], [0], [0], [1], [0, 0, 1, 1], [], []>} : vector<8x64xf32>, vector<64x256xf32>, vector<8x256xf32> -> vector<8x256xf32>
    %450 = arith.addf %447, %449 : vector<8x256xf32>
    %451 = math.tanh %450 : vector<8x256xf32>
    %452 = vector.extract_strided_slice %451 {offsets = [0, 0], sizes = [8, 64], strides = [1, 1]} : vector<8x256xf32> to vector<8x64xf32>
    %cst_163 = arith.constant 5.000000e-01 : f32
    %453 = vector.broadcast %cst_163 : f32 to vector<8x64xf32>
    %454 = arith.mulf %453, %452 : vector<8x64xf32>
    %cst_164 = arith.constant 5.000000e-01 : f32
    %455 = vector.broadcast %cst_164 : f32 to vector<8x64xf32>
    %456 = arith.addf %454, %455 : vector<8x64xf32>
    %457 = vector.extract_strided_slice %451 {offsets = [0, 64], sizes = [8, 64], strides = [1, 1]} : vector<8x256xf32> to vector<8x64xf32>
    %cst_165 = arith.constant 5.000000e-01 : f32
    %458 = vector.broadcast %cst_165 : f32 to vector<8x64xf32>
    %459 = arith.mulf %458, %457 : vector<8x64xf32>
    %cst_166 = arith.constant 5.000000e-01 : f32
    %460 = vector.broadcast %cst_166 : f32 to vector<8x64xf32>
    %461 = arith.addf %459, %460 : vector<8x64xf32>
    %462 = vector.extract_strided_slice %451 {offsets = [0, 128], sizes = [8, 64], strides = [1, 1]} : vector<8x256xf32> to vector<8x64xf32>
    %463 = vector.extract_strided_slice %451 {offsets = [0, 192], sizes = [8, 64], strides = [1, 1]} : vector<8x256xf32> to vector<8x64xf32>
    %cst_167 = arith.constant 5.000000e-01 : f32
    %464 = vector.broadcast %cst_167 : f32 to vector<8x64xf32>
    %465 = arith.mulf %464, %463 : vector<8x64xf32>
    %cst_168 = arith.constant 5.000000e-01 : f32
    %466 = vector.broadcast %cst_168 : f32 to vector<8x64xf32>
    %467 = arith.addf %465, %466 : vector<8x64xf32>
    %468 = arith.mulf %461, %439 : vector<8x64xf32>
    %469 = arith.mulf %456, %462 : vector<8x64xf32>
    %470 = arith.addf %468, %469 : vector<8x64xf32>
    %471 = math.tanh %470 : vector<8x64xf32>
    %472 = arith.mulf %467, %471 : vector<8x64xf32>
    %c15_i32 = arith.constant 15 : i32
    %473 = arith.index_cast %c15_i32 : i32 to index
    %c0_169 = arith.constant 0 : index
    %c0_170 = arith.constant 0 : index
    %474 = vector.load %arg1[%473, %c0_169, %c0_170] : memref<20x8x1xf32, #tpu.memory_space<vmem>>, vector<1x8x1xf32>
    %475 = vector.shape_cast %474 : vector<1x8x1xf32> to vector<8x1xf32>
    %476 = vector.broadcast %475 : vector<8x1xf32> to vector<8x256xf32>
    %477 = arith.mulf %476, %2 : vector<8x256xf32>
    %478 = arith.addf %477, %5 : vector<8x256xf32>
    %c0_171 = arith.constant 0 : index
    %c0_172 = arith.constant 0 : index
    %479 = vector.load %arg2[%c0_171, %c0_172] : memref<64x256xf32, #tpu.memory_space<vmem>>, vector<64x256xf32>
    %cst_173 = arith.constant dense<0.000000e+00> : vector<8x256xf32>
    %480 = tpu.matmul %472, %479, %cst_173 {dimension_numbers = #tpu.dot_dimension_numbers<[1], [0], [0], [1], [0, 0, 1, 1], [], []>} : vector<8x64xf32>, vector<64x256xf32>, vector<8x256xf32> -> vector<8x256xf32>
    %481 = arith.addf %478, %480 : vector<8x256xf32>
    %482 = math.tanh %481 : vector<8x256xf32>
    %483 = vector.extract_strided_slice %482 {offsets = [0, 0], sizes = [8, 64], strides = [1, 1]} : vector<8x256xf32> to vector<8x64xf32>
    %cst_174 = arith.constant 5.000000e-01 : f32
    %484 = vector.broadcast %cst_174 : f32 to vector<8x64xf32>
    %485 = arith.mulf %484, %483 : vector<8x64xf32>
    %cst_175 = arith.constant 5.000000e-01 : f32
    %486 = vector.broadcast %cst_175 : f32 to vector<8x64xf32>
    %487 = arith.addf %485, %486 : vector<8x64xf32>
    %488 = vector.extract_strided_slice %482 {offsets = [0, 64], sizes = [8, 64], strides = [1, 1]} : vector<8x256xf32> to vector<8x64xf32>
    %cst_176 = arith.constant 5.000000e-01 : f32
    %489 = vector.broadcast %cst_176 : f32 to vector<8x64xf32>
    %490 = arith.mulf %489, %488 : vector<8x64xf32>
    %cst_177 = arith.constant 5.000000e-01 : f32
    %491 = vector.broadcast %cst_177 : f32 to vector<8x64xf32>
    %492 = arith.addf %490, %491 : vector<8x64xf32>
    %493 = vector.extract_strided_slice %482 {offsets = [0, 128], sizes = [8, 64], strides = [1, 1]} : vector<8x256xf32> to vector<8x64xf32>
    %494 = vector.extract_strided_slice %482 {offsets = [0, 192], sizes = [8, 64], strides = [1, 1]} : vector<8x256xf32> to vector<8x64xf32>
    %cst_178 = arith.constant 5.000000e-01 : f32
    %495 = vector.broadcast %cst_178 : f32 to vector<8x64xf32>
    %496 = arith.mulf %495, %494 : vector<8x64xf32>
    %cst_179 = arith.constant 5.000000e-01 : f32
    %497 = vector.broadcast %cst_179 : f32 to vector<8x64xf32>
    %498 = arith.addf %496, %497 : vector<8x64xf32>
    %499 = arith.mulf %492, %470 : vector<8x64xf32>
    %500 = arith.mulf %487, %493 : vector<8x64xf32>
    %501 = arith.addf %499, %500 : vector<8x64xf32>
    %502 = math.tanh %501 : vector<8x64xf32>
    %503 = arith.mulf %498, %502 : vector<8x64xf32>
    %c16_i32 = arith.constant 16 : i32
    %504 = arith.index_cast %c16_i32 : i32 to index
    %c0_180 = arith.constant 0 : index
    %c0_181 = arith.constant 0 : index
    %505 = vector.load %arg1[%504, %c0_180, %c0_181] : memref<20x8x1xf32, #tpu.memory_space<vmem>>, vector<1x8x1xf32>
    %506 = vector.shape_cast %505 : vector<1x8x1xf32> to vector<8x1xf32>
    %507 = vector.broadcast %506 : vector<8x1xf32> to vector<8x256xf32>
    %508 = arith.mulf %507, %2 : vector<8x256xf32>
    %509 = arith.addf %508, %5 : vector<8x256xf32>
    %c0_182 = arith.constant 0 : index
    %c0_183 = arith.constant 0 : index
    %510 = vector.load %arg2[%c0_182, %c0_183] : memref<64x256xf32, #tpu.memory_space<vmem>>, vector<64x256xf32>
    %cst_184 = arith.constant dense<0.000000e+00> : vector<8x256xf32>
    %511 = tpu.matmul %503, %510, %cst_184 {dimension_numbers = #tpu.dot_dimension_numbers<[1], [0], [0], [1], [0, 0, 1, 1], [], []>} : vector<8x64xf32>, vector<64x256xf32>, vector<8x256xf32> -> vector<8x256xf32>
    %512 = arith.addf %509, %511 : vector<8x256xf32>
    %513 = math.tanh %512 : vector<8x256xf32>
    %514 = vector.extract_strided_slice %513 {offsets = [0, 0], sizes = [8, 64], strides = [1, 1]} : vector<8x256xf32> to vector<8x64xf32>
    %cst_185 = arith.constant 5.000000e-01 : f32
    %515 = vector.broadcast %cst_185 : f32 to vector<8x64xf32>
    %516 = arith.mulf %515, %514 : vector<8x64xf32>
    %cst_186 = arith.constant 5.000000e-01 : f32
    %517 = vector.broadcast %cst_186 : f32 to vector<8x64xf32>
    %518 = arith.addf %516, %517 : vector<8x64xf32>
    %519 = vector.extract_strided_slice %513 {offsets = [0, 64], sizes = [8, 64], strides = [1, 1]} : vector<8x256xf32> to vector<8x64xf32>
    %cst_187 = arith.constant 5.000000e-01 : f32
    %520 = vector.broadcast %cst_187 : f32 to vector<8x64xf32>
    %521 = arith.mulf %520, %519 : vector<8x64xf32>
    %cst_188 = arith.constant 5.000000e-01 : f32
    %522 = vector.broadcast %cst_188 : f32 to vector<8x64xf32>
    %523 = arith.addf %521, %522 : vector<8x64xf32>
    %524 = vector.extract_strided_slice %513 {offsets = [0, 128], sizes = [8, 64], strides = [1, 1]} : vector<8x256xf32> to vector<8x64xf32>
    %525 = vector.extract_strided_slice %513 {offsets = [0, 192], sizes = [8, 64], strides = [1, 1]} : vector<8x256xf32> to vector<8x64xf32>
    %cst_189 = arith.constant 5.000000e-01 : f32
    %526 = vector.broadcast %cst_189 : f32 to vector<8x64xf32>
    %527 = arith.mulf %526, %525 : vector<8x64xf32>
    %cst_190 = arith.constant 5.000000e-01 : f32
    %528 = vector.broadcast %cst_190 : f32 to vector<8x64xf32>
    %529 = arith.addf %527, %528 : vector<8x64xf32>
    %530 = arith.mulf %523, %501 : vector<8x64xf32>
    %531 = arith.mulf %518, %524 : vector<8x64xf32>
    %532 = arith.addf %530, %531 : vector<8x64xf32>
    %533 = math.tanh %532 : vector<8x64xf32>
    %534 = arith.mulf %529, %533 : vector<8x64xf32>
    %c17_i32 = arith.constant 17 : i32
    %535 = arith.index_cast %c17_i32 : i32 to index
    %c0_191 = arith.constant 0 : index
    %c0_192 = arith.constant 0 : index
    %536 = vector.load %arg1[%535, %c0_191, %c0_192] : memref<20x8x1xf32, #tpu.memory_space<vmem>>, vector<1x8x1xf32>
    %537 = vector.shape_cast %536 : vector<1x8x1xf32> to vector<8x1xf32>
    %538 = vector.broadcast %537 : vector<8x1xf32> to vector<8x256xf32>
    %539 = arith.mulf %538, %2 : vector<8x256xf32>
    %540 = arith.addf %539, %5 : vector<8x256xf32>
    %c0_193 = arith.constant 0 : index
    %c0_194 = arith.constant 0 : index
    %541 = vector.load %arg2[%c0_193, %c0_194] : memref<64x256xf32, #tpu.memory_space<vmem>>, vector<64x256xf32>
    %cst_195 = arith.constant dense<0.000000e+00> : vector<8x256xf32>
    %542 = tpu.matmul %534, %541, %cst_195 {dimension_numbers = #tpu.dot_dimension_numbers<[1], [0], [0], [1], [0, 0, 1, 1], [], []>} : vector<8x64xf32>, vector<64x256xf32>, vector<8x256xf32> -> vector<8x256xf32>
    %543 = arith.addf %540, %542 : vector<8x256xf32>
    %544 = math.tanh %543 : vector<8x256xf32>
    %545 = vector.extract_strided_slice %544 {offsets = [0, 0], sizes = [8, 64], strides = [1, 1]} : vector<8x256xf32> to vector<8x64xf32>
    %cst_196 = arith.constant 5.000000e-01 : f32
    %546 = vector.broadcast %cst_196 : f32 to vector<8x64xf32>
    %547 = arith.mulf %546, %545 : vector<8x64xf32>
    %cst_197 = arith.constant 5.000000e-01 : f32
    %548 = vector.broadcast %cst_197 : f32 to vector<8x64xf32>
    %549 = arith.addf %547, %548 : vector<8x64xf32>
    %550 = vector.extract_strided_slice %544 {offsets = [0, 64], sizes = [8, 64], strides = [1, 1]} : vector<8x256xf32> to vector<8x64xf32>
    %cst_198 = arith.constant 5.000000e-01 : f32
    %551 = vector.broadcast %cst_198 : f32 to vector<8x64xf32>
    %552 = arith.mulf %551, %550 : vector<8x64xf32>
    %cst_199 = arith.constant 5.000000e-01 : f32
    %553 = vector.broadcast %cst_199 : f32 to vector<8x64xf32>
    %554 = arith.addf %552, %553 : vector<8x64xf32>
    %555 = vector.extract_strided_slice %544 {offsets = [0, 128], sizes = [8, 64], strides = [1, 1]} : vector<8x256xf32> to vector<8x64xf32>
    %556 = vector.extract_strided_slice %544 {offsets = [0, 192], sizes = [8, 64], strides = [1, 1]} : vector<8x256xf32> to vector<8x64xf32>
    %cst_200 = arith.constant 5.000000e-01 : f32
    %557 = vector.broadcast %cst_200 : f32 to vector<8x64xf32>
    %558 = arith.mulf %557, %556 : vector<8x64xf32>
    %cst_201 = arith.constant 5.000000e-01 : f32
    %559 = vector.broadcast %cst_201 : f32 to vector<8x64xf32>
    %560 = arith.addf %558, %559 : vector<8x64xf32>
    %561 = arith.mulf %554, %532 : vector<8x64xf32>
    %562 = arith.mulf %549, %555 : vector<8x64xf32>
    %563 = arith.addf %561, %562 : vector<8x64xf32>
    %564 = math.tanh %563 : vector<8x64xf32>
    %565 = arith.mulf %560, %564 : vector<8x64xf32>
    %c18_i32 = arith.constant 18 : i32
    %566 = arith.index_cast %c18_i32 : i32 to index
    %c0_202 = arith.constant 0 : index
    %c0_203 = arith.constant 0 : index
    %567 = vector.load %arg1[%566, %c0_202, %c0_203] : memref<20x8x1xf32, #tpu.memory_space<vmem>>, vector<1x8x1xf32>
    %568 = vector.shape_cast %567 : vector<1x8x1xf32> to vector<8x1xf32>
    %569 = vector.broadcast %568 : vector<8x1xf32> to vector<8x256xf32>
    %570 = arith.mulf %569, %2 : vector<8x256xf32>
    %571 = arith.addf %570, %5 : vector<8x256xf32>
    %c0_204 = arith.constant 0 : index
    %c0_205 = arith.constant 0 : index
    %572 = vector.load %arg2[%c0_204, %c0_205] : memref<64x256xf32, #tpu.memory_space<vmem>>, vector<64x256xf32>
    %cst_206 = arith.constant dense<0.000000e+00> : vector<8x256xf32>
    %573 = tpu.matmul %565, %572, %cst_206 {dimension_numbers = #tpu.dot_dimension_numbers<[1], [0], [0], [1], [0, 0, 1, 1], [], []>} : vector<8x64xf32>, vector<64x256xf32>, vector<8x256xf32> -> vector<8x256xf32>
    %574 = arith.addf %571, %573 : vector<8x256xf32>
    %575 = math.tanh %574 : vector<8x256xf32>
    %576 = vector.extract_strided_slice %575 {offsets = [0, 0], sizes = [8, 64], strides = [1, 1]} : vector<8x256xf32> to vector<8x64xf32>
    %cst_207 = arith.constant 5.000000e-01 : f32
    %577 = vector.broadcast %cst_207 : f32 to vector<8x64xf32>
    %578 = arith.mulf %577, %576 : vector<8x64xf32>
    %cst_208 = arith.constant 5.000000e-01 : f32
    %579 = vector.broadcast %cst_208 : f32 to vector<8x64xf32>
    %580 = arith.addf %578, %579 : vector<8x64xf32>
    %581 = vector.extract_strided_slice %575 {offsets = [0, 64], sizes = [8, 64], strides = [1, 1]} : vector<8x256xf32> to vector<8x64xf32>
    %cst_209 = arith.constant 5.000000e-01 : f32
    %582 = vector.broadcast %cst_209 : f32 to vector<8x64xf32>
    %583 = arith.mulf %582, %581 : vector<8x64xf32>
    %cst_210 = arith.constant 5.000000e-01 : f32
    %584 = vector.broadcast %cst_210 : f32 to vector<8x64xf32>
    %585 = arith.addf %583, %584 : vector<8x64xf32>
    %586 = vector.extract_strided_slice %575 {offsets = [0, 128], sizes = [8, 64], strides = [1, 1]} : vector<8x256xf32> to vector<8x64xf32>
    %587 = vector.extract_strided_slice %575 {offsets = [0, 192], sizes = [8, 64], strides = [1, 1]} : vector<8x256xf32> to vector<8x64xf32>
    %cst_211 = arith.constant 5.000000e-01 : f32
    %588 = vector.broadcast %cst_211 : f32 to vector<8x64xf32>
    %589 = arith.mulf %588, %587 : vector<8x64xf32>
    %cst_212 = arith.constant 5.000000e-01 : f32
    %590 = vector.broadcast %cst_212 : f32 to vector<8x64xf32>
    %591 = arith.addf %589, %590 : vector<8x64xf32>
    %592 = arith.mulf %585, %563 : vector<8x64xf32>
    %593 = arith.mulf %580, %586 : vector<8x64xf32>
    %594 = arith.addf %592, %593 : vector<8x64xf32>
    %595 = math.tanh %594 : vector<8x64xf32>
    %596 = arith.mulf %591, %595 : vector<8x64xf32>
    %c19_i32 = arith.constant 19 : i32
    %597 = arith.index_cast %c19_i32 : i32 to index
    %c0_213 = arith.constant 0 : index
    %c0_214 = arith.constant 0 : index
    %598 = vector.load %arg1[%597, %c0_213, %c0_214] : memref<20x8x1xf32, #tpu.memory_space<vmem>>, vector<1x8x1xf32>
    %599 = vector.shape_cast %598 : vector<1x8x1xf32> to vector<8x1xf32>
    %600 = vector.broadcast %599 : vector<8x1xf32> to vector<8x256xf32>
    %601 = arith.mulf %600, %2 : vector<8x256xf32>
    %602 = arith.addf %601, %5 : vector<8x256xf32>
    %c0_215 = arith.constant 0 : index
    %c0_216 = arith.constant 0 : index
    %603 = vector.load %arg2[%c0_215, %c0_216] : memref<64x256xf32, #tpu.memory_space<vmem>>, vector<64x256xf32>
    %cst_217 = arith.constant dense<0.000000e+00> : vector<8x256xf32>
    %604 = tpu.matmul %596, %603, %cst_217 {dimension_numbers = #tpu.dot_dimension_numbers<[1], [0], [0], [1], [0, 0, 1, 1], [], []>} : vector<8x64xf32>, vector<64x256xf32>, vector<8x256xf32> -> vector<8x256xf32>
    %605 = arith.addf %602, %604 : vector<8x256xf32>
    %606 = math.tanh %605 : vector<8x256xf32>
    %607 = vector.extract_strided_slice %606 {offsets = [0, 0], sizes = [8, 64], strides = [1, 1]} : vector<8x256xf32> to vector<8x64xf32>
    %cst_218 = arith.constant 5.000000e-01 : f32
    %608 = vector.broadcast %cst_218 : f32 to vector<8x64xf32>
    %609 = arith.mulf %608, %607 : vector<8x64xf32>
    %cst_219 = arith.constant 5.000000e-01 : f32
    %610 = vector.broadcast %cst_219 : f32 to vector<8x64xf32>
    %611 = arith.addf %609, %610 : vector<8x64xf32>
    %612 = vector.extract_strided_slice %606 {offsets = [0, 64], sizes = [8, 64], strides = [1, 1]} : vector<8x256xf32> to vector<8x64xf32>
    %cst_220 = arith.constant 5.000000e-01 : f32
    %613 = vector.broadcast %cst_220 : f32 to vector<8x64xf32>
    %614 = arith.mulf %613, %612 : vector<8x64xf32>
    %cst_221 = arith.constant 5.000000e-01 : f32
    %615 = vector.broadcast %cst_221 : f32 to vector<8x64xf32>
    %616 = arith.addf %614, %615 : vector<8x64xf32>
    %617 = vector.extract_strided_slice %606 {offsets = [0, 128], sizes = [8, 64], strides = [1, 1]} : vector<8x256xf32> to vector<8x64xf32>
    %618 = vector.extract_strided_slice %606 {offsets = [0, 192], sizes = [8, 64], strides = [1, 1]} : vector<8x256xf32> to vector<8x64xf32>
    %cst_222 = arith.constant 5.000000e-01 : f32
    %619 = vector.broadcast %cst_222 : f32 to vector<8x64xf32>
    %620 = arith.mulf %619, %618 : vector<8x64xf32>
    %cst_223 = arith.constant 5.000000e-01 : f32
    %621 = vector.broadcast %cst_223 : f32 to vector<8x64xf32>
    %622 = arith.addf %620, %621 : vector<8x64xf32>
    %623 = arith.mulf %616, %594 : vector<8x64xf32>
    %624 = arith.mulf %611, %617 : vector<8x64xf32>
    %625 = arith.addf %623, %624 : vector<8x64xf32>
    %626 = math.tanh %625 : vector<8x64xf32>
    %627 = arith.mulf %622, %626 : vector<8x64xf32>
    %c20_i32 = arith.constant 20 : i32
    %c0_224 = arith.constant 0 : index
    %c0_225 = arith.constant 0 : index
    %628 = vector.load %arg5[%c0_224, %c0_225] : memref<1x64xf32, #tpu.memory_space<vmem>>, vector<1x64xf32>
    %629 = vector.broadcast %628 : vector<1x64xf32> to vector<8x64xf32>
    %630 = arith.mulf %627, %629 : vector<8x64xf32>
    %cst_226 = arith.constant dense<0.000000e+00> : vector<8xf32>
    %631 = vector.multi_reduction <add>, %630, %cst_226 [1] : vector<8x64xf32> to vector<8xf32>
    %632 = vector.shape_cast %631 : vector<8xf32> to vector<8x1xf32>
    %c0_227 = arith.constant 0 : index
    %633 = memref.load %arg6[%c0_227] : memref<1xf32, #tpu.memory_space<smem>>
    %634 = vector.broadcast %633 : f32 to vector<8x1xf32>
    %635 = arith.addf %632, %634 : vector<8x1xf32>
    %636 = vector.shape_cast %635 : vector<8x1xf32> to vector<8x1xf32>
    %637 = vector.broadcast %636 : vector<8x1xf32> to vector<8x128xf32>
    %c0_228 = arith.constant 0 : index
    %c0_229 = arith.constant 0 : index
    %638 = vector.load %arg7[%c0_228, %c0_229] : memref<8x128xf32, #tpu.memory_space<vmem>>, vector<8x128xf32>
    tpu.vector_store %arg7[%c0_228, %c0_229], %637 {strides = array<i32>} : memref<8x128xf32, #tpu.memory_space<vmem>>, vector<8x128xf32>,
    return
  }
  func.func @transform_0(%arg0: i32) -> (i32, i32, i32) {
    %c0_i32 = arith.constant 0 : i32
    %c0_i32_0 = arith.constant 0 : i32
    %c0_i32_1 = arith.constant 0 : i32
    return %c0_i32, %arg0, %c0_i32_0 : i32, i32, i32
  }
  func.func @transform_1(%arg0: i32) -> (i32, i32) {
    %c0_i32 = arith.constant 0 : i32
    %c0_i32_0 = arith.constant 0 : i32
    %c0_i32_1 = arith.constant 0 : i32
    return %c0_i32, %c0_i32_0 : i32, i32
  }
  func.func @transform_2(%arg0: i32) -> (i32, i32) {
    %c0_i32 = arith.constant 0 : i32
    %c0_i32_0 = arith.constant 0 : i32
    %c0_i32_1 = arith.constant 0 : i32
    return %c0_i32, %c0_i32_0 : i32, i32
  }
  func.func @transform_3(%arg0: i32) -> (i32, i32) {
    %c0_i32 = arith.constant 0 : i32
    %c0_i32_0 = arith.constant 0 : i32
    %c0_i32_1 = arith.constant 0 : i32
    return %c0_i32, %c0_i32_0 : i32, i32
  }
  func.func @transform_4(%arg0: i32) -> (i32, i32) {
    %c0_i32 = arith.constant 0 : i32
    %c0_i32_0 = arith.constant 0 : i32
    %c0_i32_1 = arith.constant 0 : i32
    return %c0_i32, %c0_i32_0 : i32, i32
  }
  func.func @transform_5(%arg0: i32) -> i32 {
    %c0_i32 = arith.constant 0 : i32
    %c0_i32_0 = arith.constant 0 : i32
    return %c0_i32 : i32
  }
  func.func @transform_6(%arg0: i32) -> (i32, i32) {
    %c0_i32 = arith.constant 0 : i32
    %c0_i32_0 = arith.constant 0 : i32
    return %arg0, %c0_i32 : i32, i32
  }
}

</mosaic_0001>

<llo_original>
// kernel: tpu_custom_call.1
$region0: #{tpu_custom_call.1}
  #allocation0 [shape = 'u32[]', space=smem, size = 0x4, offset = 0x4, fixed_abs, tag = 'smem constant byte address 0x4 - core index']
  #allocation1 [shape = 'u32[144,128]{1,0:T(1,128)}', space=vmem, size = 0x12000, scoped, tag = 'internal scratch']
  #allocation2 [shape = 'f32[1]{0:T(128)S(6)}', space=smem, size = 0x200, scoped, tag = 'scoped memory for tpu_custom_call.1']
  %s0 = inlined_call_operand.vmem [shape: f32[20,8,1], index: 0, kind: input, shape index: {}]
  %s1 = inlined_call_operand.vmem [shape: f32[64,256], index: 1, kind: input, shape index: {}]
  %s2 = inlined_call_operand.vmem [shape: f32[1,256], index: 2, kind: input, shape index: {}]
  %s3 = inlined_call_operand.vmem [shape: f32[1,256], index: 3, kind: input, shape index: {}]
  %s4 = inlined_call_operand.vmem [shape: f32[1,64], index: 4, kind: input, shape index: {}]
  %s5 = inlined_call_operand.<no memory space> [shape: f32[1], index: 5, kind: input, shape index: {}]
  %s6 = inlined_call_operand.hbm [shape: f32[8,128], index: 6, kind: output, shape index: {}]
  %s7 = sld [smem:[#allocation0]]
  $region34: #{tpu_custom_call.1} parent=0
    _
  %s9 = ssub.s32 1, %s7
  %s10 = scalar_select 0, %s9, %s7
  %11 = sst [smem:[#allocation2]] %s5
  $region1: #{tpu_custom_call.1} parent=0
    #allocation3 [shape = 'u8[4096]{0}', space=vmem, size = 0x1000, scoped, tag = 'output window, operand 0, single buffered']
    #allocation4 [shape = 's32[1]{0}', space=sflag, size = 0x4, scoped, tag = 'scoped memory for tpu_custom_call.1']
    %12 = vsyncpa [#allocation4], 0
    // Predicated region
    $region2: #{tpu_custom_call.1} parent=1 // pred_check
      _
    $region3: #{tpu_custom_call.1} parent=1 // pred_check_branch
      %14 = sbr.rel (0) target = $region5
    $region4: #{tpu_custom_call.1} parent=1 // pred_region
      _
    $region5: #{tpu_custom_call.1} parent=1 // pred_fallthru
      _
    // Predicated region
    $region6: #{tpu_custom_call.1} parent=1 // pred_check
      _
    $region7: #{tpu_custom_call.1} parent=1 // pred_check_branch
      %16 = sbr.rel (0) target = $region9
    $region8: #{tpu_custom_call.1} parent=1 // pred_region
      _
    $region9: #{tpu_custom_call.1} parent=1 // pred_fallthru
      _
    // Predicated region
    $region10: #{tpu_custom_call.1} parent=1 // pred_check
      _
    $region11: #{tpu_custom_call.1} parent=1 // pred_check_branch
      %18 = sbr.rel (0) target = $region13
    $region12: #{tpu_custom_call.1} parent=1 // pred_region
      _
    $region13: #{tpu_custom_call.1} parent=1 // pred_fallthru
      _
    // Predicated region
    $region14: #{tpu_custom_call.1} parent=1 // pred_check
      _
    $region15: #{tpu_custom_call.1} parent=1 // pred_check_branch
      %20 = sbr.rel (0) target = $region17
    $region16: #{tpu_custom_call.1} parent=1 // pred_region
      _
    $region17: #{tpu_custom_call.1} parent=1 // pred_fallthru
      _
    // Predicated region
    $region18: #{tpu_custom_call.1} parent=1 // pred_check
      _
    $region19: #{tpu_custom_call.1} parent=1 // pred_check_branch
      %22 = sbr.rel (0) target = $region21
    $region20: #{tpu_custom_call.1} parent=1 // pred_region
      _
    $region21: #{tpu_custom_call.1} parent=1 // pred_fallthru
      _
    // Predicated region
    $region22: #{tpu_custom_call.1} parent=1 // pred_check
      _
    $region23: #{tpu_custom_call.1} parent=1 // pred_check_branch
      %24 = sbr.rel (0) target = $region25
    $region24: #{tpu_custom_call.1} parent=1 // pred_region
      _
    $region25: #{tpu_custom_call.1} parent=1 // pred_fallthru
      _
    %v25 = vld [vmem:[%s2] sm:$0x3]
    %v27 = vlaneseq
    %v28 = vshrl.u32 %v27, 7
    %v29 = vsub.s32 0, %v28
    %v30 = vrot.slane %v25, %v29
    %v31 = vlaneseq
    %v32 = vshrl.u32 %v31, 7
    %v33 = vsub.s32 1, %v32
    %v34 = vrot.slane %v25, %v33
    %v37 = vld [vmem:[%s3] sm:$0x3]
    %v39 = vlaneseq
    %v40 = vshrl.u32 %v39, 7
    %v41 = vsub.s32 0, %v40
    %v42 = vrot.slane %v37, %v41
    %v43 = vlaneseq
    %v44 = vshrl.u32 %v43, 7
    %v45 = vsub.s32 1, %v44
    %v46 = vrot.slane %v37, %v45
    %v49 = vld [vmem:[%s0] sm:$0xff]
    %51 = vset.pattern.permute.xlu0 0
    %52 = vperm.xlu0 %51, %v49
    %v53 = vpop.permute.xlu0 %52
    %v55 = vmul.f32 %v53, %v30
    %v56 = vmul.f32 %v53, %v34
    %v57 = vadd.f32 %v55, %v42
    %v58 = vadd.f32 %v56, %v46
    %v59 = vld [vmem:[%s1] sm:$0xff]
    %v60 = vld [vmem:[%s1 + $0x8] sm:$0xff]
    %v61 = vld [vmem:[%s1 + $0x10] sm:$0xff]
    %v62 = vld [vmem:[%s1 + $0x18] sm:$0xff]
    %v63 = vld [vmem:[%s1 + $0x20] sm:$0xff]
    %v64 = vld [vmem:[%s1 + $0x28] sm:$0xff]
    %v65 = vld [vmem:[%s1 + $0x30] sm:$0xff]
    %v66 = vld [vmem:[%s1 + $0x38] sm:$0xff]
    %v67 = vld [vmem:[%s1 + $0x40] sm:$0xff]
    %v68 = vld [vmem:[%s1 + $0x48] sm:$0xff]
    %v69 = vld [vmem:[%s1 + $0x50] sm:$0xff]
    %v70 = vld [vmem:[%s1 + $0x58] sm:$0xff]
    %v71 = vld [vmem:[%s1 + $0x60] sm:$0xff]
    %v72 = vld [vmem:[%s1 + $0x68] sm:$0xff]
    %v73 = vld [vmem:[%s1 + $0x70] sm:$0xff]
    %v74 = vld [vmem:[%s1 + $0x78] sm:$0xff]
    %vm75 = vcmask 523264
    %v77 = vsel %vm75, 0.0, 0
    %79 = vmatprep.subr.mxu0 %v60
    %80 = vmatpush1.msra.mxu0 %v59
    %81 = vmatprep.subr.mxu0 %v62
    %82 = vmatpush1.msra.mxu0 %v61
    %83 = vmatprep.subr.mxu0 %v64
    %84 = vmatpush1.msra.mxu0 %v63
    %85 = vmatprep.subr.mxu0 %v66
    %86 = vmatpush1.msra.mxu0 %v65
    %87 = vmatprep.subr.mxu0 %v68
    %88 = vmatpush1.msra.mxu0 %v67
    %89 = vmatprep.subr.mxu0 %v70
    %90 = vmatpush1.msra.mxu0 %v69
    %91 = vmatprep.subr.mxu0 %v72
    %92 = vmatpush1.msra.mxu0 %v71
    %93 = vmatprep.subr.mxu0 %v74
    %94 = vmatpush1.msra.mxu0 %v73
    %95 = vmatprep.subr.mxu0 0.0
    %96 = vmatpush1.msra.mxu0 0.0
    %97 = vmatprep.subr.mxu0 0.0
    %98 = vmatpush1.msra.mxu0 0.0
    %99 = vmatprep.subr.mxu0 0.0
    %100 = vmatpush1.msra.mxu0 0.0
    %101 = vmatprep.subr.mxu0 0.0
    %102 = vmatpush1.msra.mxu0 0.0
    %103 = vmatprep.subr.mxu0 0.0
    %104 = vmatpush1.msra.mxu0 0.0
    %105 = vmatprep.subr.mxu0 0.0
    %106 = vmatpush1.msra.mxu0 0.0
    %107 = vmatprep.subr.mxu0 0.0
    %108 = vmatpush1.msra.mxu0 0.0
    %109 = vmatprep.subr.mxu0 0.0
    %110 = vmatpush1.msra.mxu0 0.0
    %111 = vmatprep.subr.mxu0 0.0
    %112 = vmatpush1.msra.mxu0 0.0
    %113 = vmatprep.subr.mxu0 0.0
    %114 = vmatpush1.msra.mxu0 0.0
    %115 = vmatprep.subr.mxu0 0.0
    %116 = vmatpush1.msra.mxu0 0.0
    %117 = vmatprep.subr.mxu0 0.0
    %118 = vmatpush1.msra.mxu0 0.0
    %119 = vmatprep.subr.mxu0 0.0
    %120 = vmatpush1.msra.mxu0 0.0
    %121 = vmatprep.subr.mxu0 0.0
    %122 = vmatpush1.msra.mxu0 0.0
    %123 = vmatprep.subr.mxu0 0.0
    %124 = vmatpush1.msra.mxu0 0.0
    %125 = vmatprep.subr.mxu0 0.0
    %126 = vmatpush1.msra.mxu0 0.0
    %127 = vmatprep.subr.mxu0 0.0
    %128 = vmatpush1.msra.mxu0 0.0
    %129 = vmatprep.subr.mxu0 0.0
    %130 = vmatpush1.msra.mxu0 0.0
    %131 = vmatprep.subr.mxu0 0.0
    %132 = vmatpush1.msra.mxu0 0.0
    %133 = vmatprep.subr.mxu0 0.0
    %134 = vmatpush1.msra.mxu0 0.0
    %135 = vmatprep.subr.mxu0 0.0
    %136 = vmatpush1.msra.mxu0 0.0
    %137 = vmatprep.subr.mxu0 0.0
    %138 = vmatpush1.msra.mxu0 0.0
    %139 = vmatprep.subr.mxu0 0.0
    %140 = vmatpush1.msra.mxu0 0.0
    %141 = vmatprep.subr.mxu0 0.0
    %142 = vmatpush1.msra.mxu0 0.0
    %143 = vmatprep.mubr.f32.mxu0 0.0
    %144 = vmatmul.mubr.f32.gmra.mrb[0].mxu0 %v77
    %v145 = vpop.f32.mrb[0].mxu0
    %v146 = vadd.f32 0.0, %v145
    %v147 = vpop.f32.mrb[0].mxu0
    %v148 = vadd.f32 0.0, %v147
    %149 = vdwg.mxu0
    %v150 = vadd.f32 %v57, %v146
    %v151 = vadd.f32 %v58, %v148
    %v152 = vtanh.pop %v150
    %v153 = vtanh.pop %v151
    %v154 = vmul.f32 %v152, 0.5
    %v155 = vadd.f32 %v154, 0.5
    %v156 = vmul.f32 %v153, 0.5
    %v157 = vadd.f32 %v156, 0.5
    %v158 = vmul.f32 %v155, 0.0
    %v159 = vmul.f32 %v155, %v153
    %161 = vrot.lane.b32.xlu0 %v159, 64
    %v162 = vpop.permute.xlu0 %161
    %v164 = vadd.f32 %v158, %v162
    %v165 = vtanh.pop %v164
    %v166 = vmul.f32 %v157, %v165
    %s167 = scalar_lea.vmem %s0, 8
    %v168 = vld [vmem:[%s167] sm:$0xff]
    %170 = vset.pattern.permute.xlu0 0
    %171 = vperm.xlu0 %170, %v168
    %v172 = vpop.permute.xlu0 %171
    %v174 = vmul.f32 %v172, %v30
    %v175 = vmul.f32 %v172, %v34
    %v176 = vadd.f32 %v174, %v42
    %v177 = vadd.f32 %v175, %v46
    %179 = vrot.lane.b32.xlu0 %v166, 64
    %v180 = vpop.permute.xlu0 %179
    %v181 = vsel %vm75, %v180, 0
    %183 = vmatprep.subr.mxu0 %v60
    %184 = vmatpush1.msra.mxu0 %v59
    %185 = vmatprep.subr.mxu0 %v62
    %186 = vmatpush1.msra.mxu0 %v61
    %187 = vmatprep.subr.mxu0 %v64
    %188 = vmatpush1.msra.mxu0 %v63
    %189 = vmatprep.subr.mxu0 %v66
    %190 = vmatpush1.msra.mxu0 %v65
    %191 = vmatprep.subr.mxu0 %v68
    %192 = vmatpush1.msra.mxu0 %v67
    %193 = vmatprep.subr.mxu0 %v70
    %194 = vmatpush1.msra.mxu0 %v69
    %195 = vmatprep.subr.mxu0 %v72
    %196 = vmatpush1.msra.mxu0 %v71
    %197 = vmatprep.subr.mxu0 %v74
    %198 = vmatpush1.msra.mxu0 %v73
    %199 = vmatprep.subr.mxu0 0.0
    %200 = vmatpush1.msra.mxu0 0.0
    %201 = vmatprep.subr.mxu0 0.0
    %202 = vmatpush1.msra.mxu0 0.0
    %203 = vmatprep.subr.mxu0 0.0
    %204 = vmatpush1.msra.mxu0 0.0
    %205 = vmatprep.subr.mxu0 0.0
    %206 = vmatpush1.msra.mxu0 0.0
    %207 = vmatprep.subr.mxu0 0.0
    %208 = vmatpush1.msra.mxu0 0.0
    %209 = vmatprep.subr.mxu0 0.0
    %210 = vmatpush1.msra.mxu0 0.0
    %211 = vmatprep.subr.mxu0 0.0
    %212 = vmatpush1.msra.mxu0 0.0
    %213 = vmatprep.subr.mxu0 0.0
    %214 = vmatpush1.msra.mxu0 0.0
    %215 = vmatprep.subr.mxu0 0.0
    %216 = vmatpush1.msra.mxu0 0.0
    %217 = vmatprep.subr.mxu0 0.0
    %218 = vmatpush1.msra.mxu0 0.0
    %219 = vmatprep.subr.mxu0 0.0
    %220 = vmatpush1.msra.mxu0 0.0
    %221 = vmatprep.subr.mxu0 0.0
    %222 = vmatpush1.msra.mxu0 0.0
    %223 = vmatprep.subr.mxu0 0.0
    %224 = vmatpush1.msra.mxu0 0.0
    %225 = vmatprep.subr.mxu0 0.0
    %226 = vmatpush1.msra.mxu0 0.0
    %227 = vmatprep.subr.mxu0 0.0
    %228 = vmatpush1.msra.mxu0 0.0
    %229 = vmatprep.subr.mxu0 0.0
    %230 = vmatpush1.msra.mxu0 0.0
    %231 = vmatprep.subr.mxu0 0.0
    %232 = vmatpush1.msra.mxu0 0.0
    %233 = vmatprep.subr.mxu0 0.0
    %234 = vmatpush1.msra.mxu0 0.0
    %235 = vmatprep.subr.mxu0 0.0
    %236 = vmatpush1.msra.mxu0 0.0
    %237 = vmatprep.subr.mxu0 0.0
    %238 = vmatpush1.msra.mxu0 0.0
    %239 = vmatprep.subr.mxu0 0.0
    %240 = vmatpush1.msra.mxu0 0.0
    %241 = vmatprep.subr.mxu0 0.0
    %242 = vmatpush1.msra.mxu0 0.0
    %243 = vmatprep.subr.mxu0 0.0
    %244 = vmatpush1.msra.mxu0 0.0
    %245 = vmatprep.subr.mxu0 0.0
    %246 = vmatpush1.msra.mxu0 0.0
    %247 = vmatprep.mubr.f32.mxu0 0.0
    %248 = vmatmul.mubr.f32.gmra.mrb[0].mxu0 %v181
    %v249 = vpop.f32.mrb[0].mxu0
    %v250 = vadd.f32 0.0, %v249
    %v251 = vpop.f32.mrb[0].mxu0
    %v252 = vadd.f32 0.0, %v251
    %253 = vdwg.mxu0
    %v254 = vadd.f32 %v176, %v250
    %v255 = vadd.f32 %v177, %v252
    %v256 = vtanh.pop %v254
    %v257 = vtanh.pop %v255
    %v258 = vmul.f32 %v256, 0.5
    %v259 = vadd.f32 %v258, 0.5
    %v260 = vmul.f32 %v257, 0.5
    %v261 = vadd.f32 %v260, 0.5
    %v262 = vmul.f32 %v259, %v164
    %v263 = vmul.f32 %v259, %v257
    %265 = vrot.lane.b32.xlu0 %v263, 64
    %v266 = vpop.permute.xlu0 %265
    %v268 = vadd.f32 %v262, %v266
    %v269 = vtanh.pop %v268
    %v270 = vmul.f32 %v261, %v269
    %s271 = scalar_lea.vmem %s0, 16
    %v272 = vld [vmem:[%s271] sm:$0xff]
    %274 = vset.pattern.permute.xlu0 0
    %275 = vperm.xlu0 %274, %v272
    %v276 = vpop.permute.xlu0 %275
    %v278 = vmul.f32 %v276, %v30
    %v279 = vmul.f32 %v276, %v34
    %v280 = vadd.f32 %v278, %v42
    %v281 = vadd.f32 %v279, %v46
    %283 = vrot.lane.b32.xlu0 %v270, 64
    %v284 = vpop.permute.xlu0 %283
    %v285 = vsel %vm75, %v284, 0
    %287 = vmatprep.subr.mxu0 %v60
    %288 = vmatpush1.msra.mxu0 %v59
    %289 = vmatprep.subr.mxu0 %v62
    %290 = vmatpush1.msra.mxu0 %v61
    %291 = vmatprep.subr.mxu0 %v64
    %292 = vmatpush1.msra.mxu0 %v63
    %293 = vmatprep.subr.mxu0 %v66
    %294 = vmatpush1.msra.mxu0 %v65
    %295 = vmatprep.subr.mxu0 %v68
    %296 = vmatpush1.msra.mxu0 %v67
    %297 = vmatprep.subr.mxu0 %v70
    %298 = vmatpush1.msra.mxu0 %v69
    %299 = vmatprep.subr.mxu0 %v72
    %300 = vmatpush1.msra.mxu0 %v71
    %301 = vmatprep.subr.mxu0 %v74
    %302 = vmatpush1.msra.mxu0 %v73
    %303 = vmatprep.subr.mxu0 0.0
    %304 = vmatpush1.msra.mxu0 0.0
    %305 = vmatprep.subr.mxu0 0.0
    %306 = vmatpush1.msra.mxu0 0.0
    %307 = vmatprep.subr.mxu0 0.0
    %308 = vmatpush1.msra.mxu0 0.0
    %309 = vmatprep.subr.mxu0 0.0
    %310 = vmatpush1.msra.mxu0 0.0
    %311 = vmatprep.subr.mxu0 0.0
    %312 = vmatpush1.msra.mxu0 0.0
    %313 = vmatprep.subr.mxu0 0.0
    %314 = vmatpush1.msra.mxu0 0.0
    %315 = vmatprep.subr.mxu0 0.0
    %316 = vmatpush1.msra.mxu0 0.0
    %317 = vmatprep.subr.mxu0 0.0
    %318 = vmatpush1.msra.mxu0 0.0
    %319 = vmatprep.subr.mxu0 0.0
    %320 = vmatpush1.msra.mxu0 0.0
    %321 = vmatprep.subr.mxu0 0.0
    %322 = vmatpush1.msra.mxu0 0.0
    %323 = vmatprep.subr.mxu0 0.0
    %324 = vmatpush1.msra.mxu0 0.0
    %325 = vmatprep.subr.mxu0 0.0
    %326 = vmatpush1.msra.mxu0 0.0
    %327 = vmatprep.subr.mxu0 0.0
    %328 = vmatpush1.msra.mxu0 0.0
    %329 = vmatprep.subr.mxu0 0.0
    %330 = vmatpush1.msra.mxu0 0.0
    %331 = vmatprep.subr.mxu0 0.0
    %332 = vmatpush1.msra.mxu0 0.0
    %333 = vmatprep.subr.mxu0 0.0
    %334 = vmatpush1.msra.mxu0 0.0
    %335 = vmatprep.subr.mxu0 0.0
    %336 = vmatpush1.msra.mxu0 0.0
    %337 = vmatprep.subr.mxu0 0.0
    %338 = vmatpush1.msra.mxu0 0.0
    %339 = vmatprep.subr.mxu0 0.0
    %340 = vmatpush1.msra.mxu0 0.0
    %341 = vmatprep.subr.mxu0 0.0
    %342 = vmatpush1.msra.mxu0 0.0
    %343 = vmatprep.subr.mxu0 0.0
    %344 = vmatpush1.msra.mxu0 0.0
    %345 = vmatprep.subr.mxu0 0.0
    %346 = vmatpush1.msra.mxu0 0.0
    %347 = vmatprep.subr.mxu0 0.0
    %348 = vmatpush1.msra.mxu0 0.0
    %349 = vmatprep.subr.mxu0 0.0
    %350 = vmatpush1.msra.mxu0 0.0
    %351 = vmatprep.mubr.f32.mxu0 0.0
    %352 = vmatmul.mubr.f32.gmra.mrb[0].mxu0 %v285
    %v353 = vpop.f32.mrb[0].mxu0
    %v354 = vadd.f32 0.0, %v353
    %v355 = vpop.f32.mrb[0].mxu0
    %v356 = vadd.f32 0.0, %v355
    %357 = vdwg.mxu0
    %v358 = vadd.f32 %v280, %v354
    %v359 = vadd.f32 %v281, %v356
    %v360 = vtanh.pop %v358
    %v361 = vtanh.pop %v359
    %v362 = vmul.f32 %v360, 0.5
    %v363 = vadd.f32 %v362, 0.5
    %v364 = vmul.f32 %v361, 0.5
    %v365 = vadd.f32 %v364, 0.5
    %v366 = vmul.f32 %v363, %v268
    %v367 = vmul.f32 %v363, %v361
    %369 = vrot.lane.b32.xlu0 %v367, 64
    %v370 = vpop.permute.xlu0 %369
    %v372 = vadd.f32 %v366, %v370
    %v373 = vtanh.pop %v372
    %v374 = vmul.f32 %v365, %v373
    %s375 = scalar_lea.vmem %s0, 24
    %v376 = vld [vmem:[%s375] sm:$0xff]
    %378 = vset.pattern.permute.xlu0 0
    %379 = vperm.xlu0 %378, %v376
    %v380 = vpop.permute.xlu0 %379
    %v382 = vmul.f32 %v380, %v30
    %v383 = vmul.f32 %v380, %v34
    %v384 = vadd.f32 %v382, %v42
    %v385 = vadd.f32 %v383, %v46
    %387 = vrot.lane.b32.xlu0 %v374, 64
    %v388 = vpop.permute.xlu0 %387
    %v389 = vsel %vm75, %v388, 0
    %391 = vmatprep.subr.mxu0 %v60
    %392 = vmatpush1.msra.mxu0 %v59
    %393 = vmatprep.subr.mxu0 %v62
    %394 = vmatpush1.msra.mxu0 %v61
    %395 = vmatprep.subr.mxu0 %v64
    %396 = vmatpush1.msra.mxu0 %v63
    %397 = vmatprep.subr.mxu0 %v66
    %398 = vmatpush1.msra.mxu0 %v65
    %399 = vmatprep.subr.mxu0 %v68
    %400 = vmatpush1.msra.mxu0 %v67
    %401 = vmatprep.subr.mxu0 %v70
    %402 = vmatpush1.msra.mxu0 %v69
    %403 = vmatprep.subr.mxu0 %v72
    %404 = vmatpush1.msra.mxu0 %v71
    %405 = vmatprep.subr.mxu0 %v74
    %406 = vmatpush1.msra.mxu0 %v73
    %407 = vmatprep.subr.mxu0 0.0
    %408 = vmatpush1.msra.mxu0 0.0
    %409 = vmatprep.subr.mxu0 0.0
    %410 = vmatpush1.msra.mxu0 0.0
    %411 = vmatprep.subr.mxu0 0.0
    %412 = vmatpush1.msra.mxu0 0.0
    %413 = vmatprep.subr.mxu0 0.0
    %414 = vmatpush1.msra.mxu0 0.0
    %415 = vmatprep.subr.mxu0 0.0
    %416 = vmatpush1.msra.mxu0 0.0
    %417 = vmatprep.subr.mxu0 0.0
    %418 = vmatpush1.msra.mxu0 0.0
    %419 = vmatprep.subr.mxu0 0.0
    %420 = vmatpush1.msra.mxu0 0.0
    %421 = vmatprep.subr.mxu0 0.0
    %422 = vmatpush1.msra.mxu0 0.0
    %423 = vmatprep.subr.mxu0 0.0
    %424 = vmatpush1.msra.mxu0 0.0
    %425 = vmatprep.subr.mxu0 0.0
    %426 = vmatpush1.msra.mxu0 0.0
    %427 = vmatprep.subr.mxu0 0.0
    %428 = vmatpush1.msra.mxu0 0.0
    %429 = vmatprep.subr.mxu0 0.0
    %430 = vmatpush1.msra.mxu0 0.0
    %431 = vmatprep.subr.mxu0 0.0
    %432 = vmatpush1.msra.mxu0 0.0
    %433 = vmatprep.subr.mxu0 0.0
    %434 = vmatpush1.msra.mxu0 0.0
    %435 = vmatprep.subr.mxu0 0.0
    %436 = vmatpush1.msra.mxu0 0.0
    %437 = vmatprep.subr.mxu0 0.0
    %438 = vmatpush1.msra.mxu0 0.0
    %439 = vmatprep.subr.mxu0 0.0
    %440 = vmatpush1.msra.mxu0 0.0
    %441 = vmatprep.subr.mxu0 0.0
    %442 = vmatpush1.msra.mxu0 0.0
    %443 = vmatprep.subr.mxu0 0.0
    %444 = vmatpush1.msra.mxu0 0.0
    %445 = vmatprep.subr.mxu0 0.0
    %446 = vmatpush1.msra.mxu0 0.0
    %447 = vmatprep.subr.mxu0 0.0
    %448 = vmatpush1.msra.mxu0 0.0
    %449 = vmatprep.subr.mxu0 0.0
    %450 = vmatpush1.msra.mxu0 0.0
    %451 = vmatprep.subr.mxu0 0.0
    %452 = vmatpush1.msra.mxu0 0.0
    %453 = vmatprep.subr.mxu0 0.0
    %454 = vmatpush1.msra.mxu0 0.0
    %455 = vmatprep.mubr.f32.mxu0 0.0
    %456 = vmatmul.mubr.f32.gmra.mrb[0].mxu0 %v389
    %v457 = vpop.f32.mrb[0].mxu0
    %v458 = vadd.f32 0.0, %v457
    %v459 = vpop.f32.mrb[0].mxu0
    %v460 = vadd.f32 0.0, %v459
    %461 = vdwg.mxu0
    %v462 = vadd.f32 %v384, %v458
    %v463 = vadd.f32 %v385, %v460
    %v464 = vtanh.pop %v462
    %v465 = vtanh.pop %v463
    %v466 = vmul.f32 %v464, 0.5
    %v467 = vadd.f32 %v466, 0.5
    %v468 = vmul.f32 %v465, 0.5
    %v469 = vadd.f32 %v468, 0.5
    %v470 = vmul.f32 %v467, %v372
    %v471 = vmul.f32 %v467, %v465
    %473 = vrot.lane.b32.xlu0 %v471, 64
    %v474 = vpop.permute.xlu0 %473
    %v476 = vadd.f32 %v470, %v474
    %v477 = vtanh.pop %v476
    %v478 = vmul.f32 %v469, %v477
    %s479 = scalar_lea.vmem %s0, 32
    %v480 = vld [vmem:[%s479] sm:$0xff]
    %482 = vset.pattern.permute.xlu0 0
    %483 = vperm.xlu0 %482, %v480
    %v484 = vpop.permute.xlu0 %483
    %v486 = vmul.f32 %v484, %v30
    %v487 = vmul.f32 %v484, %v34
    %v488 = vadd.f32 %v486, %v42
    %v489 = vadd.f32 %v487, %v46
    %491 = vrot.lane.b32.xlu0 %v478, 64
    %v492 = vpop.permute.xlu0 %491
    %v493 = vsel %vm75, %v492, 0
    %495 = vmatprep.subr.mxu0 %v60
    %496 = vmatpush1.msra.mxu0 %v59
    %497 = vmatprep.subr.mxu0 %v62
    %498 = vmatpush1.msra.mxu0 %v61
    %499 = vmatprep.subr.mxu0 %v64
    %500 = vmatpush1.msra.mxu0 %v63
    %501 = vmatprep.subr.mxu0 %v66
    %502 = vmatpush1.msra.mxu0 %v65
    %503 = vmatprep.subr.mxu0 %v68
    %504 = vmatpush1.msra.mxu0 %v67
    %505 = vmatprep.subr.mxu0 %v70
    %506 = vmatpush1.msra.mxu0 %v69
    %507 = vmatprep.subr.mxu0 %v72
    %508 = vmatpush1.msra.mxu0 %v71
    %509 = vmatprep.subr.mxu0 %v74
    %510 = vmatpush1.msra.mxu0 %v73
    %511 = vmatprep.subr.mxu0 0.0
    %512 = vmatpush1.msra.mxu0 0.0
    %513 = vmatprep.subr.mxu0 0.0
    %514 = vmatpush1.msra.mxu0 0.0
    %515 = vmatprep.subr.mxu0 0.0
    %516 = vmatpush1.msra.mxu0 0.0
    %517 = vmatprep.subr.mxu0 0.0
    %518 = vmatpush1.msra.mxu0 0.0
    %519 = vmatprep.subr.mxu0 0.0
    %520 = vmatpush1.msra.mxu0 0.0
    %521 = vmatprep.subr.mxu0 0.0
    %522 = vmatpush1.msra.mxu0 0.0
    %523 = vmatprep.subr.mxu0 0.0
    %524 = vmatpush1.msra.mxu0 0.0
    %525 = vmatprep.subr.mxu0 0.0
    %526 = vmatpush1.msra.mxu0 0.0
    %527 = vmatprep.subr.mxu0 0.0
    %528 = vmatpush1.msra.mxu0 0.0
    %529 = vmatprep.subr.mxu0 0.0
    %530 = vmatpush1.msra.mxu0 0.0
    %531 = vmatprep.subr.mxu0 0.0
    %532 = vmatpush1.msra.mxu0 0.0
    %533 = vmatprep.subr.mxu0 0.0
    %534 = vmatpush1.msra.mxu0 0.0
    %535 = vmatprep.subr.mxu0 0.0
    %536 = vmatpush1.msra.mxu0 0.0
    %537 = vmatprep.subr.mxu0 0.0
    %538 = vmatpush1.msra.mxu0 0.0
    %539 = vmatprep.subr.mxu0 0.0
    %540 = vmatpush1.msra.mxu0 0.0
    %541 = vmatprep.subr.mxu0 0.0
    %542 = vmatpush1.msra.mxu0 0.0
    %543 = vmatprep.subr.mxu0 0.0
    %544 = vmatpush1.msra.mxu0 0.0
    %545 = vmatprep.subr.mxu0 0.0
    %546 = vmatpush1.msra.mxu0 0.0
    %547 = vmatprep.subr.mxu0 0.0
    %548 = vmatpush1.msra.mxu0 0.0
    %549 = vmatprep.subr.mxu0 0.0
    %550 = vmatpush1.msra.mxu0 0.0
    %551 = vmatprep.subr.mxu0 0.0
    %552 = vmatpush1.msra.mxu0 0.0
    %553 = vmatprep.subr.mxu0 0.0
    %554 = vmatpush1.msra.mxu0 0.0
    %555 = vmatprep.subr.mxu0 0.0
    %556 = vmatpush1.msra.mxu0 0.0
    %557 = vmatprep.subr.mxu0 0.0
    %558 = vmatpush1.msra.mxu0 0.0
    %559 = vmatprep.mubr.f32.mxu0 0.0
    %560 = vmatmul.mubr.f32.gmra.mrb[0].mxu0 %v493
    %v561 = vpop.f32.mrb[0].mxu0
    %v562 = vadd.f32 0.0, %v561
    %v563 = vpop.f32.mrb[0].mxu0
    %v564 = vadd.f32 0.0, %v563
    %565 = vdwg.mxu0
    %v566 = vadd.f32 %v488, %v562
    %v567 = vadd.f32 %v489, %v564
    %v568 = vtanh.pop %v566
    %v569 = vtanh.pop %v567
    %v570 = vmul.f32 %v568, 0.5
    %v571 = vadd.f32 %v570, 0.5
    %v572 = vmul.f32 %v569, 0.5
    %v573 = vadd.f32 %v572, 0.5
    %v574 = vmul.f32 %v571, %v476
    %v575 = vmul.f32 %v571, %v569
    %577 = vrot.lane.b32.xlu0 %v575, 64
    %v578 = vpop.permute.xlu0 %577
    %v580 = vadd.f32 %v574, %v578
    %v581 = vtanh.pop %v580
    %v582 = vmul.f32 %v573, %v581
    %s583 = scalar_lea.vmem %s0, 40
    %v584 = vld [vmem:[%s583] sm:$0xff]
    %586 = vset.pattern.permute.xlu0 0
    %587 = vperm.xlu0 %586, %v584
    %v588 = vpop.permute.xlu0 %587
    %v590 = vmul.f32 %v588, %v30
    %v591 = vmul.f32 %v588, %v34
    %v592 = vadd.f32 %v590, %v42
    %v593 = vadd.f32 %v591, %v46
    %595 = vrot.lane.b32.xlu0 %v582, 64
    %v596 = vpop.permute.xlu0 %595
    %v597 = vsel %vm75, %v596, 0
    %599 = vmatprep.subr.mxu0 %v60
    %600 = vmatpush1.msra.mxu0 %v59
    %601 = vmatprep.subr.mxu0 %v62
    %602 = vmatpush1.msra.mxu0 %v61
    %603 = vmatprep.subr.mxu0 %v64
    %604 = vmatpush1.msra.mxu0 %v63
    %605 = vmatprep.subr.mxu0 %v66
    %606 = vmatpush1.msra.mxu0 %v65
    %607 = vmatprep.subr.mxu0 %v68
    %608 = vmatpush1.msra.mxu0 %v67
    %609 = vmatprep.subr.mxu0 %v70
    %610 = vmatpush1.msra.mxu0 %v69
    %611 = vmatprep.subr.mxu0 %v72
    %612 = vmatpush1.msra.mxu0 %v71
    %613 = vmatprep.subr.mxu0 %v74
    %614 = vmatpush1.msra.mxu0 %v73
    %615 = vmatprep.subr.mxu0 0.0
    %616 = vmatpush1.msra.mxu0 0.0
    %617 = vmatprep.subr.mxu0 0.0
    %618 = vmatpush1.msra.mxu0 0.0
    %619 = vmatprep.subr.mxu0 0.0
    %620 = vmatpush1.msra.mxu0 0.0
    %621 = vmatprep.subr.mxu0 0.0
    %622 = vmatpush1.msra.mxu0 0.0
    %623 = vmatprep.subr.mxu0 0.0
    %624 = vmatpush1.msra.mxu0 0.0
    %625 = vmatprep.subr.mxu0 0.0
    %626 = vmatpush1.msra.mxu0 0.0
    %627 = vmatprep.subr.mxu0 0.0
    %628 = vmatpush1.msra.mxu0 0.0
    %629 = vmatprep.subr.mxu0 0.0
    %630 = vmatpush1.msra.mxu0 0.0
    %631 = vmatprep.subr.mxu0 0.0
    %632 = vmatpush1.msra.mxu0 0.0
    %633 = vmatprep.subr.mxu0 0.0
    %634 = vmatpush1.msra.mxu0 0.0
    %635 = vmatprep.subr.mxu0 0.0
    %636 = vmatpush1.msra.mxu0 0.0
    %637 = vmatprep.subr.mxu0 0.0
    %638 = vmatpush1.msra.mxu0 0.0
    %639 = vmatprep.subr.mxu0 0.0
    %640 = vmatpush1.msra.mxu0 0.0
    %641 = vmatprep.subr.mxu0 0.0
    %642 = vmatpush1.msra.mxu0 0.0
    %643 = vmatprep.subr.mxu0 0.0
    %644 = vmatpush1.msra.mxu0 0.0
    %645 = vmatprep.subr.mxu0 0.0
    %646 = vmatpush1.msra.mxu0 0.0
    %647 = vmatprep.subr.mxu0 0.0
    %648 = vmatpush1.msra.mxu0 0.0
    %649 = vmatprep.subr.mxu0 0.0
    %650 = vmatpush1.msra.mxu0 0.0
    %651 = vmatprep.subr.mxu0 0.0
    %652 = vmatpush1.msra.mxu0 0.0
    %653 = vmatprep.subr.mxu0 0.0
    %654 = vmatpush1.msra.mxu0 0.0
    %655 = vmatprep.subr.mxu0 0.0
    %656 = vmatpush1.msra.mxu0 0.0
    %657 = vmatprep.subr.mxu0 0.0
    %658 = vmatpush1.msra.mxu0 0.0
    %659 = vmatprep.subr.mxu0 0.0
    %660 = vmatpush1.msra.mxu0 0.0
    %661 = vmatprep.subr.mxu0 0.0
    %662 = vmatpush1.msra.mxu0 0.0
    %663 = vmatprep.mubr.f32.mxu0 0.0
    %664 = vmatmul.mubr.f32.gmra.mrb[0].mxu0 %v597
    %v665 = vpop.f32.mrb[0].mxu0
    %v666 = vadd.f32 0.0, %v665
    %v667 = vpop.f32.mrb[0].mxu0
    %v668 = vadd.f32 0.0, %v667
    %669 = vdwg.mxu0
    %v670 = vadd.f32 %v592, %v666
    %v671 = vadd.f32 %v593, %v668
    %v672 = vtanh.pop %v670
    %v673 = vtanh.pop %v671
    %v674 = vmul.f32 %v672, 0.5
    %v675 = vadd.f32 %v674, 0.5
    %v676 = vmul.f32 %v673, 0.5
    %v677 = vadd.f32 %v676, 0.5
    %v678 = vmul.f32 %v675, %v580
    %v679 = vmul.f32 %v675, %v673
    %681 = vrot.lane.b32.xlu0 %v679, 64
    %v682 = vpop.permute.xlu0 %681
    %v684 = vadd.f32 %v678, %v682
    %v685 = vtanh.pop %v684
    %v686 = vmul.f32 %v677, %v685
    %s687 = scalar_lea.vmem %s0, 48
    %v688 = vld [vmem:[%s687] sm:$0xff]
    %690 = vset.pattern.permute.xlu0 0
    %691 = vperm.xlu0 %690, %v688
    %v692 = vpop.permute.xlu0 %691
    %v694 = vmul.f32 %v692, %v30
    %v695 = vmul.f32 %v692, %v34
    %v696 = vadd.f32 %v694, %v42
    %v697 = vadd.f32 %v695, %v46
    %699 = vrot.lane.b32.xlu0 %v686, 64
    %v700 = vpop.permute.xlu0 %699
    %v701 = vsel %vm75, %v700, 0
    %703 = vmatprep.subr.mxu0 %v60
    %704 = vmatpush1.msra.mxu0 %v59
    %705 = vmatprep.subr.mxu0 %v62
    %706 = vmatpush1.msra.mxu0 %v61
    %707 = vmatprep.subr.mxu0 %v64
    %708 = vmatpush1.msra.mxu0 %v63
    %709 = vmatprep.subr.mxu0 %v66
    %710 = vmatpush1.msra.mxu0 %v65
    %711 = vmatprep.subr.mxu0 %v68
    %712 = vmatpush1.msra.mxu0 %v67
    %713 = vmatprep.subr.mxu0 %v70
    %714 = vmatpush1.msra.mxu0 %v69
    %715 = vmatprep.subr.mxu0 %v72
    %716 = vmatpush1.msra.mxu0 %v71
    %717 = vmatprep.subr.mxu0 %v74
    %718 = vmatpush1.msra.mxu0 %v73
    %719 = vmatprep.subr.mxu0 0.0
    %720 = vmatpush1.msra.mxu0 0.0
    %721 = vmatprep.subr.mxu0 0.0
    %722 = vmatpush1.msra.mxu0 0.0
    %723 = vmatprep.subr.mxu0 0.0
    %724 = vmatpush1.msra.mxu0 0.0
    %725 = vmatprep.subr.mxu0 0.0
    %726 = vmatpush1.msra.mxu0 0.0
    %727 = vmatprep.subr.mxu0 0.0
    %728 = vmatpush1.msra.mxu0 0.0
    %729 = vmatprep.subr.mxu0 0.0
    %730 = vmatpush1.msra.mxu0 0.0
    %731 = vmatprep.subr.mxu0 0.0
    %732 = vmatpush1.msra.mxu0 0.0
    %733 = vmatprep.subr.mxu0 0.0
    %734 = vmatpush1.msra.mxu0 0.0
    %735 = vmatprep.subr.mxu0 0.0
    %736 = vmatpush1.msra.mxu0 0.0
    %737 = vmatprep.subr.mxu0 0.0
    %738 = vmatpush1.msra.mxu0 0.0
    %739 = vmatprep.subr.mxu0 0.0
    %740 = vmatpush1.msra.mxu0 0.0
    %741 = vmatprep.subr.mxu0 0.0
    %742 = vmatpush1.msra.mxu0 0.0
    %743 = vmatprep.subr.mxu0 0.0
    %744 = vmatpush1.msra.mxu0 0.0
    %745 = vmatprep.subr.mxu0 0.0
    %746 = vmatpush1.msra.mxu0 0.0
    %747 = vmatprep.subr.mxu0 0.0
    %748 = vmatpush1.msra.mxu0 0.0
    %749 = vmatprep.subr.mxu0 0.0
    %750 = vmatpush1.msra.mxu0 0.0
    %751 = vmatprep.subr.mxu0 0.0
    %752 = vmatpush1.msra.mxu0 0.0
    %753 = vmatprep.subr.mxu0 0.0
    %754 = vmatpush1.msra.mxu0 0.0
    %755 = vmatprep.subr.mxu0 0.0
    %756 = vmatpush1.msra.mxu0 0.0
    %757 = vmatprep.subr.mxu0 0.0
    %758 = vmatpush1.msra.mxu0 0.0
    %759 = vmatprep.subr.mxu0 0.0
    %760 = vmatpush1.msra.mxu0 0.0
    %761 = vmatprep.subr.mxu0 0.0
    %762 = vmatpush1.msra.mxu0 0.0
    %763 = vmatprep.subr.mxu0 0.0
    %764 = vmatpush1.msra.mxu0 0.0
    %765 = vmatprep.subr.mxu0 0.0
    %766 = vmatpush1.msra.mxu0 0.0
    %767 = vmatprep.mubr.f32.mxu0 0.0
    %768 = vmatmul.mubr.f32.gmra.mrb[0].mxu0 %v701
    %v769 = vpop.f32.mrb[0].mxu0
    %v770 = vadd.f32 0.0, %v769
    %v771 = vpop.f32.mrb[0].mxu0
    %v772 = vadd.f32 0.0, %v771
    %773 = vdwg.mxu0
    %v774 = vadd.f32 %v696, %v770
    %v775 = vadd.f32 %v697, %v772
    %v776 = vtanh.pop %v774
    %v777 = vtanh.pop %v775
    %v778 = vmul.f32 %v776, 0.5
    %v779 = vadd.f32 %v778, 0.5
    %v780 = vmul.f32 %v777, 0.5
    %v781 = vadd.f32 %v780, 0.5
    %v782 = vmul.f32 %v779, %v684
    %v783 = vmul.f32 %v779, %v777
    %785 = vrot.lane.b32.xlu0 %v783, 64
    %v786 = vpop.permute.xlu0 %785
    %v788 = vadd.f32 %v782, %v786
    %v789 = vtanh.pop %v788
    %v790 = vmul.f32 %v781, %v789
    %s791 = scalar_lea.vmem %s0, 56
    %v792 = vld [vmem:[%s791] sm:$0xff]
    %794 = vset.pattern.permute.xlu0 0
    %795 = vperm.xlu0 %794, %v792
    %v796 = vpop.permute.xlu0 %795
    %v798 = vmul.f32 %v796, %v30
    %v799 = vmul.f32 %v796, %v34
    %v800 = vadd.f32 %v798, %v42
    %v801 = vadd.f32 %v799, %v46
    %803 = vrot.lane.b32.xlu0 %v790, 64
    %v804 = vpop.permute.xlu0 %803
    %v805 = vsel %vm75, %v804, 0
    %807 = vmatprep.subr.mxu0 %v60
    %808 = vmatpush1.msra.mxu0 %v59
    %809 = vmatprep.subr.mxu0 %v62
    %810 = vmatpush1.msra.mxu0 %v61
    %811 = vmatprep.subr.mxu0 %v64
    %812 = vmatpush1.msra.mxu0 %v63
    %813 = vmatprep.subr.mxu0 %v66
    %814 = vmatpush1.msra.mxu0 %v65
    %815 = vmatprep.subr.mxu0 %v68
    %816 = vmatpush1.msra.mxu0 %v67
    %817 = vmatprep.subr.mxu0 %v70
    %818 = vmatpush1.msra.mxu0 %v69
    %819 = vmatprep.subr.mxu0 %v72
    %820 = vmatpush1.msra.mxu0 %v71
    %821 = vmatprep.subr.mxu0 %v74
    %822 = vmatpush1.msra.mxu0 %v73
    %823 = vmatprep.subr.mxu0 0.0
    %824 = vmatpush1.msra.mxu0 0.0
    %825 = vmatprep.subr.mxu0 0.0
    %826 = vmatpush1.msra.mxu0 0.0
    %827 = vmatprep.subr.mxu0 0.0
    %828 = vmatpush1.msra.mxu0 0.0
    %829 = vmatprep.subr.mxu0 0.0
    %830 = vmatpush1.msra.mxu0 0.0
    %831 = vmatprep.subr.mxu0 0.0
    %832 = vmatpush1.msra.mxu0 0.0
    %833 = vmatprep.subr.mxu0 0.0
    %834 = vmatpush1.msra.mxu0 0.0
    %835 = vmatprep.subr.mxu0 0.0
    %836 = vmatpush1.msra.mxu0 0.0
    %837 = vmatprep.subr.mxu0 0.0
    %838 = vmatpush1.msra.mxu0 0.0
    %839 = vmatprep.subr.mxu0 0.0
    %840 = vmatpush1.msra.mxu0 0.0
    %841 = vmatprep.subr.mxu0 0.0
    %842 = vmatpush1.msra.mxu0 0.0
    %843 = vmatprep.subr.mxu0 0.0
    %844 = vmatpush1.msra.mxu0 0.0
    %845 = vmatprep.subr.mxu0 0.0
    %846 = vmatpush1.msra.mxu0 0.0
    %847 = vmatprep.subr.mxu0 0.0
    %848 = vmatpush1.msra.mxu0 0.0
    %849 = vmatprep.subr.mxu0 0.0
    %850 = vmatpush1.msra.mxu0 0.0
    %851 = vmatprep.subr.mxu0 0.0
    %852 = vmatpush1.msra.mxu0 0.0
    %853 = vmatprep.subr.mxu0 0.0
    %854 = vmatpush1.msra.mxu0 0.0
    %855 = vmatprep.subr.mxu0 0.0
    %856 = vmatpush1.msra.mxu0 0.0
    %857 = vmatprep.subr.mxu0 0.0
    %858 = vmatpush1.msra.mxu0 0.0
    %859 = vmatprep.subr.mxu0 0.0
    %860 = vmatpush1.msra.mxu0 0.0
    %861 = vmatprep.subr.mxu0 0.0
    %862 = vmatpush1.msra.mxu0 0.0
    %863 = vmatprep.subr.mxu0 0.0
    %864 = vmatpush1.msra.mxu0 0.0
    %865 = vmatprep.subr.mxu0 0.0
    %866 = vmatpush1.msra.mxu0 0.0
    %867 = vmatprep.subr.mxu0 0.0
    %868 = vmatpush1.msra.mxu0 0.0
    %869 = vmatprep.subr.mxu0 0.0
    %870 = vmatpush1.msra.mxu0 0.0
    %871 = vmatprep.mubr.f32.mxu0 0.0
    %872 = vmatmul.mubr.f32.gmra.mrb[0].mxu0 %v805
    %v873 = vpop.f32.mrb[0].mxu0
    %v874 = vadd.f32 0.0, %v873
    %v875 = vpop.f32.mrb[0].mxu0
    %v876 = vadd.f32 0.0, %v875
    %877 = vdwg.mxu0
    %v878 = vadd.f32 %v800, %v874
    %v879 = vadd.f32 %v801, %v876
    %v880 = vtanh.pop %v878
    %v881 = vtanh.pop %v879
    %v882 = vmul.f32 %v880, 0.5
    %v883 = vadd.f32 %v882, 0.5
    %v884 = vmul.f32 %v881, 0.5
    %v885 = vadd.f32 %v884, 0.5
    %v886 = vmul.f32 %v883, %v788
    %v887 = vmul.f32 %v883, %v881
    %889 = vrot.lane.b32.xlu0 %v887, 64
    %v890 = vpop.permute.xlu0 %889
    %v892 = vadd.f32 %v886, %v890
    %v893 = vtanh.pop %v892
    %v894 = vmul.f32 %v885, %v893
    %s895 = scalar_lea.vmem %s0, 64
    %v896 = vld [vmem:[%s895] sm:$0xff]
    %898 = vset.pattern.permute.xlu0 0
    %899 = vperm.xlu0 %898, %v896
    %v900 = vpop.permute.xlu0 %899
    %v902 = vmul.f32 %v900, %v30
    %v903 = vmul.f32 %v900, %v34
    %v904 = vadd.f32 %v902, %v42
    %v905 = vadd.f32 %v903, %v46
    %907 = vrot.lane.b32.xlu0 %v894, 64
    %v908 = vpop.permute.xlu0 %907
    %v909 = vsel %vm75, %v908, 0
    %911 = vmatprep.subr.mxu0 %v60
    %912 = vmatpush1.msra.mxu0 %v59
    %913 = vmatprep.subr.mxu0 %v62
    %914 = vmatpush1.msra.mxu0 %v61
    %915 = vmatprep.subr.mxu0 %v64
    %916 = vmatpush1.msra.mxu0 %v63
    %917 = vmatprep.subr.mxu0 %v66
    %918 = vmatpush1.msra.mxu0 %v65
    %919 = vmatprep.subr.mxu0 %v68
    %920 = vmatpush1.msra.mxu0 %v67
    %921 = vmatprep.subr.mxu0 %v70
    %922 = vmatpush1.msra.mxu0 %v69
    %923 = vmatprep.subr.mxu0 %v72
    %924 = vmatpush1.msra.mxu0 %v71
    %925 = vmatprep.subr.mxu0 %v74
    %926 = vmatpush1.msra.mxu0 %v73
    %927 = vmatprep.subr.mxu0 0.0
    %928 = vmatpush1.msra.mxu0 0.0
    %929 = vmatprep.subr.mxu0 0.0
    %930 = vmatpush1.msra.mxu0 0.0
    %931 = vmatprep.subr.mxu0 0.0
    %932 = vmatpush1.msra.mxu0 0.0
    %933 = vmatprep.subr.mxu0 0.0
    %934 = vmatpush1.msra.mxu0 0.0
    %935 = vmatprep.subr.mxu0 0.0
    %936 = vmatpush1.msra.mxu0 0.0
    %937 = vmatprep.subr.mxu0 0.0
    %938 = vmatpush1.msra.mxu0 0.0
    %939 = vmatprep.subr.mxu0 0.0
    %940 = vmatpush1.msra.mxu0 0.0
    %941 = vmatprep.subr.mxu0 0.0
    %942 = vmatpush1.msra.mxu0 0.0
    %943 = vmatprep.subr.mxu0 0.0
    %944 = vmatpush1.msra.mxu0 0.0
    %945 = vmatprep.subr.mxu0 0.0
    %946 = vmatpush1.msra.mxu0 0.0
    %947 = vmatprep.subr.mxu0 0.0
    %948 = vmatpush1.msra.mxu0 0.0
    %949 = vmatprep.subr.mxu0 0.0
    %950 = vmatpush1.msra.mxu0 0.0
    %951 = vmatprep.subr.mxu0 0.0
    %952 = vmatpush1.msra.mxu0 0.0
    %953 = vmatprep.subr.mxu0 0.0
    %954 = vmatpush1.msra.mxu0 0.0
    %955 = vmatprep.subr.mxu0 0.0
    %956 = vmatpush1.msra.mxu0 0.0
    %957 = vmatprep.subr.mxu0 0.0
    %958 = vmatpush1.msra.mxu0 0.0
    %959 = vmatprep.subr.mxu0 0.0
    %960 = vmatpush1.msra.mxu0 0.0
    %961 = vmatprep.subr.mxu0 0.0
    %962 = vmatpush1.msra.mxu0 0.0
    %963 = vmatprep.subr.mxu0 0.0
    %964 = vmatpush1.msra.mxu0 0.0
    %965 = vmatprep.subr.mxu0 0.0
    %966 = vmatpush1.msra.mxu0 0.0
    %967 = vmatprep.subr.mxu0 0.0
    %968 = vmatpush1.msra.mxu0 0.0
    %969 = vmatprep.subr.mxu0 0.0
    %970 = vmatpush1.msra.mxu0 0.0
    %971 = vmatprep.subr.mxu0 0.0
    %972 = vmatpush1.msra.mxu0 0.0
    %973 = vmatprep.subr.mxu0 0.0
    %974 = vmatpush1.msra.mxu0 0.0
    %975 = vmatprep.mubr.f32.mxu0 0.0
    %976 = vmatmul.mubr.f32.gmra.mrb[0].mxu0 %v909
    %v977 = vpop.f32.mrb[0].mxu0
    %v978 = vadd.f32 0.0, %v977
    %v979 = vpop.f32.mrb[0].mxu0
    %v980 = vadd.f32 0.0, %v979
    %981 = vdwg.mxu0
    %v982 = vadd.f32 %v904, %v978
    %v983 = vadd.f32 %v905, %v980
    %v984 = vtanh.pop %v982
    %v985 = vtanh.pop %v983
    %v986 = vmul.f32 %v984, 0.5
    %v987 = vadd.f32 %v986, 0.5
    %v988 = vmul.f32 %v985, 0.5
    %v989 = vadd.f32 %v988, 0.5
    %v990 = vmul.f32 %v987, %v892
    %v991 = vmul.f32 %v987, %v985
    %993 = vrot.lane.b32.xlu0 %v991, 64
    %v994 = vpop.permute.xlu0 %993
    %v996 = vadd.f32 %v990, %v994
    %v997 = vtanh.pop %v996
    %v998 = vmul.f32 %v989, %v997
    %s999 = scalar_lea.vmem %s0, 72
    %v1000 = vld [vmem:[%s999] sm:$0xff]
    %1002 = vset.pattern.permute.xlu0 0
    %1003 = vperm.xlu0 %1002, %v1000
    %v1004 = vpop.permute.xlu0 %1003
    %v1006 = vmul.f32 %v1004, %v30
    %v1007 = vmul.f32 %v1004, %v34
    %v1008 = vadd.f32 %v1006, %v42
    %v1009 = vadd.f32 %v1007, %v46
    %1011 = vrot.lane.b32.xlu0 %v998, 64
    %v1012 = vpop.permute.xlu0 %1011
    %v1013 = vsel %vm75, %v1012, 0
    %1015 = vmatprep.subr.mxu0 %v60
    %1016 = vmatpush1.msra.mxu0 %v59
    %1017 = vmatprep.subr.mxu0 %v62
    %1018 = vmatpush1.msra.mxu0 %v61
    %1019 = vmatprep.subr.mxu0 %v64
    %1020 = vmatpush1.msra.mxu0 %v63
    %1021 = vmatprep.subr.mxu0 %v66
    %1022 = vmatpush1.msra.mxu0 %v65
    %1023 = vmatprep.subr.mxu0 %v68
    %1024 = vmatpush1.msra.mxu0 %v67
    %1025 = vmatprep.subr.mxu0 %v70
    %1026 = vmatpush1.msra.mxu0 %v69
    %1027 = vmatprep.subr.mxu0 %v72
    %1028 = vmatpush1.msra.mxu0 %v71
    %1029 = vmatprep.subr.mxu0 %v74
    %1030 = vmatpush1.msra.mxu0 %v73
    %1031 = vmatprep.subr.mxu0 0.0
    %1032 = vmatpush1.msra.mxu0 0.0
    %1033 = vmatprep.subr.mxu0 0.0
    %1034 = vmatpush1.msra.mxu0 0.0
    %1035 = vmatprep.subr.mxu0 0.0
    %1036 = vmatpush1.msra.mxu0 0.0
    %1037 = vmatprep.subr.mxu0 0.0
    %1038 = vmatpush1.msra.mxu0 0.0
    %1039 = vmatprep.subr.mxu0 0.0
    %1040 = vmatpush1.msra.mxu0 0.0
    %1041 = vmatprep.subr.mxu0 0.0
    %1042 = vmatpush1.msra.mxu0 0.0
    %1043 = vmatprep.subr.mxu0 0.0
    %1044 = vmatpush1.msra.mxu0 0.0
    %1045 = vmatprep.subr.mxu0 0.0
    %1046 = vmatpush1.msra.mxu0 0.0
    %1047 = vmatprep.subr.mxu0 0.0
    %1048 = vmatpush1.msra.mxu0 0.0
    %1049 = vmatprep.subr.mxu0 0.0
    %1050 = vmatpush1.msra.mxu0 0.0
    %1051 = vmatprep.subr.mxu0 0.0
    %1052 = vmatpush1.msra.mxu0 0.0
    %1053 = vmatprep.subr.mxu0 0.0
    %1054 = vmatpush1.msra.mxu0 0.0
    %1055 = vmatprep.subr.mxu0 0.0
    %1056 = vmatpush1.msra.mxu0 0.0
    %1057 = vmatprep.subr.mxu0 0.0
    %1058 = vmatpush1.msra.mxu0 0.0
    %1059 = vmatprep.subr.mxu0 0.0
    %1060 = vmatpush1.msra.mxu0 0.0
    %1061 = vmatprep.subr.mxu0 0.0
    %1062 = vmatpush1.msra.mxu0 0.0
    %1063 = vmatprep.subr.mxu0 0.0
    %1064 = vmatpush1.msra.mxu0 0.0
    %1065 = vmatprep.subr.mxu0 0.0
    %1066 = vmatpush1.msra.mxu0 0.0
    %1067 = vmatprep.subr.mxu0 0.0
    %1068 = vmatpush1.msra.mxu0 0.0
    %1069 = vmatprep.subr.mxu0 0.0
    %1070 = vmatpush1.msra.mxu0 0.0
    %1071 = vmatprep.subr.mxu0 0.0
    %1072 = vmatpush1.msra.mxu0 0.0
    %1073 = vmatprep.subr.mxu0 0.0
    %1074 = vmatpush1.msra.mxu0 0.0
    %1075 = vmatprep.subr.mxu0 0.0
    %1076 = vmatpush1.msra.mxu0 0.0
    %1077 = vmatprep.subr.mxu0 0.0
    %1078 = vmatpush1.msra.mxu0 0.0
    %1079 = vmatprep.mubr.f32.mxu0 0.0
    %1080 = vmatmul.mubr.f32.gmra.mrb[0].mxu0 %v1013
    %v1081 = vpop.f32.mrb[0].mxu0
    %v1082 = vadd.f32 0.0, %v1081
    %v1083 = vpop.f32.mrb[0].mxu0
    %v1084 = vadd.f32 0.0, %v1083
    %1085 = vdwg.mxu0
    %v1086 = vadd.f32 %v1008, %v1082
    %v1087 = vadd.f32 %v1009, %v1084
    %v1088 = vtanh.pop %v1086
    %v1089 = vtanh.pop %v1087
    %v1090 = vmul.f32 %v1088, 0.5
    %v1091 = vadd.f32 %v1090, 0.5
    %v1092 = vmul.f32 %v1089, 0.5
    %v1093 = vadd.f32 %v1092, 0.5
    %v1094 = vmul.f32 %v1091, %v996
    %v1095 = vmul.f32 %v1091, %v1089
    %1097 = vrot.lane.b32.xlu0 %v1095, 64
    %v1098 = vpop.permute.xlu0 %1097
    %v1100 = vadd.f32 %v1094, %v1098
    %v1101 = vtanh.pop %v1100
    %v1102 = vmul.f32 %v1093, %v1101
    %s1103 = scalar_lea.vmem %s0, 80
    %v1104 = vld [vmem:[%s1103] sm:$0xff]
    %1106 = vset.pattern.permute.xlu0 0
    %1107 = vperm.xlu0 %1106, %v1104
    %v1108 = vpop.permute.xlu0 %1107
    %v1110 = vmul.f32 %v1108, %v30
    %v1111 = vmul.f32 %v1108, %v34
    %v1112 = vadd.f32 %v1110, %v42
    %v1113 = vadd.f32 %v1111, %v46
    %1115 = vrot.lane.b32.xlu0 %v1102, 64
    %v1116 = vpop.permute.xlu0 %1115
    %v1117 = vsel %vm75, %v1116, 0
    %1119 = vmatprep.subr.mxu0 %v60
    %1120 = vmatpush1.msra.mxu0 %v59
    %1121 = vmatprep.subr.mxu0 %v62
    %1122 = vmatpush1.msra.mxu0 %v61
    %1123 = vmatprep.subr.mxu0 %v64
    %1124 = vmatpush1.msra.mxu0 %v63
    %1125 = vmatprep.subr.mxu0 %v66
    %1126 = vmatpush1.msra.mxu0 %v65
    %1127 = vmatprep.subr.mxu0 %v68
    %1128 = vmatpush1.msra.mxu0 %v67
    %1129 = vmatprep.subr.mxu0 %v70
    %1130 = vmatpush1.msra.mxu0 %v69
    %1131 = vmatprep.subr.mxu0 %v72
    %1132 = vmatpush1.msra.mxu0 %v71
    %1133 = vmatprep.subr.mxu0 %v74
    %1134 = vmatpush1.msra.mxu0 %v73
    %1135 = vmatprep.subr.mxu0 0.0
    %1136 = vmatpush1.msra.mxu0 0.0
    %1137 = vmatprep.subr.mxu0 0.0
    %1138 = vmatpush1.msra.mxu0 0.0
    %1139 = vmatprep.subr.mxu0 0.0
    %1140 = vmatpush1.msra.mxu0 0.0
    %1141 = vmatprep.subr.mxu0 0.0
    %1142 = vmatpush1.msra.mxu0 0.0
    %1143 = vmatprep.subr.mxu0 0.0
    %1144 = vmatpush1.msra.mxu0 0.0
    %1145 = vmatprep.subr.mxu0 0.0
    %1146 = vmatpush1.msra.mxu0 0.0
    %1147 = vmatprep.subr.mxu0 0.0
    %1148 = vmatpush1.msra.mxu0 0.0
    %1149 = vmatprep.subr.mxu0 0.0
    %1150 = vmatpush1.msra.mxu0 0.0
    %1151 = vmatprep.subr.mxu0 0.0
    %1152 = vmatpush1.msra.mxu0 0.0
    %1153 = vmatprep.subr.mxu0 0.0
    %1154 = vmatpush1.msra.mxu0 0.0
    %1155 = vmatprep.subr.mxu0 0.0
    %1156 = vmatpush1.msra.mxu0 0.0
    %1157 = vmatprep.subr.mxu0 0.0
    %1158 = vmatpush1.msra.mxu0 0.0
    %1159 = vmatprep.subr.mxu0 0.0
    %1160 = vmatpush1.msra.mxu0 0.0
    %1161 = vmatprep.subr.mxu0 0.0
    %1162 = vmatpush1.msra.mxu0 0.0
    %1163 = vmatprep.subr.mxu0 0.0
    %1164 = vmatpush1.msra.mxu0 0.0
    %1165 = vmatprep.subr.mxu0 0.0
    %1166 = vmatpush1.msra.mxu0 0.0
    %1167 = vmatprep.subr.mxu0 0.0
    %1168 = vmatpush1.msra.mxu0 0.0
    %1169 = vmatprep.subr.mxu0 0.0
    %1170 = vmatpush1.msra.mxu0 0.0
    %1171 = vmatprep.subr.mxu0 0.0
    %1172 = vmatpush1.msra.mxu0 0.0
    %1173 = vmatprep.subr.mxu0 0.0
    %1174 = vmatpush1.msra.mxu0 0.0
    %1175 = vmatprep.subr.mxu0 0.0
    %1176 = vmatpush1.msra.mxu0 0.0
    %1177 = vmatprep.subr.mxu0 0.0
    %1178 = vmatpush1.msra.mxu0 0.0
    %1179 = vmatprep.subr.mxu0 0.0
    %1180 = vmatpush1.msra.mxu0 0.0
    %1181 = vmatprep.subr.mxu0 0.0
    %1182 = vmatpush1.msra.mxu0 0.0
    %1183 = vmatprep.mubr.f32.mxu0 0.0
    %1184 = vmatmul.mubr.f32.gmra.mrb[0].mxu0 %v1117
    %v1185 = vpop.f32.mrb[0].mxu0
    %v1186 = vadd.f32 0.0, %v1185
    %v1187 = vpop.f32.mrb[0].mxu0
    %v1188 = vadd.f32 0.0, %v1187
    %1189 = vdwg.mxu0
    %v1190 = vadd.f32 %v1112, %v1186
    %v1191 = vadd.f32 %v1113, %v1188
    %v1192 = vtanh.pop %v1190
    %v1193 = vtanh.pop %v1191
    %v1194 = vmul.f32 %v1192, 0.5
    %v1195 = vadd.f32 %v1194, 0.5
    %v1196 = vmul.f32 %v1193, 0.5
    %v1197 = vadd.f32 %v1196, 0.5
    %v1198 = vmul.f32 %v1195, %v1100
    %v1199 = vmul.f32 %v1195, %v1193
    %1201 = vrot.lane.b32.xlu0 %v1199, 64
    %v1202 = vpop.permute.xlu0 %1201
    %v1204 = vadd.f32 %v1198, %v1202
    %v1205 = vtanh.pop %v1204
    %v1206 = vmul.f32 %v1197, %v1205
    %s1207 = scalar_lea.vmem %s0, 88
    %v1208 = vld [vmem:[%s1207] sm:$0xff]
    %1210 = vset.pattern.permute.xlu0 0
    %1211 = vperm.xlu0 %1210, %v1208
    %v1212 = vpop.permute.xlu0 %1211
    %v1214 = vmul.f32 %v1212, %v30
    %v1215 = vmul.f32 %v1212, %v34
    %v1216 = vadd.f32 %v1214, %v42
    %v1217 = vadd.f32 %v1215, %v46
    %1219 = vrot.lane.b32.xlu0 %v1206, 64
    %v1220 = vpop.permute.xlu0 %1219
    %v1221 = vsel %vm75, %v1220, 0
    %1223 = vmatprep.subr.mxu0 %v60
    %1224 = vmatpush1.msra.mxu0 %v59
    %1225 = vmatprep.subr.mxu0 %v62
    %1226 = vmatpush1.msra.mxu0 %v61
    %1227 = vmatprep.subr.mxu0 %v64
    %1228 = vmatpush1.msra.mxu0 %v63
    %1229 = vmatprep.subr.mxu0 %v66
    %1230 = vmatpush1.msra.mxu0 %v65
    %1231 = vmatprep.subr.mxu0 %v68
    %1232 = vmatpush1.msra.mxu0 %v67
    %1233 = vmatprep.subr.mxu0 %v70
    %1234 = vmatpush1.msra.mxu0 %v69
    %1235 = vmatprep.subr.mxu0 %v72
    %1236 = vmatpush1.msra.mxu0 %v71
    %1237 = vmatprep.subr.mxu0 %v74
    %1238 = vmatpush1.msra.mxu0 %v73
    %1239 = vmatprep.subr.mxu0 0.0
    %1240 = vmatpush1.msra.mxu0 0.0
    %1241 = vmatprep.subr.mxu0 0.0
    %1242 = vmatpush1.msra.mxu0 0.0
    %1243 = vmatprep.subr.mxu0 0.0
    %1244 = vmatpush1.msra.mxu0 0.0
    %1245 = vmatprep.subr.mxu0 0.0
    %1246 = vmatpush1.msra.mxu0 0.0
    %1247 = vmatprep.subr.mxu0 0.0
    %1248 = vmatpush1.msra.mxu0 0.0
    %1249 = vmatprep.subr.mxu0 0.0
    %1250 = vmatpush1.msra.mxu0 0.0
    %1251 = vmatprep.subr.mxu0 0.0
    %1252 = vmatpush1.msra.mxu0 0.0
    %1253 = vmatprep.subr.mxu0 0.0
    %1254 = vmatpush1.msra.mxu0 0.0
    %1255 = vmatprep.subr.mxu0 0.0
    %1256 = vmatpush1.msra.mxu0 0.0
    %1257 = vmatprep.subr.mxu0 0.0
    %1258 = vmatpush1.msra.mxu0 0.0
    %1259 = vmatprep.subr.mxu0 0.0
    %1260 = vmatpush1.msra.mxu0 0.0
    %1261 = vmatprep.subr.mxu0 0.0
    %1262 = vmatpush1.msra.mxu0 0.0
    %1263 = vmatprep.subr.mxu0 0.0
    %1264 = vmatpush1.msra.mxu0 0.0
    %1265 = vmatprep.subr.mxu0 0.0
    %1266 = vmatpush1.msra.mxu0 0.0
    %1267 = vmatprep.subr.mxu0 0.0
    %1268 = vmatpush1.msra.mxu0 0.0
    %1269 = vmatprep.subr.mxu0 0.0
    %1270 = vmatpush1.msra.mxu0 0.0
    %1271 = vmatprep.subr.mxu0 0.0
    %1272 = vmatpush1.msra.mxu0 0.0
    %1273 = vmatprep.subr.mxu0 0.0
    %1274 = vmatpush1.msra.mxu0 0.0
    %1275 = vmatprep.subr.mxu0 0.0
    %1276 = vmatpush1.msra.mxu0 0.0
    %1277 = vmatprep.subr.mxu0 0.0
    %1278 = vmatpush1.msra.mxu0 0.0
    %1279 = vmatprep.subr.mxu0 0.0
    %1280 = vmatpush1.msra.mxu0 0.0
    %1281 = vmatprep.subr.mxu0 0.0
    %1282 = vmatpush1.msra.mxu0 0.0
    %1283 = vmatprep.subr.mxu0 0.0
    %1284 = vmatpush1.msra.mxu0 0.0
    %1285 = vmatprep.subr.mxu0 0.0
    %1286 = vmatpush1.msra.mxu0 0.0
    %1287 = vmatprep.mubr.f32.mxu0 0.0
    %1288 = vmatmul.mubr.f32.gmra.mrb[0].mxu0 %v1221
    %v1289 = vpop.f32.mrb[0].mxu0
    %v1290 = vadd.f32 0.0, %v1289
    %v1291 = vpop.f32.mrb[0].mxu0
    %v1292 = vadd.f32 0.0, %v1291
    %1293 = vdwg.mxu0
    %v1294 = vadd.f32 %v1216, %v1290
    %v1295 = vadd.f32 %v1217, %v1292
    %v1296 = vtanh.pop %v1294
    %v1297 = vtanh.pop %v1295
    %v1298 = vmul.f32 %v1296, 0.5
    %v1299 = vadd.f32 %v1298, 0.5
    %v1300 = vmul.f32 %v1297, 0.5
    %v1301 = vadd.f32 %v1300, 0.5
    %v1302 = vmul.f32 %v1299, %v1204
    %v1303 = vmul.f32 %v1299, %v1297
    %1305 = vrot.lane.b32.xlu0 %v1303, 64
    %v1306 = vpop.permute.xlu0 %1305
    %v1308 = vadd.f32 %v1302, %v1306
    %v1309 = vtanh.pop %v1308
    %v1310 = vmul.f32 %v1301, %v1309
    %s1311 = scalar_lea.vmem %s0, 96
    %v1312 = vld [vmem:[%s1311] sm:$0xff]
    %1314 = vset.pattern.permute.xlu0 0
    %1315 = vperm.xlu0 %1314, %v1312
    %v1316 = vpop.permute.xlu0 %1315
    %v1318 = vmul.f32 %v1316, %v30
    %v1319 = vmul.f32 %v1316, %v34
    %v1320 = vadd.f32 %v1318, %v42
    %v1321 = vadd.f32 %v1319, %v46
    %1323 = vrot.lane.b32.xlu0 %v1310, 64
    %v1324 = vpop.permute.xlu0 %1323
    %v1325 = vsel %vm75, %v1324, 0
    %1327 = vmatprep.subr.mxu0 %v60
    %1328 = vmatpush1.msra.mxu0 %v59
    %1329 = vmatprep.subr.mxu0 %v62
    %1330 = vmatpush1.msra.mxu0 %v61
    %1331 = vmatprep.subr.mxu0 %v64
    %1332 = vmatpush1.msra.mxu0 %v63
    %1333 = vmatprep.subr.mxu0 %v66
    %1334 = vmatpush1.msra.mxu0 %v65
    %1335 = vmatprep.subr.mxu0 %v68
    %1336 = vmatpush1.msra.mxu0 %v67
    %1337 = vmatprep.subr.mxu0 %v70
    %1338 = vmatpush1.msra.mxu0 %v69
    %1339 = vmatprep.subr.mxu0 %v72
    %1340 = vmatpush1.msra.mxu0 %v71
    %1341 = vmatprep.subr.mxu0 %v74
    %1342 = vmatpush1.msra.mxu0 %v73
    %1343 = vmatprep.subr.mxu0 0.0
    %1344 = vmatpush1.msra.mxu0 0.0
    %1345 = vmatprep.subr.mxu0 0.0
    %1346 = vmatpush1.msra.mxu0 0.0
    %1347 = vmatprep.subr.mxu0 0.0
    %1348 = vmatpush1.msra.mxu0 0.0
    %1349 = vmatprep.subr.mxu0 0.0
    %1350 = vmatpush1.msra.mxu0 0.0
    %1351 = vmatprep.subr.mxu0 0.0
    %1352 = vmatpush1.msra.mxu0 0.0
    %1353 = vmatprep.subr.mxu0 0.0
    %1354 = vmatpush1.msra.mxu0 0.0
    %1355 = vmatprep.subr.mxu0 0.0
    %1356 = vmatpush1.msra.mxu0 0.0
    %1357 = vmatprep.subr.mxu0 0.0
    %1358 = vmatpush1.msra.mxu0 0.0
    %1359 = vmatprep.subr.mxu0 0.0
    %1360 = vmatpush1.msra.mxu0 0.0
    %1361 = vmatprep.subr.mxu0 0.0
    %1362 = vmatpush1.msra.mxu0 0.0
    %1363 = vmatprep.subr.mxu0 0.0
    %1364 = vmatpush1.msra.mxu0 0.0
    %1365 = vmatprep.subr.mxu0 0.0
    %1366 = vmatpush1.msra.mxu0 0.0
    %1367 = vmatprep.subr.mxu0 0.0
    %1368 = vmatpush1.msra.mxu0 0.0
    %1369 = vmatprep.subr.mxu0 0.0
    %1370 = vmatpush1.msra.mxu0 0.0
    %1371 = vmatprep.subr.mxu0 0.0
    %1372 = vmatpush1.msra.mxu0 0.0
    %1373 = vmatprep.subr.mxu0 0.0
    %1374 = vmatpush1.msra.mxu0 0.0
    %1375 = vmatprep.subr.mxu0 0.0
    %1376 = vmatpush1.msra.mxu0 0.0
    %1377 = vmatprep.subr.mxu0 0.0
    %1378 = vmatpush1.msra.mxu0 0.0
    %1379 = vmatprep.subr.mxu0 0.0
    %1380 = vmatpush1.msra.mxu0 0.0
    %1381 = vmatprep.subr.mxu0 0.0
    %1382 = vmatpush1.msra.mxu0 0.0
    %1383 = vmatprep.subr.mxu0 0.0
    %1384 = vmatpush1.msra.mxu0 0.0
    %1385 = vmatprep.subr.mxu0 0.0
    %1386 = vmatpush1.msra.mxu0 0.0
    %1387 = vmatprep.subr.mxu0 0.0
    %1388 = vmatpush1.msra.mxu0 0.0
    %1389 = vmatprep.subr.mxu0 0.0
    %1390 = vmatpush1.msra.mxu0 0.0
    %1391 = vmatprep.mubr.f32.mxu0 0.0
    %1392 = vmatmul.mubr.f32.gmra.mrb[0].mxu0 %v1325
    %v1393 = vpop.f32.mrb[0].mxu0
    %v1394 = vadd.f32 0.0, %v1393
    %v1395 = vpop.f32.mrb[0].mxu0
    %v1396 = vadd.f32 0.0, %v1395
    %1397 = vdwg.mxu0
    %v1398 = vadd.f32 %v1320, %v1394
    %v1399 = vadd.f32 %v1321, %v1396
    %v1400 = vtanh.pop %v1398
    %v1401 = vtanh.pop %v1399
    %v1402 = vmul.f32 %v1400, 0.5
    %v1403 = vadd.f32 %v1402, 0.5
    %v1404 = vmul.f32 %v1401, 0.5
    %v1405 = vadd.f32 %v1404, 0.5
    %v1406 = vmul.f32 %v1403, %v1308
    %v1407 = vmul.f32 %v1403, %v1401
    %1409 = vrot.lane.b32.xlu0 %v1407, 64
    %v1410 = vpop.permute.xlu0 %1409
    %v1412 = vadd.f32 %v1406, %v1410
    %v1413 = vtanh.pop %v1412
    %v1414 = vmul.f32 %v1405, %v1413
    %s1415 = scalar_lea.vmem %s0, 104
    %v1416 = vld [vmem:[%s1415] sm:$0xff]
    %1418 = vset.pattern.permute.xlu0 0
    %1419 = vperm.xlu0 %1418, %v1416
    %v1420 = vpop.permute.xlu0 %1419
    %v1422 = vmul.f32 %v1420, %v30
    %v1423 = vmul.f32 %v1420, %v34
    %v1424 = vadd.f32 %v1422, %v42
    %v1425 = vadd.f32 %v1423, %v46
    %1427 = vrot.lane.b32.xlu0 %v1414, 64
    %v1428 = vpop.permute.xlu0 %1427
    %v1429 = vsel %vm75, %v1428, 0
    %1431 = vmatprep.subr.mxu0 %v60
    %1432 = vmatpush1.msra.mxu0 %v59
    %1433 = vmatprep.subr.mxu0 %v62
    %1434 = vmatpush1.msra.mxu0 %v61
    %1435 = vmatprep.subr.mxu0 %v64
    %1436 = vmatpush1.msra.mxu0 %v63
    %1437 = vmatprep.subr.mxu0 %v66
    %1438 = vmatpush1.msra.mxu0 %v65
    %1439 = vmatprep.subr.mxu0 %v68
    %1440 = vmatpush1.msra.mxu0 %v67
    %1441 = vmatprep.subr.mxu0 %v70
    %1442 = vmatpush1.msra.mxu0 %v69
    %1443 = vmatprep.subr.mxu0 %v72
    %1444 = vmatpush1.msra.mxu0 %v71
    %1445 = vmatprep.subr.mxu0 %v74
    %1446 = vmatpush1.msra.mxu0 %v73
    %1447 = vmatprep.subr.mxu0 0.0
    %1448 = vmatpush1.msra.mxu0 0.0
    %1449 = vmatprep.subr.mxu0 0.0
    %1450 = vmatpush1.msra.mxu0 0.0
    %1451 = vmatprep.subr.mxu0 0.0
    %1452 = vmatpush1.msra.mxu0 0.0
    %1453 = vmatprep.subr.mxu0 0.0
    %1454 = vmatpush1.msra.mxu0 0.0
    %1455 = vmatprep.subr.mxu0 0.0
    %1456 = vmatpush1.msra.mxu0 0.0
    %1457 = vmatprep.subr.mxu0 0.0
    %1458 = vmatpush1.msra.mxu0 0.0
    %1459 = vmatprep.subr.mxu0 0.0
    %1460 = vmatpush1.msra.mxu0 0.0
    %1461 = vmatprep.subr.mxu0 0.0
    %1462 = vmatpush1.msra.mxu0 0.0
    %1463 = vmatprep.subr.mxu0 0.0
    %1464 = vmatpush1.msra.mxu0 0.0
    %1465 = vmatprep.subr.mxu0 0.0
    %1466 = vmatpush1.msra.mxu0 0.0
    %1467 = vmatprep.subr.mxu0 0.0
    %1468 = vmatpush1.msra.mxu0 0.0
    %1469 = vmatprep.subr.mxu0 0.0
    %1470 = vmatpush1.msra.mxu0 0.0
    %1471 = vmatprep.subr.mxu0 0.0
    %1472 = vmatpush1.msra.mxu0 0.0
    %1473 = vmatprep.subr.mxu0 0.0
    %1474 = vmatpush1.msra.mxu0 0.0
    %1475 = vmatprep.subr.mxu0 0.0
    %1476 = vmatpush1.msra.mxu0 0.0
    %1477 = vmatprep.subr.mxu0 0.0
    %1478 = vmatpush1.msra.mxu0 0.0
    %1479 = vmatprep.subr.mxu0 0.0
    %1480 = vmatpush1.msra.mxu0 0.0
    %1481 = vmatprep.subr.mxu0 0.0
    %1482 = vmatpush1.msra.mxu0 0.0
    %1483 = vmatprep.subr.mxu0 0.0
    %1484 = vmatpush1.msra.mxu0 0.0
    %1485 = vmatprep.subr.mxu0 0.0
    %1486 = vmatpush1.msra.mxu0 0.0
    %1487 = vmatprep.subr.mxu0 0.0
    %1488 = vmatpush1.msra.mxu0 0.0
    %1489 = vmatprep.subr.mxu0 0.0
    %1490 = vmatpush1.msra.mxu0 0.0
    %1491 = vmatprep.subr.mxu0 0.0
    %1492 = vmatpush1.msra.mxu0 0.0
    %1493 = vmatprep.subr.mxu0 0.0
    %1494 = vmatpush1.msra.mxu0 0.0
    %1495 = vmatprep.mubr.f32.mxu0 0.0
    %1496 = vmatmul.mubr.f32.gmra.mrb[0].mxu0 %v1429
    %v1497 = vpop.f32.mrb[0].mxu0
    %v1498 = vadd.f32 0.0, %v1497
    %v1499 = vpop.f32.mrb[0].mxu0
    %v1500 = vadd.f32 0.0, %v1499
    %1501 = vdwg.mxu0
    %v1502 = vadd.f32 %v1424, %v1498
    %v1503 = vadd.f32 %v1425, %v1500
    %v1504 = vtanh.pop %v1502
    %v1505 = vtanh.pop %v1503
    %v1506 = vmul.f32 %v1504, 0.5
    %v1507 = vadd.f32 %v1506, 0.5
    %v1508 = vmul.f32 %v1505, 0.5
    %v1509 = vadd.f32 %v1508, 0.5
    %v1510 = vmul.f32 %v1507, %v1412
    %v1511 = vmul.f32 %v1507, %v1505
    %1513 = vrot.lane.b32.xlu0 %v1511, 64
    %v1514 = vpop.permute.xlu0 %1513
    %v1516 = vadd.f32 %v1510, %v1514
    %v1517 = vtanh.pop %v1516
    %v1518 = vmul.f32 %v1509, %v1517
    %s1519 = scalar_lea.vmem %s0, 112
    %v1520 = vld [vmem:[%s1519] sm:$0xff]
    %1522 = vset.pattern.permute.xlu0 0
    %1523 = vperm.xlu0 %1522, %v1520
    %v1524 = vpop.permute.xlu0 %1523
    %v1526 = vmul.f32 %v1524, %v30
    %v1527 = vmul.f32 %v1524, %v34
    %v1528 = vadd.f32 %v1526, %v42
    %v1529 = vadd.f32 %v1527, %v46
    %1531 = vrot.lane.b32.xlu0 %v1518, 64
    %v1532 = vpop.permute.xlu0 %1531
    %v1533 = vsel %vm75, %v1532, 0
    %1535 = vmatprep.subr.mxu0 %v60
    %1536 = vmatpush1.msra.mxu0 %v59
    %1537 = vmatprep.subr.mxu0 %v62
    %1538 = vmatpush1.msra.mxu0 %v61
    %1539 = vmatprep.subr.mxu0 %v64
    %1540 = vmatpush1.msra.mxu0 %v63
    %1541 = vmatprep.subr.mxu0 %v66
    %1542 = vmatpush1.msra.mxu0 %v65
    %1543 = vmatprep.subr.mxu0 %v68
    %1544 = vmatpush1.msra.mxu0 %v67
    %1545 = vmatprep.subr.mxu0 %v70
    %1546 = vmatpush1.msra.mxu0 %v69
    %1547 = vmatprep.subr.mxu0 %v72
    %1548 = vmatpush1.msra.mxu0 %v71
    %1549 = vmatprep.subr.mxu0 %v74
    %1550 = vmatpush1.msra.mxu0 %v73
    %1551 = vmatprep.subr.mxu0 0.0
    %1552 = vmatpush1.msra.mxu0 0.0
    %1553 = vmatprep.subr.mxu0 0.0
    %1554 = vmatpush1.msra.mxu0 0.0
    %1555 = vmatprep.subr.mxu0 0.0
    %1556 = vmatpush1.msra.mxu0 0.0
    %1557 = vmatprep.subr.mxu0 0.0
    %1558 = vmatpush1.msra.mxu0 0.0
    %1559 = vmatprep.subr.mxu0 0.0
    %1560 = vmatpush1.msra.mxu0 0.0
    %1561 = vmatprep.subr.mxu0 0.0
    %1562 = vmatpush1.msra.mxu0 0.0
    %1563 = vmatprep.subr.mxu0 0.0
    %1564 = vmatpush1.msra.mxu0 0.0
    %1565 = vmatprep.subr.mxu0 0.0
    %1566 = vmatpush1.msra.mxu0 0.0
    %1567 = vmatprep.subr.mxu0 0.0
    %1568 = vmatpush1.msra.mxu0 0.0
    %1569 = vmatprep.subr.mxu0 0.0
    %1570 = vmatpush1.msra.mxu0 0.0
    %1571 = vmatprep.subr.mxu0 0.0
    %1572 = vmatpush1.msra.mxu0 0.0
    %1573 = vmatprep.subr.mxu0 0.0
    %1574 = vmatpush1.msra.mxu0 0.0
    %1575 = vmatprep.subr.mxu0 0.0
    %1576 = vmatpush1.msra.mxu0 0.0
    %1577 = vmatprep.subr.mxu0 0.0
    %1578 = vmatpush1.msra.mxu0 0.0
    %1579 = vmatprep.subr.mxu0 0.0
    %1580 = vmatpush1.msra.mxu0 0.0
    %1581 = vmatprep.subr.mxu0 0.0
    %1582 = vmatpush1.msra.mxu0 0.0
    %1583 = vmatprep.subr.mxu0 0.0
    %1584 = vmatpush1.msra.mxu0 0.0
    %1585 = vmatprep.subr.mxu0 0.0
    %1586 = vmatpush1.msra.mxu0 0.0
    %1587 = vmatprep.subr.mxu0 0.0
    %1588 = vmatpush1.msra.mxu0 0.0
    %1589 = vmatprep.subr.mxu0 0.0
    %1590 = vmatpush1.msra.mxu0 0.0
    %1591 = vmatprep.subr.mxu0 0.0
    %1592 = vmatpush1.msra.mxu0 0.0
    %1593 = vmatprep.subr.mxu0 0.0
    %1594 = vmatpush1.msra.mxu0 0.0
    %1595 = vmatprep.subr.mxu0 0.0
    %1596 = vmatpush1.msra.mxu0 0.0
    %1597 = vmatprep.subr.mxu0 0.0
    %1598 = vmatpush1.msra.mxu0 0.0
    %1599 = vmatprep.mubr.f32.mxu0 0.0
    %1600 = vmatmul.mubr.f32.gmra.mrb[0].mxu0 %v1533
    %v1601 = vpop.f32.mrb[0].mxu0
    %v1602 = vadd.f32 0.0, %v1601
    %v1603 = vpop.f32.mrb[0].mxu0
    %v1604 = vadd.f32 0.0, %v1603
    %1605 = vdwg.mxu0
    %v1606 = vadd.f32 %v1528, %v1602
    %v1607 = vadd.f32 %v1529, %v1604
    %v1608 = vtanh.pop %v1606
    %v1609 = vtanh.pop %v1607
    %v1610 = vmul.f32 %v1608, 0.5
    %v1611 = vadd.f32 %v1610, 0.5
    %v1612 = vmul.f32 %v1609, 0.5
    %v1613 = vadd.f32 %v1612, 0.5
    %v1614 = vmul.f32 %v1611, %v1516
    %v1615 = vmul.f32 %v1611, %v1609
    %1617 = vrot.lane.b32.xlu0 %v1615, 64
    %v1618 = vpop.permute.xlu0 %1617
    %v1620 = vadd.f32 %v1614, %v1618
    %v1621 = vtanh.pop %v1620
    %v1622 = vmul.f32 %v1613, %v1621
    %s1623 = scalar_lea.vmem %s0, 120
    %v1624 = vld [vmem:[%s1623] sm:$0xff]
    %1626 = vset.pattern.permute.xlu0 0
    %1627 = vperm.xlu0 %1626, %v1624
    %v1628 = vpop.permute.xlu0 %1627
    %v1630 = vmul.f32 %v1628, %v30
    %v1631 = vmul.f32 %v1628, %v34
    %v1632 = vadd.f32 %v1630, %v42
    %v1633 = vadd.f32 %v1631, %v46
    %1635 = vrot.lane.b32.xlu0 %v1622, 64
    %v1636 = vpop.permute.xlu0 %1635
    %v1637 = vsel %vm75, %v1636, 0
    %1639 = vmatprep.subr.mxu0 %v60
    %1640 = vmatpush1.msra.mxu0 %v59
    %1641 = vmatprep.subr.mxu0 %v62
    %1642 = vmatpush1.msra.mxu0 %v61
    %1643 = vmatprep.subr.mxu0 %v64
    %1644 = vmatpush1.msra.mxu0 %v63
    %1645 = vmatprep.subr.mxu0 %v66
    %1646 = vmatpush1.msra.mxu0 %v65
    %1647 = vmatprep.subr.mxu0 %v68
    %1648 = vmatpush1.msra.mxu0 %v67
    %1649 = vmatprep.subr.mxu0 %v70
    %1650 = vmatpush1.msra.mxu0 %v69
    %1651 = vmatprep.subr.mxu0 %v72
    %1652 = vmatpush1.msra.mxu0 %v71
    %1653 = vmatprep.subr.mxu0 %v74
    %1654 = vmatpush1.msra.mxu0 %v73
    %1655 = vmatprep.subr.mxu0 0.0
    %1656 = vmatpush1.msra.mxu0 0.0
    %1657 = vmatprep.subr.mxu0 0.0
    %1658 = vmatpush1.msra.mxu0 0.0
    %1659 = vmatprep.subr.mxu0 0.0
    %1660 = vmatpush1.msra.mxu0 0.0
    %1661 = vmatprep.subr.mxu0 0.0
    %1662 = vmatpush1.msra.mxu0 0.0
    %1663 = vmatprep.subr.mxu0 0.0
    %1664 = vmatpush1.msra.mxu0 0.0
    %1665 = vmatprep.subr.mxu0 0.0
    %1666 = vmatpush1.msra.mxu0 0.0
    %1667 = vmatprep.subr.mxu0 0.0
    %1668 = vmatpush1.msra.mxu0 0.0
    %1669 = vmatprep.subr.mxu0 0.0
    %1670 = vmatpush1.msra.mxu0 0.0
    %1671 = vmatprep.subr.mxu0 0.0
    %1672 = vmatpush1.msra.mxu0 0.0
    %1673 = vmatprep.subr.mxu0 0.0
    %1674 = vmatpush1.msra.mxu0 0.0
    %1675 = vmatprep.subr.mxu0 0.0
    %1676 = vmatpush1.msra.mxu0 0.0
    %1677 = vmatprep.subr.mxu0 0.0
    %1678 = vmatpush1.msra.mxu0 0.0
    %1679 = vmatprep.subr.mxu0 0.0
    %1680 = vmatpush1.msra.mxu0 0.0
    %1681 = vmatprep.subr.mxu0 0.0
    %1682 = vmatpush1.msra.mxu0 0.0
    %1683 = vmatprep.subr.mxu0 0.0
    %1684 = vmatpush1.msra.mxu0 0.0
    %1685 = vmatprep.subr.mxu0 0.0
    %1686 = vmatpush1.msra.mxu0 0.0
    %1687 = vmatprep.subr.mxu0 0.0
    %1688 = vmatpush1.msra.mxu0 0.0
    %1689 = vmatprep.subr.mxu0 0.0
    %1690 = vmatpush1.msra.mxu0 0.0
    %1691 = vmatprep.subr.mxu0 0.0
    %1692 = vmatpush1.msra.mxu0 0.0
    %1693 = vmatprep.subr.mxu0 0.0
    %1694 = vmatpush1.msra.mxu0 0.0
    %1695 = vmatprep.subr.mxu0 0.0
    %1696 = vmatpush1.msra.mxu0 0.0
    %1697 = vmatprep.subr.mxu0 0.0
    %1698 = vmatpush1.msra.mxu0 0.0
    %1699 = vmatprep.subr.mxu0 0.0
    %1700 = vmatpush1.msra.mxu0 0.0
    %1701 = vmatprep.subr.mxu0 0.0
    %1702 = vmatpush1.msra.mxu0 0.0
    %1703 = vmatprep.mubr.f32.mxu0 0.0
    %1704 = vmatmul.mubr.f32.gmra.mrb[0].mxu0 %v1637
    %v1705 = vpop.f32.mrb[0].mxu0
    %v1706 = vadd.f32 0.0, %v1705
    %v1707 = vpop.f32.mrb[0].mxu0
    %v1708 = vadd.f32 0.0, %v1707
    %1709 = vdwg.mxu0
    %v1710 = vadd.f32 %v1632, %v1706
    %v1711 = vadd.f32 %v1633, %v1708
    %v1712 = vtanh.pop %v1710
    %v1713 = vtanh.pop %v1711
    %v1714 = vmul.f32 %v1712, 0.5
    %v1715 = vadd.f32 %v1714, 0.5
    %v1716 = vmul.f32 %v1713, 0.5
    %v1717 = vadd.f32 %v1716, 0.5
    %v1718 = vmul.f32 %v1715, %v1620
    %v1719 = vmul.f32 %v1715, %v1713
    %1721 = vrot.lane.b32.xlu0 %v1719, 64
    %v1722 = vpop.permute.xlu0 %1721
    %v1724 = vadd.f32 %v1718, %v1722
    %v1725 = vtanh.pop %v1724
    %v1726 = vmul.f32 %v1717, %v1725
    %s1727 = scalar_lea.vmem %s0, 128
    %v1728 = vld [vmem:[%s1727] sm:$0xff]
    %1730 = vset.pattern.permute.xlu0 0
    %1731 = vperm.xlu0 %1730, %v1728
    %v1732 = vpop.permute.xlu0 %1731
    %v1734 = vmul.f32 %v1732, %v30
    %v1735 = vmul.f32 %v1732, %v34
    %v1736 = vadd.f32 %v1734, %v42
    %v1737 = vadd.f32 %v1735, %v46
    %1739 = vrot.lane.b32.xlu0 %v1726, 64
    %v1740 = vpop.permute.xlu0 %1739
    %v1741 = vsel %vm75, %v1740, 0
    %1743 = vmatprep.subr.mxu0 %v60
    %1744 = vmatpush1.msra.mxu0 %v59
    %1745 = vmatprep.subr.mxu0 %v62
    %1746 = vmatpush1.msra.mxu0 %v61
    %1747 = vmatprep.subr.mxu0 %v64
    %1748 = vmatpush1.msra.mxu0 %v63
    %1749 = vmatprep.subr.mxu0 %v66
    %1750 = vmatpush1.msra.mxu0 %v65
    %1751 = vmatprep.subr.mxu0 %v68
    %1752 = vmatpush1.msra.mxu0 %v67
    %1753 = vmatprep.subr.mxu0 %v70
    %1754 = vmatpush1.msra.mxu0 %v69
    %1755 = vmatprep.subr.mxu0 %v72
    %1756 = vmatpush1.msra.mxu0 %v71
    %1757 = vmatprep.subr.mxu0 %v74
    %1758 = vmatpush1.msra.mxu0 %v73
    %1759 = vmatprep.subr.mxu0 0.0
    %1760 = vmatpush1.msra.mxu0 0.0
    %1761 = vmatprep.subr.mxu0 0.0
    %1762 = vmatpush1.msra.mxu0 0.0
    %1763 = vmatprep.subr.mxu0 0.0
    %1764 = vmatpush1.msra.mxu0 0.0
    %1765 = vmatprep.subr.mxu0 0.0
    %1766 = vmatpush1.msra.mxu0 0.0
    %1767 = vmatprep.subr.mxu0 0.0
    %1768 = vmatpush1.msra.mxu0 0.0
    %1769 = vmatprep.subr.mxu0 0.0
    %1770 = vmatpush1.msra.mxu0 0.0
    %1771 = vmatprep.subr.mxu0 0.0
    %1772 = vmatpush1.msra.mxu0 0.0
    %1773 = vmatprep.subr.mxu0 0.0
    %1774 = vmatpush1.msra.mxu0 0.0
    %1775 = vmatprep.subr.mxu0 0.0
    %1776 = vmatpush1.msra.mxu0 0.0
    %1777 = vmatprep.subr.mxu0 0.0
    %1778 = vmatpush1.msra.mxu0 0.0
    %1779 = vmatprep.subr.mxu0 0.0
    %1780 = vmatpush1.msra.mxu0 0.0
    %1781 = vmatprep.subr.mxu0 0.0
    %1782 = vmatpush1.msra.mxu0 0.0
    %1783 = vmatprep.subr.mxu0 0.0
    %1784 = vmatpush1.msra.mxu0 0.0
    %1785 = vmatprep.subr.mxu0 0.0
    %1786 = vmatpush1.msra.mxu0 0.0
    %1787 = vmatprep.subr.mxu0 0.0
    %1788 = vmatpush1.msra.mxu0 0.0
    %1789 = vmatprep.subr.mxu0 0.0
    %1790 = vmatpush1.msra.mxu0 0.0
    %1791 = vmatprep.subr.mxu0 0.0
    %1792 = vmatpush1.msra.mxu0 0.0
    %1793 = vmatprep.subr.mxu0 0.0
    %1794 = vmatpush1.msra.mxu0 0.0
    %1795 = vmatprep.subr.mxu0 0.0
    %1796 = vmatpush1.msra.mxu0 0.0
    %1797 = vmatprep.subr.mxu0 0.0
    %1798 = vmatpush1.msra.mxu0 0.0
    %1799 = vmatprep.subr.mxu0 0.0
    %1800 = vmatpush1.msra.mxu0 0.0
    %1801 = vmatprep.subr.mxu0 0.0
    %1802 = vmatpush1.msra.mxu0 0.0
    %1803 = vmatprep.subr.mxu0 0.0
    %1804 = vmatpush1.msra.mxu0 0.0
    %1805 = vmatprep.subr.mxu0 0.0
    %1806 = vmatpush1.msra.mxu0 0.0
    %1807 = vmatprep.mubr.f32.mxu0 0.0
    %1808 = vmatmul.mubr.f32.gmra.mrb[0].mxu0 %v1741
    %v1809 = vpop.f32.mrb[0].mxu0
    %v1810 = vadd.f32 0.0, %v1809
    %v1811 = vpop.f32.mrb[0].mxu0
    %v1812 = vadd.f32 0.0, %v1811
    %1813 = vdwg.mxu0
    %v1814 = vadd.f32 %v1736, %v1810
    %v1815 = vadd.f32 %v1737, %v1812
    %v1816 = vtanh.pop %v1814
    %v1817 = vtanh.pop %v1815
    %v1818 = vmul.f32 %v1816, 0.5
    %v1819 = vadd.f32 %v1818, 0.5
    %v1820 = vmul.f32 %v1817, 0.5
    %v1821 = vadd.f32 %v1820, 0.5
    %v1822 = vmul.f32 %v1819, %v1724
    %v1823 = vmul.f32 %v1819, %v1817
    %1825 = vrot.lane.b32.xlu0 %v1823, 64
    %v1826 = vpop.permute.xlu0 %1825
    %v1828 = vadd.f32 %v1822, %v1826
    %v1829 = vtanh.pop %v1828
    %v1830 = vmul.f32 %v1821, %v1829
    %s1831 = scalar_lea.vmem %s0, 136
    %v1832 = vld [vmem:[%s1831] sm:$0xff]
    %1834 = vset.pattern.permute.xlu0 0
    %1835 = vperm.xlu0 %1834, %v1832
    %v1836 = vpop.permute.xlu0 %1835
    %v1838 = vmul.f32 %v1836, %v30
    %v1839 = vmul.f32 %v1836, %v34
    %v1840 = vadd.f32 %v1838, %v42
    %v1841 = vadd.f32 %v1839, %v46
    %1843 = vrot.lane.b32.xlu0 %v1830, 64
    %v1844 = vpop.permute.xlu0 %1843
    %v1845 = vsel %vm75, %v1844, 0
    %1847 = vmatprep.subr.mxu0 %v60
    %1848 = vmatpush1.msra.mxu0 %v59
    %1849 = vmatprep.subr.mxu0 %v62
    %1850 = vmatpush1.msra.mxu0 %v61
    %1851 = vmatprep.subr.mxu0 %v64
    %1852 = vmatpush1.msra.mxu0 %v63
    %1853 = vmatprep.subr.mxu0 %v66
    %1854 = vmatpush1.msra.mxu0 %v65
    %1855 = vmatprep.subr.mxu0 %v68
    %1856 = vmatpush1.msra.mxu0 %v67
    %1857 = vmatprep.subr.mxu0 %v70
    %1858 = vmatpush1.msra.mxu0 %v69
    %1859 = vmatprep.subr.mxu0 %v72
    %1860 = vmatpush1.msra.mxu0 %v71
    %1861 = vmatprep.subr.mxu0 %v74
    %1862 = vmatpush1.msra.mxu0 %v73
    %1863 = vmatprep.subr.mxu0 0.0
    %1864 = vmatpush1.msra.mxu0 0.0
    %1865 = vmatprep.subr.mxu0 0.0
    %1866 = vmatpush1.msra.mxu0 0.0
    %1867 = vmatprep.subr.mxu0 0.0
    %1868 = vmatpush1.msra.mxu0 0.0
    %1869 = vmatprep.subr.mxu0 0.0
    %1870 = vmatpush1.msra.mxu0 0.0
    %1871 = vmatprep.subr.mxu0 0.0
    %1872 = vmatpush1.msra.mxu0 0.0
    %1873 = vmatprep.subr.mxu0 0.0
    %1874 = vmatpush1.msra.mxu0 0.0
    %1875 = vmatprep.subr.mxu0 0.0
    %1876 = vmatpush1.msra.mxu0 0.0
    %1877 = vmatprep.subr.mxu0 0.0
    %1878 = vmatpush1.msra.mxu0 0.0
    %1879 = vmatprep.subr.mxu0 0.0
    %1880 = vmatpush1.msra.mxu0 0.0
    %1881 = vmatprep.subr.mxu0 0.0
    %1882 = vmatpush1.msra.mxu0 0.0
    %1883 = vmatprep.subr.mxu0 0.0
    %1884 = vmatpush1.msra.mxu0 0.0
    %1885 = vmatprep.subr.mxu0 0.0
    %1886 = vmatpush1.msra.mxu0 0.0
    %1887 = vmatprep.subr.mxu0 0.0
    %1888 = vmatpush1.msra.mxu0 0.0
    %1889 = vmatprep.subr.mxu0 0.0
    %1890 = vmatpush1.msra.mxu0 0.0
    %1891 = vmatprep.subr.mxu0 0.0
    %1892 = vmatpush1.msra.mxu0 0.0
    %1893 = vmatprep.subr.mxu0 0.0
    %1894 = vmatpush1.msra.mxu0 0.0
    %1895 = vmatprep.subr.mxu0 0.0
    %1896 = vmatpush1.msra.mxu0 0.0
    %1897 = vmatprep.subr.mxu0 0.0
    %1898 = vmatpush1.msra.mxu0 0.0
    %1899 = vmatprep.subr.mxu0 0.0
    %1900 = vmatpush1.msra.mxu0 0.0
    %1901 = vmatprep.subr.mxu0 0.0
    %1902 = vmatpush1.msra.mxu0 0.0
    %1903 = vmatprep.subr.mxu0 0.0
    %1904 = vmatpush1.msra.mxu0 0.0
    %1905 = vmatprep.subr.mxu0 0.0
    %1906 = vmatpush1.msra.mxu0 0.0
    %1907 = vmatprep.subr.mxu0 0.0
    %1908 = vmatpush1.msra.mxu0 0.0
    %1909 = vmatprep.subr.mxu0 0.0
    %1910 = vmatpush1.msra.mxu0 0.0
    %1911 = vmatprep.mubr.f32.mxu0 0.0
    %1912 = vmatmul.mubr.f32.gmra.mrb[0].mxu0 %v1845
    %v1913 = vpop.f32.mrb[0].mxu0
    %v1914 = vadd.f32 0.0, %v1913
    %v1915 = vpop.f32.mrb[0].mxu0
    %v1916 = vadd.f32 0.0, %v1915
    %1917 = vdwg.mxu0
    %v1918 = vadd.f32 %v1840, %v1914
    %v1919 = vadd.f32 %v1841, %v1916
    %v1920 = vtanh.pop %v1918
    %v1921 = vtanh.pop %v1919
    %v1922 = vmul.f32 %v1920, 0.5
    %v1923 = vadd.f32 %v1922, 0.5
    %v1924 = vmul.f32 %v1921, 0.5
    %v1925 = vadd.f32 %v1924, 0.5
    %v1926 = vmul.f32 %v1923, %v1828
    %v1927 = vmul.f32 %v1923, %v1921
    %1929 = vrot.lane.b32.xlu0 %v1927, 64
    %v1930 = vpop.permute.xlu0 %1929
    %v1932 = vadd.f32 %v1926, %v1930
    %v1933 = vtanh.pop %v1932
    %v1934 = vmul.f32 %v1925, %v1933
    %s1935 = scalar_lea.vmem %s0, 144
    %v1936 = vld [vmem:[%s1935] sm:$0xff]
    %1938 = vset.pattern.permute.xlu0 0
    %1939 = vperm.xlu0 %1938, %v1936
    %v1940 = vpop.permute.xlu0 %1939
    %v1942 = vmul.f32 %v1940, %v30
    %v1943 = vmul.f32 %v1940, %v34
    %v1944 = vadd.f32 %v1942, %v42
    %v1945 = vadd.f32 %v1943, %v46
    %1947 = vrot.lane.b32.xlu0 %v1934, 64
    %v1948 = vpop.permute.xlu0 %1947
    %v1949 = vsel %vm75, %v1948, 0
    %1951 = vmatprep.subr.mxu0 %v60
    %1952 = vmatpush1.msra.mxu0 %v59
    %1953 = vmatprep.subr.mxu0 %v62
    %1954 = vmatpush1.msra.mxu0 %v61
    %1955 = vmatprep.subr.mxu0 %v64
    %1956 = vmatpush1.msra.mxu0 %v63
    %1957 = vmatprep.subr.mxu0 %v66
    %1958 = vmatpush1.msra.mxu0 %v65
    %1959 = vmatprep.subr.mxu0 %v68
    %1960 = vmatpush1.msra.mxu0 %v67
    %1961 = vmatprep.subr.mxu0 %v70
    %1962 = vmatpush1.msra.mxu0 %v69
    %1963 = vmatprep.subr.mxu0 %v72
    %1964 = vmatpush1.msra.mxu0 %v71
    %1965 = vmatprep.subr.mxu0 %v74
    %1966 = vmatpush1.msra.mxu0 %v73
    %1967 = vmatprep.subr.mxu0 0.0
    %1968 = vmatpush1.msra.mxu0 0.0
    %1969 = vmatprep.subr.mxu0 0.0
    %1970 = vmatpush1.msra.mxu0 0.0
    %1971 = vmatprep.subr.mxu0 0.0
    %1972 = vmatpush1.msra.mxu0 0.0
    %1973 = vmatprep.subr.mxu0 0.0
    %1974 = vmatpush1.msra.mxu0 0.0
    %1975 = vmatprep.subr.mxu0 0.0
    %1976 = vmatpush1.msra.mxu0 0.0
    %1977 = vmatprep.subr.mxu0 0.0
    %1978 = vmatpush1.msra.mxu0 0.0
    %1979 = vmatprep.subr.mxu0 0.0
    %1980 = vmatpush1.msra.mxu0 0.0
    %1981 = vmatprep.subr.mxu0 0.0
    %1982 = vmatpush1.msra.mxu0 0.0
    %1983 = vmatprep.subr.mxu0 0.0
    %1984 = vmatpush1.msra.mxu0 0.0
    %1985 = vmatprep.subr.mxu0 0.0
    %1986 = vmatpush1.msra.mxu0 0.0
    %1987 = vmatprep.subr.mxu0 0.0
    %1988 = vmatpush1.msra.mxu0 0.0
    %1989 = vmatprep.subr.mxu0 0.0
    %1990 = vmatpush1.msra.mxu0 0.0
    %1991 = vmatprep.subr.mxu0 0.0
    %1992 = vmatpush1.msra.mxu0 0.0
    %1993 = vmatprep.subr.mxu0 0.0
    %1994 = vmatpush1.msra.mxu0 0.0
    %1995 = vmatprep.subr.mxu0 0.0
    %1996 = vmatpush1.msra.mxu0 0.0
    %1997 = vmatprep.subr.mxu0 0.0
    %1998 = vmatpush1.msra.mxu0 0.0
    %1999 = vmatprep.subr.mxu0 0.0
    %2000 = vmatpush1.msra.mxu0 0.0
    %2001 = vmatprep.subr.mxu0 0.0
    %2002 = vmatpush1.msra.mxu0 0.0
    %2003 = vmatprep.subr.mxu0 0.0
    %2004 = vmatpush1.msra.mxu0 0.0
    %2005 = vmatprep.subr.mxu0 0.0
    %2006 = vmatpush1.msra.mxu0 0.0
    %2007 = vmatprep.subr.mxu0 0.0
    %2008 = vmatpush1.msra.mxu0 0.0
    %2009 = vmatprep.subr.mxu0 0.0
    %2010 = vmatpush1.msra.mxu0 0.0
    %2011 = vmatprep.subr.mxu0 0.0
    %2012 = vmatpush1.msra.mxu0 0.0
    %2013 = vmatprep.subr.mxu0 0.0
    %2014 = vmatpush1.msra.mxu0 0.0
    %2015 = vmatprep.mubr.f32.mxu0 0.0
    %2016 = vmatmul.mubr.f32.gmra.mrb[0].mxu0 %v1949
    %v2017 = vpop.f32.mrb[0].mxu0
    %v2018 = vadd.f32 0.0, %v2017
    %v2019 = vpop.f32.mrb[0].mxu0
    %v2020 = vadd.f32 0.0, %v2019
    %2021 = vdwg.mxu0
    %v2022 = vadd.f32 %v1944, %v2018
    %v2023 = vadd.f32 %v1945, %v2020
    %v2024 = vtanh.pop %v2022
    %v2025 = vtanh.pop %v2023
    %v2026 = vmul.f32 %v2024, 0.5
    %v2027 = vadd.f32 %v2026, 0.5
    %v2028 = vmul.f32 %v2025, 0.5
    %v2029 = vadd.f32 %v2028, 0.5
    %v2030 = vmul.f32 %v2027, %v1932
    %v2031 = vmul.f32 %v2027, %v2025
    %2033 = vrot.lane.b32.xlu0 %v2031, 64
    %v2034 = vpop.permute.xlu0 %2033
    %v2036 = vadd.f32 %v2030, %v2034
    %v2037 = vtanh.pop %v2036
    %v2038 = vmul.f32 %v2029, %v2037
    %s2039 = scalar_lea.vmem %s0, 152
    %v2040 = vld [vmem:[%s2039] sm:$0xff]
    %2042 = vset.pattern.permute.xlu0 0
    %2043 = vperm.xlu0 %2042, %v2040
    %v2044 = vpop.permute.xlu0 %2043
    %v2046 = vmul.f32 %v2044, %v30
    %v2047 = vmul.f32 %v2044, %v34
    %v2048 = vadd.f32 %v2046, %v42
    %v2049 = vadd.f32 %v2047, %v46
    %2051 = vrot.lane.b32.xlu0 %v2038, 64
    %v2052 = vpop.permute.xlu0 %2051
    %v2053 = vsel %vm75, %v2052, 0
    %2055 = vmatprep.subr.mxu0 %v60
    %2056 = vmatpush1.msra.mxu0 %v59
    %2057 = vmatprep.subr.mxu0 %v62
    %2058 = vmatpush1.msra.mxu0 %v61
    %2059 = vmatprep.subr.mxu0 %v64
    %2060 = vmatpush1.msra.mxu0 %v63
    %2061 = vmatprep.subr.mxu0 %v66
    %2062 = vmatpush1.msra.mxu0 %v65
    %2063 = vmatprep.subr.mxu0 %v68
    %2064 = vmatpush1.msra.mxu0 %v67
    %2065 = vmatprep.subr.mxu0 %v70
    %2066 = vmatpush1.msra.mxu0 %v69
    %2067 = vmatprep.subr.mxu0 %v72
    %2068 = vmatpush1.msra.mxu0 %v71
    %2069 = vmatprep.subr.mxu0 %v74
    %2070 = vmatpush1.msra.mxu0 %v73
    %2071 = vmatprep.subr.mxu0 0.0
    %2072 = vmatpush1.msra.mxu0 0.0
    %2073 = vmatprep.subr.mxu0 0.0
    %2074 = vmatpush1.msra.mxu0 0.0
    %2075 = vmatprep.subr.mxu0 0.0
    %2076 = vmatpush1.msra.mxu0 0.0
    %2077 = vmatprep.subr.mxu0 0.0
    %2078 = vmatpush1.msra.mxu0 0.0
    %2079 = vmatprep.subr.mxu0 0.0
    %2080 = vmatpush1.msra.mxu0 0.0
    %2081 = vmatprep.subr.mxu0 0.0
    %2082 = vmatpush1.msra.mxu0 0.0
    %2083 = vmatprep.subr.mxu0 0.0
    %2084 = vmatpush1.msra.mxu0 0.0
    %2085 = vmatprep.subr.mxu0 0.0
    %2086 = vmatpush1.msra.mxu0 0.0
    %2087 = vmatprep.subr.mxu0 0.0
    %2088 = vmatpush1.msra.mxu0 0.0
    %2089 = vmatprep.subr.mxu0 0.0
    %2090 = vmatpush1.msra.mxu0 0.0
    %2091 = vmatprep.subr.mxu0 0.0
    %2092 = vmatpush1.msra.mxu0 0.0
    %2093 = vmatprep.subr.mxu0 0.0
    %2094 = vmatpush1.msra.mxu0 0.0
    %2095 = vmatprep.subr.mxu0 0.0
    %2096 = vmatpush1.msra.mxu0 0.0
    %2097 = vmatprep.subr.mxu0 0.0
    %2098 = vmatpush1.msra.mxu0 0.0
    %2099 = vmatprep.subr.mxu0 0.0
    %2100 = vmatpush1.msra.mxu0 0.0
    %2101 = vmatprep.subr.mxu0 0.0
    %2102 = vmatpush1.msra.mxu0 0.0
    %2103 = vmatprep.subr.mxu0 0.0
    %2104 = vmatpush1.msra.mxu0 0.0
    %2105 = vmatprep.subr.mxu0 0.0
    %2106 = vmatpush1.msra.mxu0 0.0
    %2107 = vmatprep.subr.mxu0 0.0
    %2108 = vmatpush1.msra.mxu0 0.0
    %2109 = vmatprep.subr.mxu0 0.0
    %2110 = vmatpush1.msra.mxu0 0.0
    %2111 = vmatprep.subr.mxu0 0.0
    %2112 = vmatpush1.msra.mxu0 0.0
    %2113 = vmatprep.subr.mxu0 0.0
    %2114 = vmatpush1.msra.mxu0 0.0
    %2115 = vmatprep.subr.mxu0 0.0
    %2116 = vmatpush1.msra.mxu0 0.0
    %2117 = vmatprep.subr.mxu0 0.0
    %2118 = vmatpush1.msra.mxu0 0.0
    %2119 = vmatprep.mubr.f32.mxu0 0.0
    %2120 = vmatmul.mubr.f32.gmra.mrb[0].mxu0 %v2053
    %v2121 = vpop.f32.mrb[0].mxu0
    %v2122 = vadd.f32 0.0, %v2121
    %v2123 = vpop.f32.mrb[0].mxu0
    %v2124 = vadd.f32 0.0, %v2123
    %2125 = vdwg.mxu0
    %v2126 = vadd.f32 %v2048, %v2122
    %v2127 = vadd.f32 %v2049, %v2124
    %v2128 = vtanh.pop %v2126
    %v2129 = vtanh.pop %v2127
    %v2130 = vmul.f32 %v2128, 0.5
    %v2131 = vadd.f32 %v2130, 0.5
    %v2132 = vmul.f32 %v2129, 0.5
    %v2133 = vadd.f32 %v2132, 0.5
    %v2134 = vmul.f32 %v2131, %v2036
    %v2135 = vmul.f32 %v2131, %v2129
    %2137 = vrot.lane.b32.xlu0 %v2135, 64
    %v2138 = vpop.permute.xlu0 %2137
    %v2140 = vadd.f32 %v2134, %v2138
    %v2141 = vtanh.pop %v2140
    %v2142 = vmul.f32 %v2133, %v2141
    %v2143 = vld [vmem:[%s4] sm:$0x1]
    %v2145 = vlaneseq
    %v2146 = vshrl.u32 %v2145, 7
    %v2147 = vsub.s32 0, %v2146
    %v2148 = vrot.slane %v2143, %v2147
    %2149 = vrot.lane.b32.xlu0 %v2148, 64
    %v2150 = vpop.permute.xlu0 %2149
    %v2152 = vmul.f32 %v2142, %v2150
    %2154 = vrot.lane.b32.xlu0 %v2152, 64
    %v2155 = vpop.permute.xlu0 %2154
    %v2157 = vsel %vm75, %v2155, 0.0
    %2158 = vadd.xlane.f32.xlu0 %v2157
    %v2159 = vpop.xlane.xlu0 %2158
    %s2160 = sld [smem:[#allocation2]]
    %v2161 = vstv %s2160
    %v2162 = vadd.f32 %v2159, %v2161
    %2163 = vst [vmem:[#allocation3] sm:$0xff] %v2162
    // Predicated region
    $region26: #{tpu_custom_call.1} parent=1 // pred_check
      _
    $region27: #{tpu_custom_call.1} parent=1 // pred_check_branch
      %2165 = sbr.rel (0) target = $region29
    $region28: #{tpu_custom_call.1} parent=1 // pred_region
      %s2167 = ssub.s32 128, 128
      %2168 = vsyncadd [#allocation4], %s2167
      %s2170 = sshll.u32 [#allocation3], 4
      %s2171 = int_to_ptr.vmem [resolvable:$true] %s2170
      %2173 = dma.vmem_to_hbm [thread:$0]  %s2171, 128, %s6, [#allocation4]
    $region29: #{tpu_custom_call.1} parent=1 // pred_fallthru
      _
    // Predicated region
    $region30: #{tpu_custom_call.1} parent=1 // pred_check
      _
    $region31: #{tpu_custom_call.1} parent=1 // pred_check_branch
      %2175 = sbr.rel (0) target = $region33
    $region32: #{tpu_custom_call.1} parent=1 // pred_region
      %2176 = dma.done [#allocation4], 128
    $region33: #{tpu_custom_call.1} parent=1 // pred_fallthru
      _
    %2177 = vsyncpa [#allocation4], 1

</llo_original>
